<compile_context>
chip_gen: v7x
topology: tpu7x:2x2x1
jax: 0.10.0
libtpu: 0.0.40
codegen_flags: <defaults>
</compile_context>

<pallas_src>
import jax
import jax.numpy as jnp
from jax.experimental import pallas as pl
from jax.experimental.pallas import tpu as pltpu


# ---------------------------- static layer constants ----------------------------

_C1_K, _C1_CIN, _C1_COUT, _C1_PAD = 9, 1, 4, 4      # Conv1d(1->4, k=9, replicate pad)
_C2_K, _C2_CIN, _C2_COUT, _C2_PAD = 5, 4, 8, 2      # Conv1d(4->8, k=5, replicate pad)

_OFF_EW1 = 0
_OFF_EB1 = _OFF_EW1 + _C1_COUT * _C1_CIN * _C1_K    # 36
_OFF_EW2 = _OFF_EB1 + _C1_COUT                       # 40
_OFF_EB2 = _OFF_EW2 + _C2_COUT * _C2_CIN * _C2_K    # 200
_CONVP_LEN = _OFF_EB2 + _C2_COUT                     # 208


# ------------------------------ in-kernel helpers --------------------------------

def _leaky_relu(x):
    return jnp.where(x > 0, x, 0.01 * x)             # nn.LeakyReLU default slope


def _lstm_cell(pre, c_prev, H):
    """Fused-gate LSTM cell.  pre: (Bt, 4H) with [i|f|g|o] column blocks (PyTorch order)."""
    i = jax.nn.sigmoid(pre[:, 0:H])
    f = jax.nn.sigmoid(pre[:, H:2 * H])
    g = jnp.tanh(pre[:, 2 * H:3 * H])
    o = jax.nn.sigmoid(pre[:, 3 * H:4 * H])
    c = i * g if c_prev is None else f * c_prev + i * g
    h = o * jnp.tanh(c)
    return h, c


def _conv1d_replicate(chans, p_ref, w_off, b_off, K, Cout, pad):
    """y[co,t] = b[co] + sum_{ci,k} w[co,ci,k] * x[ci, clamp(t+k-pad, 0, L-1)].

    Each tap is assembled inside a single 128-lane frame (edge-broadcast piece
    lane-concatenated with a prefix/suffix slice of x -> one lane rotate + masked
    select), so no tap crosses a vreg boundary.  The tiny Cin contraction is done
    with VPU scalar*vector FMAs (weights read as SMEM scalars), keeping the MXU
    free for the pooling / LSTM / decoder matmuls.
    """
    Cin = len(chans)
    Bt, L = chans[0].shape
    accs = [None] * Cout
    for ci in range(Cin):
        x = chans[ci]
        left = jnp.broadcast_to(x[:, 0:1], (Bt, L))      # replicate-pad edge values
        right = jnp.broadcast_to(x[:, L - 1:L], (Bt, L))
        for k in range(K):
            d = k - pad                                  # tap reads x[:, t + d]
            if d == 0:
                s = x
            elif d < 0:                                  # shift right; replicate left edge
                s = jnp.concatenate([left[:, :-d], x[:, :L + d]], axis=1)
            else:                                        # shift left; replicate right edge
                s = jnp.concatenate([x[:, d:], right[:, :d]], axis=1)
            for co in range(Cout):
                w = p_ref[w_off + (co * Cin + ci) * K + k]   # SMEM scalar
                contrib = w * s
                accs[co] = contrib if accs[co] is None else accs[co] + contrib
    return [accs[co] + p_ref[b_off + co] for co in range(Cout)]


# ---------------------------------- the kernel -----------------------------------

def autoencoder_kernel(x_ref, convp_ref, pool_ref, wih1_ref, b1_ref, whh_ref,
                       wih2_ref, b2_ref, decd_ref, decc_ref, out_ref):
    x = x_ref[...]                                   # (Bt, L) batch rows x signal length
    Bt, L = x.shape

    # ------------------------------- Encoder --------------------------------
    a1 = _conv1d_replicate([x], convp_ref, _OFF_EW1, _OFF_EB1, _C1_K, _C1_COUT, _C1_PAD)
    a1 = [_leaky_relu(v) for v in a1]
    a2 = _conv1d_replicate(a1, convp_ref, _OFF_EW2, _OFF_EB2, _C2_K, _C2_COUT, _C2_PAD)
    a2 = [_leaky_relu(v) for v in a2]

    # MaxPool1d(2): single merged [even|odd] selection matmul, then max of halves.
    T = len(a2)                                      # LSTM1 seq_len (= 8 conv channels)
    A = jnp.concatenate(a2, axis=0)                  # (T*Bt, L), row = t*Bt + b
    Q = jnp.dot(A.astype(pool_ref.dtype), pool_ref[...],
                preferred_element_type=jnp.float32)  # (T*Bt, L): [even pool | odd pool]
    Lh = L // 2
    P = jnp.maximum(Q[:, :Lh], Q[:, Lh:])            # (T*Bt, L//2)

    # ------------------ BiLSTM 1 (fused gates, padded H1, fused fwd/rev) ------------------
    H1p = whh_ref.shape[0] // 2                      # padded hidden size (32)
    G = 4 * H1p                                      # 128: one vreg per direction
    WHH = whh_ref[...]                               # block-diag (2*H1p, 8*H1p), f32
    # Input projection for BOTH directions and ALL timesteps in a single bf16 MXU matmul.
    XP = jnp.dot(P.astype(wih1_ref.dtype), wih1_ref[...],
                 preferred_element_type=jnp.float32) + b1_ref[...]     # (T*Bt, 2G)
    hf = cf = hr = cr = None
    for s in range(T):                               # T=8, statically unrolled
        pre_f = XP[s * Bt:(s + 1) * Bt, 0:G]
        pre_r = XP[(T - 1 - s) * Bt:(T - s) * Bt, G:2 * G]
        if hf is not None:                           # h0 == 0 -> skip first recurrent matmul
            rec = jnp.dot(jnp.concatenate([hf, hr], axis=-1), WHH,
                          preferred_element_type=jnp.float32)          # (Bt, 2G), f32
            pre_f = pre_f + rec[:, 0:G]
            pre_r = pre_r + rec[:, G:2 * G]
        hf, cf = _lstm_cell(pre_f, cf, H1p)
        hr, cr = _lstm_cell(pre_r, cr, H1p)
    seq2 = jnp.concatenate([hf, hr], axis=-1)        # (Bt, 2*H1p); padded cols exactly 0

    # ------------------------ BiLSTM 2 (seq_len == 1) -------------------------
    H2 = wih2_ref.shape[1] // 8
    XP2 = jnp.dot(seq2, wih2_ref[...], preferred_element_type=jnp.float32) + b2_ref[...]
    h2f, _ = _lstm_cell(XP2[:, 0:4 * H2], None, H2)  # zero init => no recurrent matmul
    h2r, _ = _lstm_cell(XP2[:, 4 * H2:8 * H2], None, H2)
    z = jnp.concatenate([h2f, h2r], axis=-1)         # (Bt, embedded_dim)

    # ------------------------------- Decoder ---------------------------------
    # Upsample + 3x ConvTranspose1d are all linear -> one host-precomputed affine map.
    y = jnp.dot(z.astype(decd_ref.dtype), decd_ref[...],
                preferred_element_type=jnp.float32) + decc_ref[...]
    out_ref[...] = y                                 # (Bt, L): sublane- and lane-dense store


# --------------------------------- host wrapper -----------------------------------

def _pick_b_tile(batch):
    """v7x has 2 TensorCores/chip -> keep >=2 parallel grid blocks; v5e/v6e are single-TC,
    so a single grid step avoids pure per-step overhead and maximises matmul M."""
    try:
        kind = jax.devices()[0].device_kind.lower()
    except Exception:
        kind = ""
    two_tc = ("v7" in kind) or ("7x" in kind)
    bt = -(-batch // 2) if (two_tc and batch > 8) else batch
    bt = -(-bt // 8) * 8                             # sublane multiple
    return max(8, min(bt, 256))                      # cap M per grid step


def autoencoder_forward(x, packed, b_tile=None):
    """x: (B, input_dim, 1) f32  ->  (B, input_dim, 1) f32 (same as Autoencoder.forward)."""
    B, L, _ = x.shape
    x2 = x.reshape(B, L).astype(jnp.float32)

    if b_tile is None:
        b_tile = _pick_b_tile(B)
    Bp = ((B + b_tile - 1) // b_tile) * b_tile
    if Bp != B:                                      # pad batch to a multiple of b_tile
        x2 = jnp.concatenate([x2, jnp.zeros((Bp - B, L), jnp.float32)], axis=0)

    smem_spec = pl.BlockSpec(memory_space=pltpu.MemorySpace.SMEM)

    def vmem_full(a):
        nd = a.ndim
        return pl.BlockSpec(a.shape, lambda g, nd=nd: (0,) * nd)

    in_specs = [pl.BlockSpec((b_tile, L), lambda g: (g, 0))]
    in_specs += [smem_spec if w.ndim == 1 else vmem_full(w) for w in packed]

    out = pl.pallas_call(
        autoencoder_kernel,
        out_shape=jax.ShapeDtypeStruct((Bp, L), jnp.float32),
        grid=(Bp // b_tile,),
        in_specs=in_specs,
        out_specs=pl.BlockSpec((b_tile, L), lambda g: (g, 0)),
        compiler_params=pltpu.CompilerParams(dimension_semantics=("parallel",)),
        # NOTE: all buffers are tiny at L=128.  If input_dim is scaled up, the O(L^2)
        # pool matrix (double-buffered by default) is the first VMEM cliff on v7x's
        # 64 MiB: set vmem_limit_bytes / pipeline_mode=pl.Buffered(1) or switch the
        # pooling to a strided-lane max at that point.
    )(x2, *packed)
    return out[:B].reshape(B, L, 1)


# ---------------------- synthetic parameters + kernel packing ----------------------

def make_raw_params(key, input_dim, embedded_dim):
    """Deterministic synthetic parameters in the original PyTorch layouts."""
    hidden_dim = input_dim // 2
    between = (hidden_dim + embedded_dim) // 4
    h2 = embedded_dim // 2
    keys = iter(jax.random.split(key, 40))

    def u(shape, fan):
        s = 1.0 / (fan ** 0.5)
        return jax.random.uniform(next(keys), shape, jnp.float32, -s, s)

    raw = {}
    raw['ew1'] = u((4, 1, 9), 9);       raw['eb1'] = u((4,), 9)          # Conv1d(1->4, k=9)
    raw['ew2'] = u((8, 4, 5), 20);      raw['eb2'] = u((8,), 20)         # Conv1d(4->8, k=5)

    def lstm(in_size, hid):
        return dict(w_ih=u((4 * hid, in_size), hid), w_hh=u((4 * hid, hid), hid),
                    b_ih=u((4 * hid,), hid), b_hh=u((4 * hid,), hid))

    raw['l1f'] = lstm(hidden_dim, between);   raw['l1r'] = lstm(hidden_dim, between)
    raw['l2f'] = lstm(2 * between, h2);       raw['l2r'] = lstm(2 * between, h2)

    raw['d2w'] = u((1, 8, 5), 5);       raw['d2b'] = u((8,), 5)          # ConvT(1->8, k=5, p=2)
    raw['d1w'] = u((8, 4, 9), 72);      raw['d1b'] = u((4,), 72)         # ConvT(8->4, k=9, p=4)
    raw['drw'] = u((4, 1, 1), 4);       raw['drb'] = u((1,), 4)          # ConvT(4->1, k=1)
    return raw


def _conv1d_ref(x, w, b, pad, replicate):
    K = w.shape[-1]
    L = x.shape[-1]
    mode = 'edge' if replicate else 'constant'
    xp = jnp.pad(x, ((0, 0), (0, 0), (pad, K - 1 - pad)), mode=mode)
    out = jnp.zeros((x.shape[0], w.shape[0], L), jnp.float32)
    for k in range(K):
        out = out + jnp.einsum('oc,bcl->bol', w[:, :, k], xp[:, :, k:k + L])
    return out + b[None, :, None]


def _convT1d_ref(x, w, b, pad):
    # ConvTranspose1d(stride=1, padding=pad) == zero-padded correlation with flipped,
    # channel-transposed taps and pad' = K-1-pad (exact; the module uses explicit
    # padding=2/4/0, so output length stays L).
    K = w.shape[-1]
    wc = jnp.transpose(jnp.flip(w, axis=-1), (1, 0, 2))
    return _conv1d_ref(x, wc, b, K - 1 - pad, replicate=False)


def _decoder_affine(raw, E, L):
    """Fold Upsample + ConvT(5) + ConvT(9) + ConvT(1) into y = z @ D + c (exact: all linear)."""
    idx = (jnp.arange(L) * E) // L                   # nearest-upsample source index

    def dec(z):                                      # z: (N, E) -> (N, L)
        y = z[:, None, :][:, :, idx]
        y = _convT1d_ref(y, raw['d2w'], raw['d2b'], 2)
        y = _convT1d_ref(y, raw['d1w'], raw['d1b'], 4)
        y = _convT1d_ref(y, raw['drw'], raw['drb'], 0)
        return y.reshape(-1, L)

    c = dec(jnp.zeros((1, E), jnp.float32))[0]       # (L,)  bias image
    D = dec(jnp.eye(E, dtype=jnp.float32)) - c[None, :]   # (E, L) linear part
    return D, c


def pack_params(raw, input_dim, embedded_dim):
    """Repack PyTorch-layout parameters into kernel-friendly layouts (host side)."""
    L = input_dim
    E = embedded_dim
    hidden_dim = L // 2
    H1 = (hidden_dim + E) // 4
    H1P = -(-H1 // 32) * 32                          # pad hidden so 4*H1P is a lane multiple
    H2 = E // 2

    # --- encoder conv scalars -> one flat SMEM vector ---
    convp = jnp.concatenate([raw['ew1'].reshape(-1), raw['eb1'],
                             raw['ew2'].reshape(-1), raw['eb2']]).astype(jnp.float32)
    assert convp.shape[0] == _CONVP_LEN

    # --- merged MaxPool1d(2) selection matrix (L, L) = [even | odd] ---
    l = jnp.arange(L)[:, None]
    j = jnp.arange(L // 2)[None, :]
    me = (l == 2 * j).astype(jnp.float32)
    mo = (l == 2 * j + 1).astype(jnp.float32)
    pool = jnp.concatenate([me, mo], axis=1)

    # --- LSTM1: transpose, fuse gates on columns, pad H1 -> H1P, block-diag recurrence ---
    def pad_gate_cols(w):                            # (F, 4*H1) -> (F, 4*H1P), zero pad each gate
        out = jnp.zeros((w.shape[0], 4 * H1P), jnp.float32)
        for g in range(4):
            out = out.at[:, g * H1P:g * H1P + H1].set(w[:, g * H1:(g + 1) * H1])
        return out

    def pad_rows(w):                                 # (H1, X) -> (H1P, X)
        return jnp.concatenate([w, jnp.zeros((H1P - H1, w.shape[1]), jnp.float32)], axis=0)

    def lstm_pack(p):
        return p['w_ih'].T, p['w_hh'].T, (p['b_ih'] + p['b_hh'])

    wf_ih, wf_hh, bf = lstm_pack(raw['l1f'])
    wr_ih, wr_hh, br = lstm_pack(raw['l1r'])
    wih1 = jnp.concatenate([pad_gate_cols(wf_ih), pad_gate_cols(wr_ih)], axis=1)  # (hid, 8*H1P)
    b1 = jnp.concatenate([pad_gate_cols(bf[None, :]), pad_gate_cols(br[None, :])], axis=1)
    G = 4 * H1P
    whh_blk = jnp.zeros((2 * H1P, 2 * G), jnp.float32)
    whh_blk = whh_blk.at[:H1P, :G].set(pad_rows(pad_gate_cols(wf_hh)))
    whh_blk = whh_blk.at[H1P:, G:].set(pad_rows(pad_gate_cols(wr_hh)))

    # --- LSTM2: insert zero rows at the padded hidden positions of seq2 = [hf|hr] ---
    w2f_ih, _, b2f = lstm_pack(raw['l2f'])
    w2r_ih, _, b2r = lstm_pack(raw['l2r'])

    def pad_in_rows(w):                              # (2*H1, 4*H2) -> (2*H1P, 4*H2)
        out = jnp.zeros((2 * H1P, w.shape[1]), jnp.float32)
        out = out.at[0:H1, :].set(w[0:H1, :])
        out = out.at[H1P:H1P + H1, :].set(w[H1:2 * H1, :])
        return out

    wih2 = jnp.concatenate([pad_in_rows(w2f_ih), pad_in_rows(w2r_ih)], axis=1)    # (2*H1P, 8*H2)
    b2 = jnp.concatenate([b2f, b2r])[None, :]                                     # (1, 8*H2)
    assert wih2.shape[1] == 8 * H2

    # --- decoder folded into a single affine map ---
    D, c = _decoder_affine(raw, E, L)

    # bf16 for the big MXU operands (f32 accumulation in-kernel); keep the error-sensitive
    # recurrent / LSTM2 weights and all biases in f32.
    return [convp,
            pool.astype(jnp.bfloat16),
            wih1.astype(jnp.bfloat16), b1.astype(jnp.float32),
            whh_blk.astype(jnp.float32),
            wih2.astype(jnp.float32), b2.astype(jnp.float32),
            D.astype(jnp.bfloat16), c[None, :].astype(jnp.float32)]


# --------------------------- pure-JAX reference (no Pallas) -------------------------

def _lstm_dir_ref(x, p, reverse):
    B, T, _ = x.shape
    H = p['w_hh'].shape[1]
    h = jnp.zeros((B, H), jnp.float32)
    c = jnp.zeros((B, H), jnp.float32)
    order = range(T - 1, -1, -1) if reverse else range(T)
    for t in order:
        g = x[:, t, :] @ p['w_ih'].T + p['b_ih'] + h @ p['w_hh'].T + p['b_hh']
        i = jax.nn.sigmoid(g[:, 0:H]); f = jax.nn.sigmoid(g[:, H:2 * H])
        gg = jnp.tanh(g[:, 2 * H:3 * H]); o = jax.nn.sigmoid(g[:, 3 * H:4 * H])
        c = f * c + i * gg
        h = o * jnp.tanh(c)
    return h


def reference_forward(x, raw, input_dim, embedded_dim):
    B = x.shape[0]
    L = input_dim
    h = x.reshape(B, 1, L).astype(jnp.float32)
    h = _leaky_relu(_conv1d_ref(h, raw['ew1'], raw['eb1'], 4, True))
    h = _leaky_relu(_conv1d_ref(h, raw['ew2'], raw['eb2'], 2, True))
    C = h.shape[1]
    h = h.reshape(B, C, L // 2, 2).max(axis=-1)                 # MaxPool1d(2)
    hf = _lstm_dir_ref(h, raw['l1f'], False)
    hr = _lstm_dir_ref(h, raw['l1r'], True)
    s = jnp.concatenate([hf, hr], axis=-1)[:, None, :]
    hf2 = _lstm_dir_ref(s, raw['l2f'], False)
    hr2 = _lstm_dir_ref(s, raw['l2r'], True)
    z = jnp.concatenate([hf2, hr2], axis=-1)                    # (B, embedded_dim)
    E = embedded_dim
    idx = (jnp.arange(L) * E) // L
    y = z[:, None, :][:, :, idx]                                # nearest upsample
    y = _convT1d_ref(y, raw['d2w'], raw['d2b'], 2)
    y = _convT1d_ref(y, raw['d1w'], raw['d1b'], 4)
    y = _convT1d_ref(y, raw['drw'], raw['drb'], 0)
    return y.reshape(B, L, 1)


# -------------------------------------- main ----------------------------------------

if __name__ == "__main__":
    input_dim, embedded_dim, batch = 128, 16, 16

    key = jax.random.PRNGKey(0)
    pkey, xkey = jax.random.split(key)
    raw = make_raw_params(pkey, input_dim, embedded_dim)
    packed = pack_params(raw, input_dim, embedded_dim)

    # Autoencoder.forward expects a 3-D tensor: (B, input_dim, 1).
    x = jax.random.normal(xkey, (batch, input_dim, 1), jnp.float32)

    out = jax.block_until_ready(autoencoder_forward(x, packed))
    ref = jax.block_until_ready(reference_forward(x, raw, input_dim, embedded_dim))

    assert out.shape == (batch, input_dim, 1), out.shape
    assert bool(jnp.all(jnp.isfinite(out)))
    err = float(jnp.max(jnp.abs(out - ref)))
    assert err < 2e-2, f"mismatch vs pure-JAX reference: max abs err = {err}"
    print("KERNEL_OK")
</pallas_src>

<mosaic_0001>
module attributes {stable_mosaic.version = 11 : i64} {
  func.func @autoencoder_kernel(%arg0: i32, %arg1: memref<16x128xf32, #tpu.memory_space<vmem>>, %arg2: memref<208xf32, #tpu.memory_space<smem>>, %arg3: memref<128x128xbf16, #tpu.memory_space<vmem>>, %arg4: memref<64x256xbf16, #tpu.memory_space<vmem>>, %arg5: memref<1x256xf32, #tpu.memory_space<vmem>>, %arg6: memref<64x256xf32, #tpu.memory_space<vmem>>, %arg7: memref<64x64xf32, #tpu.memory_space<vmem>>, %arg8: memref<1x64xf32, #tpu.memory_space<vmem>>, %arg9: memref<16x128xbf16, #tpu.memory_space<vmem>>, %arg10: memref<1x128xf32, #tpu.memory_space<vmem>>, %arg11: memref<16x128xf32, #tpu.memory_space<vmem>>) attributes {dimension_semantics = [#tpu.dimension_semantics<parallel>], iteration_bounds = array<i64: 1>, scalar_prefetch = 0 : i64, scratch_operands = 0 : i64, tpu.core_type = #tpu.core_type<tc>, window_params = [{transform_indices = @transform_0, window_bounds = array<i64: 16, 128>}, {transform_indices = @transform_1, window_bounds = array<i64: 208>}, {pipeline_mode = #tpu.pipeline_mode<synchronous>, transform_indices = @transform_2, window_bounds = array<i64: 128, 128>}, {pipeline_mode = #tpu.pipeline_mode<synchronous>, transform_indices = @transform_3, window_bounds = array<i64: 64, 256>}, {pipeline_mode = #tpu.pipeline_mode<synchronous>, transform_indices = @transform_4, window_bounds = array<i64: 1, 256>}, {pipeline_mode = #tpu.pipeline_mode<synchronous>, transform_indices = @transform_5, window_bounds = array<i64: 64, 256>}, {pipeline_mode = #tpu.pipeline_mode<synchronous>, transform_indices = @transform_6, window_bounds = array<i64: 64, 64>}, {pipeline_mode = #tpu.pipeline_mode<synchronous>, transform_indices = @transform_7, window_bounds = array<i64: 1, 64>}, {pipeline_mode = #tpu.pipeline_mode<synchronous>, transform_indices = @transform_8, window_bounds = array<i64: 16, 128>}, {pipeline_mode = #tpu.pipeline_mode<synchronous>, transform_indices = @transform_9, window_bounds = array<i64: 1, 128>}, {transform_indices = @transform_10, window_bounds = array<i64: 16, 128>}]} {
    %c0 = arith.constant 0 : index
    %c0_0 = arith.constant 0 : index
    %0 = vector.load %arg1[%c0, %c0_0] : memref<16x128xf32, #tpu.memory_space<vmem>>, vector<16x128xf32>
    %1 = vector.extract_strided_slice %0 {offsets = [0, 0], sizes = [16, 1], strides = [1, 1]} : vector<16x128xf32> to vector<16x1xf32>
    %2 = vector.shape_cast %1 : vector<16x1xf32> to vector<16x1xf32>
    %3 = vector.broadcast %2 : vector<16x1xf32> to vector<16x128xf32>
    %4 = vector.extract_strided_slice %0 {offsets = [0, 127], sizes = [16, 1], strides = [1, 1]} : vector<16x128xf32> to vector<16x1xf32>
    %5 = vector.shape_cast %4 : vector<16x1xf32> to vector<16x1xf32>
    %6 = vector.broadcast %5 : vector<16x1xf32> to vector<16x128xf32>
    %7 = vector.extract_strided_slice %3 {offsets = [0, 0], sizes = [16, 4], strides = [1, 1]} : vector<16x128xf32> to vector<16x4xf32>
    %8 = vector.extract_strided_slice %0 {offsets = [0, 0], sizes = [16, 124], strides = [1, 1]} : vector<16x128xf32> to vector<16x124xf32>
    %9 = tpu.concatenate %7, %8 in 1 : vector<16x4xf32>, vector<16x124xf32> -> vector<16x128xf32>
    %c0_1 = arith.constant 0 : index
    %10 = memref.load %arg2[%c0_1] : memref<208xf32, #tpu.memory_space<smem>>
    %11 = vector.broadcast %10 : f32 to vector<16x128xf32>
    %12 = arith.mulf %11, %9 : vector<16x128xf32>
    %c9 = arith.constant 9 : index
    %13 = memref.load %arg2[%c9] : memref<208xf32, #tpu.memory_space<smem>>
    %14 = vector.broadcast %13 : f32 to vector<16x128xf32>
    %15 = arith.mulf %14, %9 : vector<16x128xf32>
    %c18 = arith.constant 18 : index
    %16 = memref.load %arg2[%c18] : memref<208xf32, #tpu.memory_space<smem>>
    %17 = vector.broadcast %16 : f32 to vector<16x128xf32>
    %18 = arith.mulf %17, %9 : vector<16x128xf32>
    %c27 = arith.constant 27 : index
    %19 = memref.load %arg2[%c27] : memref<208xf32, #tpu.memory_space<smem>>
    %20 = vector.broadcast %19 : f32 to vector<16x128xf32>
    %21 = arith.mulf %20, %9 : vector<16x128xf32>
    %22 = vector.extract_strided_slice %3 {offsets = [0, 0], sizes = [16, 3], strides = [1, 1]} : vector<16x128xf32> to vector<16x3xf32>
    %23 = vector.extract_strided_slice %0 {offsets = [0, 0], sizes = [16, 125], strides = [1, 1]} : vector<16x128xf32> to vector<16x125xf32>
    %24 = tpu.concatenate %22, %23 in 1 : vector<16x3xf32>, vector<16x125xf32> -> vector<16x128xf32>
    %c1 = arith.constant 1 : index
    %25 = memref.load %arg2[%c1] : memref<208xf32, #tpu.memory_space<smem>>
    %26 = vector.broadcast %25 : f32 to vector<16x128xf32>
    %27 = arith.mulf %26, %24 : vector<16x128xf32>
    %28 = arith.addf %12, %27 : vector<16x128xf32>
    %c10 = arith.constant 10 : index
    %29 = memref.load %arg2[%c10] : memref<208xf32, #tpu.memory_space<smem>>
    %30 = vector.broadcast %29 : f32 to vector<16x128xf32>
    %31 = arith.mulf %30, %24 : vector<16x128xf32>
    %32 = arith.addf %15, %31 : vector<16x128xf32>
    %c19 = arith.constant 19 : index
    %33 = memref.load %arg2[%c19] : memref<208xf32, #tpu.memory_space<smem>>
    %34 = vector.broadcast %33 : f32 to vector<16x128xf32>
    %35 = arith.mulf %34, %24 : vector<16x128xf32>
    %36 = arith.addf %18, %35 : vector<16x128xf32>
    %c28 = arith.constant 28 : index
    %37 = memref.load %arg2[%c28] : memref<208xf32, #tpu.memory_space<smem>>
    %38 = vector.broadcast %37 : f32 to vector<16x128xf32>
    %39 = arith.mulf %38, %24 : vector<16x128xf32>
    %40 = arith.addf %21, %39 : vector<16x128xf32>
    %41 = vector.extract_strided_slice %3 {offsets = [0, 0], sizes = [16, 2], strides = [1, 1]} : vector<16x128xf32> to vector<16x2xf32>
    %42 = vector.extract_strided_slice %0 {offsets = [0, 0], sizes = [16, 126], strides = [1, 1]} : vector<16x128xf32> to vector<16x126xf32>
    %43 = tpu.concatenate %41, %42 in 1 : vector<16x2xf32>, vector<16x126xf32> -> vector<16x128xf32>
    %c2 = arith.constant 2 : index
    %44 = memref.load %arg2[%c2] : memref<208xf32, #tpu.memory_space<smem>>
    %45 = vector.broadcast %44 : f32 to vector<16x128xf32>
    %46 = arith.mulf %45, %43 : vector<16x128xf32>
    %47 = arith.addf %28, %46 : vector<16x128xf32>
    %c11 = arith.constant 11 : index
    %48 = memref.load %arg2[%c11] : memref<208xf32, #tpu.memory_space<smem>>
    %49 = vector.broadcast %48 : f32 to vector<16x128xf32>
    %50 = arith.mulf %49, %43 : vector<16x128xf32>
    %51 = arith.addf %32, %50 : vector<16x128xf32>
    %c20 = arith.constant 20 : index
    %52 = memref.load %arg2[%c20] : memref<208xf32, #tpu.memory_space<smem>>
    %53 = vector.broadcast %52 : f32 to vector<16x128xf32>
    %54 = arith.mulf %53, %43 : vector<16x128xf32>
    %55 = arith.addf %36, %54 : vector<16x128xf32>
    %c29 = arith.constant 29 : index
    %56 = memref.load %arg2[%c29] : memref<208xf32, #tpu.memory_space<smem>>
    %57 = vector.broadcast %56 : f32 to vector<16x128xf32>
    %58 = arith.mulf %57, %43 : vector<16x128xf32>
    %59 = arith.addf %40, %58 : vector<16x128xf32>
    %60 = vector.extract_strided_slice %3 {offsets = [0, 0], sizes = [16, 1], strides = [1, 1]} : vector<16x128xf32> to vector<16x1xf32>
    %61 = vector.extract_strided_slice %0 {offsets = [0, 0], sizes = [16, 127], strides = [1, 1]} : vector<16x128xf32> to vector<16x127xf32>
    %62 = tpu.concatenate %60, %61 in 1 : vector<16x1xf32>, vector<16x127xf32> -> vector<16x128xf32>
    %c3 = arith.constant 3 : index
    %63 = memref.load %arg2[%c3] : memref<208xf32, #tpu.memory_space<smem>>
    %64 = vector.broadcast %63 : f32 to vector<16x128xf32>
    %65 = arith.mulf %64, %62 : vector<16x128xf32>
    %66 = arith.addf %47, %65 : vector<16x128xf32>
    %c12 = arith.constant 12 : index
    %67 = memref.load %arg2[%c12] : memref<208xf32, #tpu.memory_space<smem>>
    %68 = vector.broadcast %67 : f32 to vector<16x128xf32>
    %69 = arith.mulf %68, %62 : vector<16x128xf32>
    %70 = arith.addf %51, %69 : vector<16x128xf32>
    %c21 = arith.constant 21 : index
    %71 = memref.load %arg2[%c21] : memref<208xf32, #tpu.memory_space<smem>>
    %72 = vector.broadcast %71 : f32 to vector<16x128xf32>
    %73 = arith.mulf %72, %62 : vector<16x128xf32>
    %74 = arith.addf %55, %73 : vector<16x128xf32>
    %c30 = arith.constant 30 : index
    %75 = memref.load %arg2[%c30] : memref<208xf32, #tpu.memory_space<smem>>
    %76 = vector.broadcast %75 : f32 to vector<16x128xf32>
    %77 = arith.mulf %76, %62 : vector<16x128xf32>
    %78 = arith.addf %59, %77 : vector<16x128xf32>
    %c4 = arith.constant 4 : index
    %79 = memref.load %arg2[%c4] : memref<208xf32, #tpu.memory_space<smem>>
    %80 = vector.broadcast %79 : f32 to vector<16x128xf32>
    %81 = arith.mulf %80, %0 : vector<16x128xf32>
    %82 = arith.addf %66, %81 : vector<16x128xf32>
    %c13 = arith.constant 13 : index
    %83 = memref.load %arg2[%c13] : memref<208xf32, #tpu.memory_space<smem>>
    %84 = vector.broadcast %83 : f32 to vector<16x128xf32>
    %85 = arith.mulf %84, %0 : vector<16x128xf32>
    %86 = arith.addf %70, %85 : vector<16x128xf32>
    %c22 = arith.constant 22 : index
    %87 = memref.load %arg2[%c22] : memref<208xf32, #tpu.memory_space<smem>>
    %88 = vector.broadcast %87 : f32 to vector<16x128xf32>
    %89 = arith.mulf %88, %0 : vector<16x128xf32>
    %90 = arith.addf %74, %89 : vector<16x128xf32>
    %c31 = arith.constant 31 : index
    %91 = memref.load %arg2[%c31] : memref<208xf32, #tpu.memory_space<smem>>
    %92 = vector.broadcast %91 : f32 to vector<16x128xf32>
    %93 = arith.mulf %92, %0 : vector<16x128xf32>
    %94 = arith.addf %78, %93 : vector<16x128xf32>
    %95 = vector.extract_strided_slice %0 {offsets = [0, 1], sizes = [16, 127], strides = [1, 1]} : vector<16x128xf32> to vector<16x127xf32>
    %96 = vector.extract_strided_slice %6 {offsets = [0, 0], sizes = [16, 1], strides = [1, 1]} : vector<16x128xf32> to vector<16x1xf32>
    %97 = tpu.concatenate %95, %96 in 1 : vector<16x127xf32>, vector<16x1xf32> -> vector<16x128xf32>
    %c5 = arith.constant 5 : index
    %98 = memref.load %arg2[%c5] : memref<208xf32, #tpu.memory_space<smem>>
    %99 = vector.broadcast %98 : f32 to vector<16x128xf32>
    %100 = arith.mulf %99, %97 : vector<16x128xf32>
    %101 = arith.addf %82, %100 : vector<16x128xf32>
    %c14 = arith.constant 14 : index
    %102 = memref.load %arg2[%c14] : memref<208xf32, #tpu.memory_space<smem>>
    %103 = vector.broadcast %102 : f32 to vector<16x128xf32>
    %104 = arith.mulf %103, %97 : vector<16x128xf32>
    %105 = arith.addf %86, %104 : vector<16x128xf32>
    %c23 = arith.constant 23 : index
    %106 = memref.load %arg2[%c23] : memref<208xf32, #tpu.memory_space<smem>>
    %107 = vector.broadcast %106 : f32 to vector<16x128xf32>
    %108 = arith.mulf %107, %97 : vector<16x128xf32>
    %109 = arith.addf %90, %108 : vector<16x128xf32>
    %c32 = arith.constant 32 : index
    %110 = memref.load %arg2[%c32] : memref<208xf32, #tpu.memory_space<smem>>
    %111 = vector.broadcast %110 : f32 to vector<16x128xf32>
    %112 = arith.mulf %111, %97 : vector<16x128xf32>
    %113 = arith.addf %94, %112 : vector<16x128xf32>
    %114 = vector.extract_strided_slice %0 {offsets = [0, 2], sizes = [16, 126], strides = [1, 1]} : vector<16x128xf32> to vector<16x126xf32>
    %115 = vector.extract_strided_slice %6 {offsets = [0, 0], sizes = [16, 2], strides = [1, 1]} : vector<16x128xf32> to vector<16x2xf32>
    %116 = tpu.concatenate %114, %115 in 1 : vector<16x126xf32>, vector<16x2xf32> -> vector<16x128xf32>
    %c6 = arith.constant 6 : index
    %117 = memref.load %arg2[%c6] : memref<208xf32, #tpu.memory_space<smem>>
    %118 = vector.broadcast %117 : f32 to vector<16x128xf32>
    %119 = arith.mulf %118, %116 : vector<16x128xf32>
    %120 = arith.addf %101, %119 : vector<16x128xf32>
    %c15 = arith.constant 15 : index
    %121 = memref.load %arg2[%c15] : memref<208xf32, #tpu.memory_space<smem>>
    %122 = vector.broadcast %121 : f32 to vector<16x128xf32>
    %123 = arith.mulf %122, %116 : vector<16x128xf32>
    %124 = arith.addf %105, %123 : vector<16x128xf32>
    %c24 = arith.constant 24 : index
    %125 = memref.load %arg2[%c24] : memref<208xf32, #tpu.memory_space<smem>>
    %126 = vector.broadcast %125 : f32 to vector<16x128xf32>
    %127 = arith.mulf %126, %116 : vector<16x128xf32>
    %128 = arith.addf %109, %127 : vector<16x128xf32>
    %c33 = arith.constant 33 : index
    %129 = memref.load %arg2[%c33] : memref<208xf32, #tpu.memory_space<smem>>
    %130 = vector.broadcast %129 : f32 to vector<16x128xf32>
    %131 = arith.mulf %130, %116 : vector<16x128xf32>
    %132 = arith.addf %113, %131 : vector<16x128xf32>
    %133 = vector.extract_strided_slice %0 {offsets = [0, 3], sizes = [16, 125], strides = [1, 1]} : vector<16x128xf32> to vector<16x125xf32>
    %134 = vector.extract_strided_slice %6 {offsets = [0, 0], sizes = [16, 3], strides = [1, 1]} : vector<16x128xf32> to vector<16x3xf32>
    %135 = tpu.concatenate %133, %134 in 1 : vector<16x125xf32>, vector<16x3xf32> -> vector<16x128xf32>
    %c7 = arith.constant 7 : index
    %136 = memref.load %arg2[%c7] : memref<208xf32, #tpu.memory_space<smem>>
    %137 = vector.broadcast %136 : f32 to vector<16x128xf32>
    %138 = arith.mulf %137, %135 : vector<16x128xf32>
    %139 = arith.addf %120, %138 : vector<16x128xf32>
    %c16 = arith.constant 16 : index
    %140 = memref.load %arg2[%c16] : memref<208xf32, #tpu.memory_space<smem>>
    %141 = vector.broadcast %140 : f32 to vector<16x128xf32>
    %142 = arith.mulf %141, %135 : vector<16x128xf32>
    %143 = arith.addf %124, %142 : vector<16x128xf32>
    %c25 = arith.constant 25 : index
    %144 = memref.load %arg2[%c25] : memref<208xf32, #tpu.memory_space<smem>>
    %145 = vector.broadcast %144 : f32 to vector<16x128xf32>
    %146 = arith.mulf %145, %135 : vector<16x128xf32>
    %147 = arith.addf %128, %146 : vector<16x128xf32>
    %c34 = arith.constant 34 : index
    %148 = memref.load %arg2[%c34] : memref<208xf32, #tpu.memory_space<smem>>
    %149 = vector.broadcast %148 : f32 to vector<16x128xf32>
    %150 = arith.mulf %149, %135 : vector<16x128xf32>
    %151 = arith.addf %132, %150 : vector<16x128xf32>
    %152 = vector.extract_strided_slice %0 {offsets = [0, 4], sizes = [16, 124], strides = [1, 1]} : vector<16x128xf32> to vector<16x124xf32>
    %153 = vector.extract_strided_slice %6 {offsets = [0, 0], sizes = [16, 4], strides = [1, 1]} : vector<16x128xf32> to vector<16x4xf32>
    %154 = tpu.concatenate %152, %153 in 1 : vector<16x124xf32>, vector<16x4xf32> -> vector<16x128xf32>
    %c8 = arith.constant 8 : index
    %155 = memref.load %arg2[%c8] : memref<208xf32, #tpu.memory_space<smem>>
    %156 = vector.broadcast %155 : f32 to vector<16x128xf32>
    %157 = arith.mulf %156, %154 : vector<16x128xf32>
    %158 = arith.addf %139, %157 : vector<16x128xf32>
    %c17 = arith.constant 17 : index
    %159 = memref.load %arg2[%c17] : memref<208xf32, #tpu.memory_space<smem>>
    %160 = vector.broadcast %159 : f32 to vector<16x128xf32>
    %161 = arith.mulf %160, %154 : vector<16x128xf32>
    %162 = arith.addf %143, %161 : vector<16x128xf32>
    %c26 = arith.constant 26 : index
    %163 = memref.load %arg2[%c26] : memref<208xf32, #tpu.memory_space<smem>>
    %164 = vector.broadcast %163 : f32 to vector<16x128xf32>
    %165 = arith.mulf %164, %154 : vector<16x128xf32>
    %166 = arith.addf %147, %165 : vector<16x128xf32>
    %c35 = arith.constant 35 : index
    %167 = memref.load %arg2[%c35] : memref<208xf32, #tpu.memory_space<smem>>
    %168 = vector.broadcast %167 : f32 to vector<16x128xf32>
    %169 = arith.mulf %168, %154 : vector<16x128xf32>
    %170 = arith.addf %151, %169 : vector<16x128xf32>
    %c36 = arith.constant 36 : index
    %171 = memref.load %arg2[%c36] : memref<208xf32, #tpu.memory_space<smem>>
    %172 = vector.broadcast %171 : f32 to vector<16x128xf32>
    %173 = arith.addf %158, %172 : vector<16x128xf32>
    %c37 = arith.constant 37 : index
    %174 = memref.load %arg2[%c37] : memref<208xf32, #tpu.memory_space<smem>>
    %175 = vector.broadcast %174 : f32 to vector<16x128xf32>
    %176 = arith.addf %162, %175 : vector<16x128xf32>
    %c38 = arith.constant 38 : index
    %177 = memref.load %arg2[%c38] : memref<208xf32, #tpu.memory_space<smem>>
    %178 = vector.broadcast %177 : f32 to vector<16x128xf32>
    %179 = arith.addf %166, %178 : vector<16x128xf32>
    %c39 = arith.constant 39 : index
    %180 = memref.load %arg2[%c39] : memref<208xf32, #tpu.memory_space<smem>>
    %181 = vector.broadcast %180 : f32 to vector<16x128xf32>
    %182 = arith.addf %170, %181 : vector<16x128xf32>
    %cst = arith.constant 0.000000e+00 : f32
    %183 = vector.broadcast %cst : f32 to vector<16x128xf32>
    %184 = arith.cmpf ogt, %173, %183 : vector<16x128xf32>
    %cst_2 = arith.constant 0.00999999977 : f32
    %185 = vector.broadcast %cst_2 : f32 to vector<16x128xf32>
    %186 = arith.mulf %185, %173 : vector<16x128xf32>
    %187 = arith.select %184, %173, %186 : vector<16x128xi1>, vector<16x128xf32>
    %cst_3 = arith.constant 0.000000e+00 : f32
    %188 = vector.broadcast %cst_3 : f32 to vector<16x128xf32>
    %189 = arith.cmpf ogt, %176, %188 : vector<16x128xf32>
    %cst_4 = arith.constant 0.00999999977 : f32
    %190 = vector.broadcast %cst_4 : f32 to vector<16x128xf32>
    %191 = arith.mulf %190, %176 : vector<16x128xf32>
    %192 = arith.select %189, %176, %191 : vector<16x128xi1>, vector<16x128xf32>
    %cst_5 = arith.constant 0.000000e+00 : f32
    %193 = vector.broadcast %cst_5 : f32 to vector<16x128xf32>
    %194 = arith.cmpf ogt, %179, %193 : vector<16x128xf32>
    %cst_6 = arith.constant 0.00999999977 : f32
    %195 = vector.broadcast %cst_6 : f32 to vector<16x128xf32>
    %196 = arith.mulf %195, %179 : vector<16x128xf32>
    %197 = arith.select %194, %179, %196 : vector<16x128xi1>, vector<16x128xf32>
    %cst_7 = arith.constant 0.000000e+00 : f32
    %198 = vector.broadcast %cst_7 : f32 to vector<16x128xf32>
    %199 = arith.cmpf ogt, %182, %198 : vector<16x128xf32>
    %cst_8 = arith.constant 0.00999999977 : f32
    %200 = vector.broadcast %cst_8 : f32 to vector<16x128xf32>
    %201 = arith.mulf %200, %182 : vector<16x128xf32>
    %202 = arith.select %199, %182, %201 : vector<16x128xi1>, vector<16x128xf32>
    %203 = vector.extract_strided_slice %187 {offsets = [0, 0], sizes = [16, 1], strides = [1, 1]} : vector<16x128xf32> to vector<16x1xf32>
    %204 = vector.shape_cast %203 : vector<16x1xf32> to vector<16x1xf32>
    %205 = vector.broadcast %204 : vector<16x1xf32> to vector<16x128xf32>
    %206 = vector.extract_strided_slice %187 {offsets = [0, 127], sizes = [16, 1], strides = [1, 1]} : vector<16x128xf32> to vector<16x1xf32>
    %207 = vector.shape_cast %206 : vector<16x1xf32> to vector<16x1xf32>
    %208 = vector.broadcast %207 : vector<16x1xf32> to vector<16x128xf32>
    %209 = vector.extract_strided_slice %205 {offsets = [0, 0], sizes = [16, 2], strides = [1, 1]} : vector<16x128xf32> to vector<16x2xf32>
    %210 = vector.extract_strided_slice %187 {offsets = [0, 0], sizes = [16, 126], strides = [1, 1]} : vector<16x128xf32> to vector<16x126xf32>
    %211 = tpu.concatenate %209, %210 in 1 : vector<16x2xf32>, vector<16x126xf32> -> vector<16x128xf32>
    %c40 = arith.constant 40 : index
    %212 = memref.load %arg2[%c40] : memref<208xf32, #tpu.memory_space<smem>>
    %213 = vector.broadcast %212 : f32 to vector<16x128xf32>
    %214 = arith.mulf %213, %211 : vector<16x128xf32>
    %c60 = arith.constant 60 : index
    %215 = memref.load %arg2[%c60] : memref<208xf32, #tpu.memory_space<smem>>
    %216 = vector.broadcast %215 : f32 to vector<16x128xf32>
    %217 = arith.mulf %216, %211 : vector<16x128xf32>
    %c80 = arith.constant 80 : index
    %218 = memref.load %arg2[%c80] : memref<208xf32, #tpu.memory_space<smem>>
    %219 = vector.broadcast %218 : f32 to vector<16x128xf32>
    %220 = arith.mulf %219, %211 : vector<16x128xf32>
    %c100 = arith.constant 100 : index
    %221 = memref.load %arg2[%c100] : memref<208xf32, #tpu.memory_space<smem>>
    %222 = vector.broadcast %221 : f32 to vector<16x128xf32>
    %223 = arith.mulf %222, %211 : vector<16x128xf32>
    %c120 = arith.constant 120 : index
    %224 = memref.load %arg2[%c120] : memref<208xf32, #tpu.memory_space<smem>>
    %225 = vector.broadcast %224 : f32 to vector<16x128xf32>
    %226 = arith.mulf %225, %211 : vector<16x128xf32>
    %c140 = arith.constant 140 : index
    %227 = memref.load %arg2[%c140] : memref<208xf32, #tpu.memory_space<smem>>
    %228 = vector.broadcast %227 : f32 to vector<16x128xf32>
    %229 = arith.mulf %228, %211 : vector<16x128xf32>
    %c160 = arith.constant 160 : index
    %230 = memref.load %arg2[%c160] : memref<208xf32, #tpu.memory_space<smem>>
    %231 = vector.broadcast %230 : f32 to vector<16x128xf32>
    %232 = arith.mulf %231, %211 : vector<16x128xf32>
    %c180 = arith.constant 180 : index
    %233 = memref.load %arg2[%c180] : memref<208xf32, #tpu.memory_space<smem>>
    %234 = vector.broadcast %233 : f32 to vector<16x128xf32>
    %235 = arith.mulf %234, %211 : vector<16x128xf32>
    %236 = vector.extract_strided_slice %205 {offsets = [0, 0], sizes = [16, 1], strides = [1, 1]} : vector<16x128xf32> to vector<16x1xf32>
    %237 = vector.extract_strided_slice %187 {offsets = [0, 0], sizes = [16, 127], strides = [1, 1]} : vector<16x128xf32> to vector<16x127xf32>
    %238 = tpu.concatenate %236, %237 in 1 : vector<16x1xf32>, vector<16x127xf32> -> vector<16x128xf32>
    %c41 = arith.constant 41 : index
    %239 = memref.load %arg2[%c41] : memref<208xf32, #tpu.memory_space<smem>>
    %240 = vector.broadcast %239 : f32 to vector<16x128xf32>
    %241 = arith.mulf %240, %238 : vector<16x128xf32>
    %242 = arith.addf %214, %241 : vector<16x128xf32>
    %c61 = arith.constant 61 : index
    %243 = memref.load %arg2[%c61] : memref<208xf32, #tpu.memory_space<smem>>
    %244 = vector.broadcast %243 : f32 to vector<16x128xf32>
    %245 = arith.mulf %244, %238 : vector<16x128xf32>
    %246 = arith.addf %217, %245 : vector<16x128xf32>
    %c81 = arith.constant 81 : index
    %247 = memref.load %arg2[%c81] : memref<208xf32, #tpu.memory_space<smem>>
    %248 = vector.broadcast %247 : f32 to vector<16x128xf32>
    %249 = arith.mulf %248, %238 : vector<16x128xf32>
    %250 = arith.addf %220, %249 : vector<16x128xf32>
    %c101 = arith.constant 101 : index
    %251 = memref.load %arg2[%c101] : memref<208xf32, #tpu.memory_space<smem>>
    %252 = vector.broadcast %251 : f32 to vector<16x128xf32>
    %253 = arith.mulf %252, %238 : vector<16x128xf32>
    %254 = arith.addf %223, %253 : vector<16x128xf32>
    %c121 = arith.constant 121 : index
    %255 = memref.load %arg2[%c121] : memref<208xf32, #tpu.memory_space<smem>>
    %256 = vector.broadcast %255 : f32 to vector<16x128xf32>
    %257 = arith.mulf %256, %238 : vector<16x128xf32>
    %258 = arith.addf %226, %257 : vector<16x128xf32>
    %c141 = arith.constant 141 : index
    %259 = memref.load %arg2[%c141] : memref<208xf32, #tpu.memory_space<smem>>
    %260 = vector.broadcast %259 : f32 to vector<16x128xf32>
    %261 = arith.mulf %260, %238 : vector<16x128xf32>
    %262 = arith.addf %229, %261 : vector<16x128xf32>
    %c161 = arith.constant 161 : index
    %263 = memref.load %arg2[%c161] : memref<208xf32, #tpu.memory_space<smem>>
    %264 = vector.broadcast %263 : f32 to vector<16x128xf32>
    %265 = arith.mulf %264, %238 : vector<16x128xf32>
    %266 = arith.addf %232, %265 : vector<16x128xf32>
    %c181 = arith.constant 181 : index
    %267 = memref.load %arg2[%c181] : memref<208xf32, #tpu.memory_space<smem>>
    %268 = vector.broadcast %267 : f32 to vector<16x128xf32>
    %269 = arith.mulf %268, %238 : vector<16x128xf32>
    %270 = arith.addf %235, %269 : vector<16x128xf32>
    %c42 = arith.constant 42 : index
    %271 = memref.load %arg2[%c42] : memref<208xf32, #tpu.memory_space<smem>>
    %272 = vector.broadcast %271 : f32 to vector<16x128xf32>
    %273 = arith.mulf %272, %187 : vector<16x128xf32>
    %274 = arith.addf %242, %273 : vector<16x128xf32>
    %c62 = arith.constant 62 : index
    %275 = memref.load %arg2[%c62] : memref<208xf32, #tpu.memory_space<smem>>
    %276 = vector.broadcast %275 : f32 to vector<16x128xf32>
    %277 = arith.mulf %276, %187 : vector<16x128xf32>
    %278 = arith.addf %246, %277 : vector<16x128xf32>
    %c82 = arith.constant 82 : index
    %279 = memref.load %arg2[%c82] : memref<208xf32, #tpu.memory_space<smem>>
    %280 = vector.broadcast %279 : f32 to vector<16x128xf32>
    %281 = arith.mulf %280, %187 : vector<16x128xf32>
    %282 = arith.addf %250, %281 : vector<16x128xf32>
    %c102 = arith.constant 102 : index
    %283 = memref.load %arg2[%c102] : memref<208xf32, #tpu.memory_space<smem>>
    %284 = vector.broadcast %283 : f32 to vector<16x128xf32>
    %285 = arith.mulf %284, %187 : vector<16x128xf32>
    %286 = arith.addf %254, %285 : vector<16x128xf32>
    %c122 = arith.constant 122 : index
    %287 = memref.load %arg2[%c122] : memref<208xf32, #tpu.memory_space<smem>>
    %288 = vector.broadcast %287 : f32 to vector<16x128xf32>
    %289 = arith.mulf %288, %187 : vector<16x128xf32>
    %290 = arith.addf %258, %289 : vector<16x128xf32>
    %c142 = arith.constant 142 : index
    %291 = memref.load %arg2[%c142] : memref<208xf32, #tpu.memory_space<smem>>
    %292 = vector.broadcast %291 : f32 to vector<16x128xf32>
    %293 = arith.mulf %292, %187 : vector<16x128xf32>
    %294 = arith.addf %262, %293 : vector<16x128xf32>
    %c162 = arith.constant 162 : index
    %295 = memref.load %arg2[%c162] : memref<208xf32, #tpu.memory_space<smem>>
    %296 = vector.broadcast %295 : f32 to vector<16x128xf32>
    %297 = arith.mulf %296, %187 : vector<16x128xf32>
    %298 = arith.addf %266, %297 : vector<16x128xf32>
    %c182 = arith.constant 182 : index
    %299 = memref.load %arg2[%c182] : memref<208xf32, #tpu.memory_space<smem>>
    %300 = vector.broadcast %299 : f32 to vector<16x128xf32>
    %301 = arith.mulf %300, %187 : vector<16x128xf32>
    %302 = arith.addf %270, %301 : vector<16x128xf32>
    %303 = vector.extract_strided_slice %187 {offsets = [0, 1], sizes = [16, 127], strides = [1, 1]} : vector<16x128xf32> to vector<16x127xf32>
    %304 = vector.extract_strided_slice %208 {offsets = [0, 0], sizes = [16, 1], strides = [1, 1]} : vector<16x128xf32> to vector<16x1xf32>
    %305 = tpu.concatenate %303, %304 in 1 : vector<16x127xf32>, vector<16x1xf32> -> vector<16x128xf32>
    %c43 = arith.constant 43 : index
    %306 = memref.load %arg2[%c43] : memref<208xf32, #tpu.memory_space<smem>>
    %307 = vector.broadcast %306 : f32 to vector<16x128xf32>
    %308 = arith.mulf %307, %305 : vector<16x128xf32>
    %309 = arith.addf %274, %308 : vector<16x128xf32>
    %c63 = arith.constant 63 : index
    %310 = memref.load %arg2[%c63] : memref<208xf32, #tpu.memory_space<smem>>
    %311 = vector.broadcast %310 : f32 to vector<16x128xf32>
    %312 = arith.mulf %311, %305 : vector<16x128xf32>
    %313 = arith.addf %278, %312 : vector<16x128xf32>
    %c83 = arith.constant 83 : index
    %314 = memref.load %arg2[%c83] : memref<208xf32, #tpu.memory_space<smem>>
    %315 = vector.broadcast %314 : f32 to vector<16x128xf32>
    %316 = arith.mulf %315, %305 : vector<16x128xf32>
    %317 = arith.addf %282, %316 : vector<16x128xf32>
    %c103 = arith.constant 103 : index
    %318 = memref.load %arg2[%c103] : memref<208xf32, #tpu.memory_space<smem>>
    %319 = vector.broadcast %318 : f32 to vector<16x128xf32>
    %320 = arith.mulf %319, %305 : vector<16x128xf32>
    %321 = arith.addf %286, %320 : vector<16x128xf32>
    %c123 = arith.constant 123 : index
    %322 = memref.load %arg2[%c123] : memref<208xf32, #tpu.memory_space<smem>>
    %323 = vector.broadcast %322 : f32 to vector<16x128xf32>
    %324 = arith.mulf %323, %305 : vector<16x128xf32>
    %325 = arith.addf %290, %324 : vector<16x128xf32>
    %c143 = arith.constant 143 : index
    %326 = memref.load %arg2[%c143] : memref<208xf32, #tpu.memory_space<smem>>
    %327 = vector.broadcast %326 : f32 to vector<16x128xf32>
    %328 = arith.mulf %327, %305 : vector<16x128xf32>
    %329 = arith.addf %294, %328 : vector<16x128xf32>
    %c163 = arith.constant 163 : index
    %330 = memref.load %arg2[%c163] : memref<208xf32, #tpu.memory_space<smem>>
    %331 = vector.broadcast %330 : f32 to vector<16x128xf32>
    %332 = arith.mulf %331, %305 : vector<16x128xf32>
    %333 = arith.addf %298, %332 : vector<16x128xf32>
    %c183 = arith.constant 183 : index
    %334 = memref.load %arg2[%c183] : memref<208xf32, #tpu.memory_space<smem>>
    %335 = vector.broadcast %334 : f32 to vector<16x128xf32>
    %336 = arith.mulf %335, %305 : vector<16x128xf32>
    %337 = arith.addf %302, %336 : vector<16x128xf32>
    %338 = vector.extract_strided_slice %187 {offsets = [0, 2], sizes = [16, 126], strides = [1, 1]} : vector<16x128xf32> to vector<16x126xf32>
    %339 = vector.extract_strided_slice %208 {offsets = [0, 0], sizes = [16, 2], strides = [1, 1]} : vector<16x128xf32> to vector<16x2xf32>
    %340 = tpu.concatenate %338, %339 in 1 : vector<16x126xf32>, vector<16x2xf32> -> vector<16x128xf32>
    %c44 = arith.constant 44 : index
    %341 = memref.load %arg2[%c44] : memref<208xf32, #tpu.memory_space<smem>>
    %342 = vector.broadcast %341 : f32 to vector<16x128xf32>
    %343 = arith.mulf %342, %340 : vector<16x128xf32>
    %344 = arith.addf %309, %343 : vector<16x128xf32>
    %c64 = arith.constant 64 : index
    %345 = memref.load %arg2[%c64] : memref<208xf32, #tpu.memory_space<smem>>
    %346 = vector.broadcast %345 : f32 to vector<16x128xf32>
    %347 = arith.mulf %346, %340 : vector<16x128xf32>
    %348 = arith.addf %313, %347 : vector<16x128xf32>
    %c84 = arith.constant 84 : index
    %349 = memref.load %arg2[%c84] : memref<208xf32, #tpu.memory_space<smem>>
    %350 = vector.broadcast %349 : f32 to vector<16x128xf32>
    %351 = arith.mulf %350, %340 : vector<16x128xf32>
    %352 = arith.addf %317, %351 : vector<16x128xf32>
    %c104 = arith.constant 104 : index
    %353 = memref.load %arg2[%c104] : memref<208xf32, #tpu.memory_space<smem>>
    %354 = vector.broadcast %353 : f32 to vector<16x128xf32>
    %355 = arith.mulf %354, %340 : vector<16x128xf32>
    %356 = arith.addf %321, %355 : vector<16x128xf32>
    %c124 = arith.constant 124 : index
    %357 = memref.load %arg2[%c124] : memref<208xf32, #tpu.memory_space<smem>>
    %358 = vector.broadcast %357 : f32 to vector<16x128xf32>
    %359 = arith.mulf %358, %340 : vector<16x128xf32>
    %360 = arith.addf %325, %359 : vector<16x128xf32>
    %c144 = arith.constant 144 : index
    %361 = memref.load %arg2[%c144] : memref<208xf32, #tpu.memory_space<smem>>
    %362 = vector.broadcast %361 : f32 to vector<16x128xf32>
    %363 = arith.mulf %362, %340 : vector<16x128xf32>
    %364 = arith.addf %329, %363 : vector<16x128xf32>
    %c164 = arith.constant 164 : index
    %365 = memref.load %arg2[%c164] : memref<208xf32, #tpu.memory_space<smem>>
    %366 = vector.broadcast %365 : f32 to vector<16x128xf32>
    %367 = arith.mulf %366, %340 : vector<16x128xf32>
    %368 = arith.addf %333, %367 : vector<16x128xf32>
    %c184 = arith.constant 184 : index
    %369 = memref.load %arg2[%c184] : memref<208xf32, #tpu.memory_space<smem>>
    %370 = vector.broadcast %369 : f32 to vector<16x128xf32>
    %371 = arith.mulf %370, %340 : vector<16x128xf32>
    %372 = arith.addf %337, %371 : vector<16x128xf32>
    %373 = vector.extract_strided_slice %192 {offsets = [0, 0], sizes = [16, 1], strides = [1, 1]} : vector<16x128xf32> to vector<16x1xf32>
    %374 = vector.shape_cast %373 : vector<16x1xf32> to vector<16x1xf32>
    %375 = vector.broadcast %374 : vector<16x1xf32> to vector<16x128xf32>
    %376 = vector.extract_strided_slice %192 {offsets = [0, 127], sizes = [16, 1], strides = [1, 1]} : vector<16x128xf32> to vector<16x1xf32>
    %377 = vector.shape_cast %376 : vector<16x1xf32> to vector<16x1xf32>
    %378 = vector.broadcast %377 : vector<16x1xf32> to vector<16x128xf32>
    %379 = vector.extract_strided_slice %375 {offsets = [0, 0], sizes = [16, 2], strides = [1, 1]} : vector<16x128xf32> to vector<16x2xf32>
    %380 = vector.extract_strided_slice %192 {offsets = [0, 0], sizes = [16, 126], strides = [1, 1]} : vector<16x128xf32> to vector<16x126xf32>
    %381 = tpu.concatenate %379, %380 in 1 : vector<16x2xf32>, vector<16x126xf32> -> vector<16x128xf32>
    %c45 = arith.constant 45 : index
    %382 = memref.load %arg2[%c45] : memref<208xf32, #tpu.memory_space<smem>>
    %383 = vector.broadcast %382 : f32 to vector<16x128xf32>
    %384 = arith.mulf %383, %381 : vector<16x128xf32>
    %385 = arith.addf %344, %384 : vector<16x128xf32>
    %c65 = arith.constant 65 : index
    %386 = memref.load %arg2[%c65] : memref<208xf32, #tpu.memory_space<smem>>
    %387 = vector.broadcast %386 : f32 to vector<16x128xf32>
    %388 = arith.mulf %387, %381 : vector<16x128xf32>
    %389 = arith.addf %348, %388 : vector<16x128xf32>
    %c85 = arith.constant 85 : index
    %390 = memref.load %arg2[%c85] : memref<208xf32, #tpu.memory_space<smem>>
    %391 = vector.broadcast %390 : f32 to vector<16x128xf32>
    %392 = arith.mulf %391, %381 : vector<16x128xf32>
    %393 = arith.addf %352, %392 : vector<16x128xf32>
    %c105 = arith.constant 105 : index
    %394 = memref.load %arg2[%c105] : memref<208xf32, #tpu.memory_space<smem>>
    %395 = vector.broadcast %394 : f32 to vector<16x128xf32>
    %396 = arith.mulf %395, %381 : vector<16x128xf32>
    %397 = arith.addf %356, %396 : vector<16x128xf32>
    %c125 = arith.constant 125 : index
    %398 = memref.load %arg2[%c125] : memref<208xf32, #tpu.memory_space<smem>>
    %399 = vector.broadcast %398 : f32 to vector<16x128xf32>
    %400 = arith.mulf %399, %381 : vector<16x128xf32>
    %401 = arith.addf %360, %400 : vector<16x128xf32>
    %c145 = arith.constant 145 : index
    %402 = memref.load %arg2[%c145] : memref<208xf32, #tpu.memory_space<smem>>
    %403 = vector.broadcast %402 : f32 to vector<16x128xf32>
    %404 = arith.mulf %403, %381 : vector<16x128xf32>
    %405 = arith.addf %364, %404 : vector<16x128xf32>
    %c165 = arith.constant 165 : index
    %406 = memref.load %arg2[%c165] : memref<208xf32, #tpu.memory_space<smem>>
    %407 = vector.broadcast %406 : f32 to vector<16x128xf32>
    %408 = arith.mulf %407, %381 : vector<16x128xf32>
    %409 = arith.addf %368, %408 : vector<16x128xf32>
    %c185 = arith.constant 185 : index
    %410 = memref.load %arg2[%c185] : memref<208xf32, #tpu.memory_space<smem>>
    %411 = vector.broadcast %410 : f32 to vector<16x128xf32>
    %412 = arith.mulf %411, %381 : vector<16x128xf32>
    %413 = arith.addf %372, %412 : vector<16x128xf32>
    %414 = vector.extract_strided_slice %375 {offsets = [0, 0], sizes = [16, 1], strides = [1, 1]} : vector<16x128xf32> to vector<16x1xf32>
    %415 = vector.extract_strided_slice %192 {offsets = [0, 0], sizes = [16, 127], strides = [1, 1]} : vector<16x128xf32> to vector<16x127xf32>
    %416 = tpu.concatenate %414, %415 in 1 : vector<16x1xf32>, vector<16x127xf32> -> vector<16x128xf32>
    %c46 = arith.constant 46 : index
    %417 = memref.load %arg2[%c46] : memref<208xf32, #tpu.memory_space<smem>>
    %418 = vector.broadcast %417 : f32 to vector<16x128xf32>
    %419 = arith.mulf %418, %416 : vector<16x128xf32>
    %420 = arith.addf %385, %419 : vector<16x128xf32>
    %c66 = arith.constant 66 : index
    %421 = memref.load %arg2[%c66] : memref<208xf32, #tpu.memory_space<smem>>
    %422 = vector.broadcast %421 : f32 to vector<16x128xf32>
    %423 = arith.mulf %422, %416 : vector<16x128xf32>
    %424 = arith.addf %389, %423 : vector<16x128xf32>
    %c86 = arith.constant 86 : index
    %425 = memref.load %arg2[%c86] : memref<208xf32, #tpu.memory_space<smem>>
    %426 = vector.broadcast %425 : f32 to vector<16x128xf32>
    %427 = arith.mulf %426, %416 : vector<16x128xf32>
    %428 = arith.addf %393, %427 : vector<16x128xf32>
    %c106 = arith.constant 106 : index
    %429 = memref.load %arg2[%c106] : memref<208xf32, #tpu.memory_space<smem>>
    %430 = vector.broadcast %429 : f32 to vector<16x128xf32>
    %431 = arith.mulf %430, %416 : vector<16x128xf32>
    %432 = arith.addf %397, %431 : vector<16x128xf32>
    %c126 = arith.constant 126 : index
    %433 = memref.load %arg2[%c126] : memref<208xf32, #tpu.memory_space<smem>>
    %434 = vector.broadcast %433 : f32 to vector<16x128xf32>
    %435 = arith.mulf %434, %416 : vector<16x128xf32>
    %436 = arith.addf %401, %435 : vector<16x128xf32>
    %c146 = arith.constant 146 : index
    %437 = memref.load %arg2[%c146] : memref<208xf32, #tpu.memory_space<smem>>
    %438 = vector.broadcast %437 : f32 to vector<16x128xf32>
    %439 = arith.mulf %438, %416 : vector<16x128xf32>
    %440 = arith.addf %405, %439 : vector<16x128xf32>
    %c166 = arith.constant 166 : index
    %441 = memref.load %arg2[%c166] : memref<208xf32, #tpu.memory_space<smem>>
    %442 = vector.broadcast %441 : f32 to vector<16x128xf32>
    %443 = arith.mulf %442, %416 : vector<16x128xf32>
    %444 = arith.addf %409, %443 : vector<16x128xf32>
    %c186 = arith.constant 186 : index
    %445 = memref.load %arg2[%c186] : memref<208xf32, #tpu.memory_space<smem>>
    %446 = vector.broadcast %445 : f32 to vector<16x128xf32>
    %447 = arith.mulf %446, %416 : vector<16x128xf32>
    %448 = arith.addf %413, %447 : vector<16x128xf32>
    %c47 = arith.constant 47 : index
    %449 = memref.load %arg2[%c47] : memref<208xf32, #tpu.memory_space<smem>>
    %450 = vector.broadcast %449 : f32 to vector<16x128xf32>
    %451 = arith.mulf %450, %192 : vector<16x128xf32>
    %452 = arith.addf %420, %451 : vector<16x128xf32>
    %c67 = arith.constant 67 : index
    %453 = memref.load %arg2[%c67] : memref<208xf32, #tpu.memory_space<smem>>
    %454 = vector.broadcast %453 : f32 to vector<16x128xf32>
    %455 = arith.mulf %454, %192 : vector<16x128xf32>
    %456 = arith.addf %424, %455 : vector<16x128xf32>
    %c87 = arith.constant 87 : index
    %457 = memref.load %arg2[%c87] : memref<208xf32, #tpu.memory_space<smem>>
    %458 = vector.broadcast %457 : f32 to vector<16x128xf32>
    %459 = arith.mulf %458, %192 : vector<16x128xf32>
    %460 = arith.addf %428, %459 : vector<16x128xf32>
    %c107 = arith.constant 107 : index
    %461 = memref.load %arg2[%c107] : memref<208xf32, #tpu.memory_space<smem>>
    %462 = vector.broadcast %461 : f32 to vector<16x128xf32>
    %463 = arith.mulf %462, %192 : vector<16x128xf32>
    %464 = arith.addf %432, %463 : vector<16x128xf32>
    %c127 = arith.constant 127 : index
    %465 = memref.load %arg2[%c127] : memref<208xf32, #tpu.memory_space<smem>>
    %466 = vector.broadcast %465 : f32 to vector<16x128xf32>
    %467 = arith.mulf %466, %192 : vector<16x128xf32>
    %468 = arith.addf %436, %467 : vector<16x128xf32>
    %c147 = arith.constant 147 : index
    %469 = memref.load %arg2[%c147] : memref<208xf32, #tpu.memory_space<smem>>
    %470 = vector.broadcast %469 : f32 to vector<16x128xf32>
    %471 = arith.mulf %470, %192 : vector<16x128xf32>
    %472 = arith.addf %440, %471 : vector<16x128xf32>
    %c167 = arith.constant 167 : index
    %473 = memref.load %arg2[%c167] : memref<208xf32, #tpu.memory_space<smem>>
    %474 = vector.broadcast %473 : f32 to vector<16x128xf32>
    %475 = arith.mulf %474, %192 : vector<16x128xf32>
    %476 = arith.addf %444, %475 : vector<16x128xf32>
    %c187 = arith.constant 187 : index
    %477 = memref.load %arg2[%c187] : memref<208xf32, #tpu.memory_space<smem>>
    %478 = vector.broadcast %477 : f32 to vector<16x128xf32>
    %479 = arith.mulf %478, %192 : vector<16x128xf32>
    %480 = arith.addf %448, %479 : vector<16x128xf32>
    %481 = vector.extract_strided_slice %192 {offsets = [0, 1], sizes = [16, 127], strides = [1, 1]} : vector<16x128xf32> to vector<16x127xf32>
    %482 = vector.extract_strided_slice %378 {offsets = [0, 0], sizes = [16, 1], strides = [1, 1]} : vector<16x128xf32> to vector<16x1xf32>
    %483 = tpu.concatenate %481, %482 in 1 : vector<16x127xf32>, vector<16x1xf32> -> vector<16x128xf32>
    %c48 = arith.constant 48 : index
    %484 = memref.load %arg2[%c48] : memref<208xf32, #tpu.memory_space<smem>>
    %485 = vector.broadcast %484 : f32 to vector<16x128xf32>
    %486 = arith.mulf %485, %483 : vector<16x128xf32>
    %487 = arith.addf %452, %486 : vector<16x128xf32>
    %c68 = arith.constant 68 : index
    %488 = memref.load %arg2[%c68] : memref<208xf32, #tpu.memory_space<smem>>
    %489 = vector.broadcast %488 : f32 to vector<16x128xf32>
    %490 = arith.mulf %489, %483 : vector<16x128xf32>
    %491 = arith.addf %456, %490 : vector<16x128xf32>
    %c88 = arith.constant 88 : index
    %492 = memref.load %arg2[%c88] : memref<208xf32, #tpu.memory_space<smem>>
    %493 = vector.broadcast %492 : f32 to vector<16x128xf32>
    %494 = arith.mulf %493, %483 : vector<16x128xf32>
    %495 = arith.addf %460, %494 : vector<16x128xf32>
    %c108 = arith.constant 108 : index
    %496 = memref.load %arg2[%c108] : memref<208xf32, #tpu.memory_space<smem>>
    %497 = vector.broadcast %496 : f32 to vector<16x128xf32>
    %498 = arith.mulf %497, %483 : vector<16x128xf32>
    %499 = arith.addf %464, %498 : vector<16x128xf32>
    %c128 = arith.constant 128 : index
    %500 = memref.load %arg2[%c128] : memref<208xf32, #tpu.memory_space<smem>>
    %501 = vector.broadcast %500 : f32 to vector<16x128xf32>
    %502 = arith.mulf %501, %483 : vector<16x128xf32>
    %503 = arith.addf %468, %502 : vector<16x128xf32>
    %c148 = arith.constant 148 : index
    %504 = memref.load %arg2[%c148] : memref<208xf32, #tpu.memory_space<smem>>
    %505 = vector.broadcast %504 : f32 to vector<16x128xf32>
    %506 = arith.mulf %505, %483 : vector<16x128xf32>
    %507 = arith.addf %472, %506 : vector<16x128xf32>
    %c168 = arith.constant 168 : index
    %508 = memref.load %arg2[%c168] : memref<208xf32, #tpu.memory_space<smem>>
    %509 = vector.broadcast %508 : f32 to vector<16x128xf32>
    %510 = arith.mulf %509, %483 : vector<16x128xf32>
    %511 = arith.addf %476, %510 : vector<16x128xf32>
    %c188 = arith.constant 188 : index
    %512 = memref.load %arg2[%c188] : memref<208xf32, #tpu.memory_space<smem>>
    %513 = vector.broadcast %512 : f32 to vector<16x128xf32>
    %514 = arith.mulf %513, %483 : vector<16x128xf32>
    %515 = arith.addf %480, %514 : vector<16x128xf32>
    %516 = vector.extract_strided_slice %192 {offsets = [0, 2], sizes = [16, 126], strides = [1, 1]} : vector<16x128xf32> to vector<16x126xf32>
    %517 = vector.extract_strided_slice %378 {offsets = [0, 0], sizes = [16, 2], strides = [1, 1]} : vector<16x128xf32> to vector<16x2xf32>
    %518 = tpu.concatenate %516, %517 in 1 : vector<16x126xf32>, vector<16x2xf32> -> vector<16x128xf32>
    %c49 = arith.constant 49 : index
    %519 = memref.load %arg2[%c49] : memref<208xf32, #tpu.memory_space<smem>>
    %520 = vector.broadcast %519 : f32 to vector<16x128xf32>
    %521 = arith.mulf %520, %518 : vector<16x128xf32>
    %522 = arith.addf %487, %521 : vector<16x128xf32>
    %c69 = arith.constant 69 : index
    %523 = memref.load %arg2[%c69] : memref<208xf32, #tpu.memory_space<smem>>
    %524 = vector.broadcast %523 : f32 to vector<16x128xf32>
    %525 = arith.mulf %524, %518 : vector<16x128xf32>
    %526 = arith.addf %491, %525 : vector<16x128xf32>
    %c89 = arith.constant 89 : index
    %527 = memref.load %arg2[%c89] : memref<208xf32, #tpu.memory_space<smem>>
    %528 = vector.broadcast %527 : f32 to vector<16x128xf32>
    %529 = arith.mulf %528, %518 : vector<16x128xf32>
    %530 = arith.addf %495, %529 : vector<16x128xf32>
    %c109 = arith.constant 109 : index
    %531 = memref.load %arg2[%c109] : memref<208xf32, #tpu.memory_space<smem>>
    %532 = vector.broadcast %531 : f32 to vector<16x128xf32>
    %533 = arith.mulf %532, %518 : vector<16x128xf32>
    %534 = arith.addf %499, %533 : vector<16x128xf32>
    %c129 = arith.constant 129 : index
    %535 = memref.load %arg2[%c129] : memref<208xf32, #tpu.memory_space<smem>>
    %536 = vector.broadcast %535 : f32 to vector<16x128xf32>
    %537 = arith.mulf %536, %518 : vector<16x128xf32>
    %538 = arith.addf %503, %537 : vector<16x128xf32>
    %c149 = arith.constant 149 : index
    %539 = memref.load %arg2[%c149] : memref<208xf32, #tpu.memory_space<smem>>
    %540 = vector.broadcast %539 : f32 to vector<16x128xf32>
    %541 = arith.mulf %540, %518 : vector<16x128xf32>
    %542 = arith.addf %507, %541 : vector<16x128xf32>
    %c169 = arith.constant 169 : index
    %543 = memref.load %arg2[%c169] : memref<208xf32, #tpu.memory_space<smem>>
    %544 = vector.broadcast %543 : f32 to vector<16x128xf32>
    %545 = arith.mulf %544, %518 : vector<16x128xf32>
    %546 = arith.addf %511, %545 : vector<16x128xf32>
    %c189 = arith.constant 189 : index
    %547 = memref.load %arg2[%c189] : memref<208xf32, #tpu.memory_space<smem>>
    %548 = vector.broadcast %547 : f32 to vector<16x128xf32>
    %549 = arith.mulf %548, %518 : vector<16x128xf32>
    %550 = arith.addf %515, %549 : vector<16x128xf32>
    %551 = vector.extract_strided_slice %197 {offsets = [0, 0], sizes = [16, 1], strides = [1, 1]} : vector<16x128xf32> to vector<16x1xf32>
    %552 = vector.shape_cast %551 : vector<16x1xf32> to vector<16x1xf32>
    %553 = vector.broadcast %552 : vector<16x1xf32> to vector<16x128xf32>
    %554 = vector.extract_strided_slice %197 {offsets = [0, 127], sizes = [16, 1], strides = [1, 1]} : vector<16x128xf32> to vector<16x1xf32>
    %555 = vector.shape_cast %554 : vector<16x1xf32> to vector<16x1xf32>
    %556 = vector.broadcast %555 : vector<16x1xf32> to vector<16x128xf32>
    %557 = vector.extract_strided_slice %553 {offsets = [0, 0], sizes = [16, 2], strides = [1, 1]} : vector<16x128xf32> to vector<16x2xf32>
    %558 = vector.extract_strided_slice %197 {offsets = [0, 0], sizes = [16, 126], strides = [1, 1]} : vector<16x128xf32> to vector<16x126xf32>
    %559 = tpu.concatenate %557, %558 in 1 : vector<16x2xf32>, vector<16x126xf32> -> vector<16x128xf32>
    %c50 = arith.constant 50 : index
    %560 = memref.load %arg2[%c50] : memref<208xf32, #tpu.memory_space<smem>>
    %561 = vector.broadcast %560 : f32 to vector<16x128xf32>
    %562 = arith.mulf %561, %559 : vector<16x128xf32>
    %563 = arith.addf %522, %562 : vector<16x128xf32>
    %c70 = arith.constant 70 : index
    %564 = memref.load %arg2[%c70] : memref<208xf32, #tpu.memory_space<smem>>
    %565 = vector.broadcast %564 : f32 to vector<16x128xf32>
    %566 = arith.mulf %565, %559 : vector<16x128xf32>
    %567 = arith.addf %526, %566 : vector<16x128xf32>
    %c90 = arith.constant 90 : index
    %568 = memref.load %arg2[%c90] : memref<208xf32, #tpu.memory_space<smem>>
    %569 = vector.broadcast %568 : f32 to vector<16x128xf32>
    %570 = arith.mulf %569, %559 : vector<16x128xf32>
    %571 = arith.addf %530, %570 : vector<16x128xf32>
    %c110 = arith.constant 110 : index
    %572 = memref.load %arg2[%c110] : memref<208xf32, #tpu.memory_space<smem>>
    %573 = vector.broadcast %572 : f32 to vector<16x128xf32>
    %574 = arith.mulf %573, %559 : vector<16x128xf32>
    %575 = arith.addf %534, %574 : vector<16x128xf32>
    %c130 = arith.constant 130 : index
    %576 = memref.load %arg2[%c130] : memref<208xf32, #tpu.memory_space<smem>>
    %577 = vector.broadcast %576 : f32 to vector<16x128xf32>
    %578 = arith.mulf %577, %559 : vector<16x128xf32>
    %579 = arith.addf %538, %578 : vector<16x128xf32>
    %c150 = arith.constant 150 : index
    %580 = memref.load %arg2[%c150] : memref<208xf32, #tpu.memory_space<smem>>
    %581 = vector.broadcast %580 : f32 to vector<16x128xf32>
    %582 = arith.mulf %581, %559 : vector<16x128xf32>
    %583 = arith.addf %542, %582 : vector<16x128xf32>
    %c170 = arith.constant 170 : index
    %584 = memref.load %arg2[%c170] : memref<208xf32, #tpu.memory_space<smem>>
    %585 = vector.broadcast %584 : f32 to vector<16x128xf32>
    %586 = arith.mulf %585, %559 : vector<16x128xf32>
    %587 = arith.addf %546, %586 : vector<16x128xf32>
    %c190 = arith.constant 190 : index
    %588 = memref.load %arg2[%c190] : memref<208xf32, #tpu.memory_space<smem>>
    %589 = vector.broadcast %588 : f32 to vector<16x128xf32>
    %590 = arith.mulf %589, %559 : vector<16x128xf32>
    %591 = arith.addf %550, %590 : vector<16x128xf32>
    %592 = vector.extract_strided_slice %553 {offsets = [0, 0], sizes = [16, 1], strides = [1, 1]} : vector<16x128xf32> to vector<16x1xf32>
    %593 = vector.extract_strided_slice %197 {offsets = [0, 0], sizes = [16, 127], strides = [1, 1]} : vector<16x128xf32> to vector<16x127xf32>
    %594 = tpu.concatenate %592, %593 in 1 : vector<16x1xf32>, vector<16x127xf32> -> vector<16x128xf32>
    %c51 = arith.constant 51 : index
    %595 = memref.load %arg2[%c51] : memref<208xf32, #tpu.memory_space<smem>>
    %596 = vector.broadcast %595 : f32 to vector<16x128xf32>
    %597 = arith.mulf %596, %594 : vector<16x128xf32>
    %598 = arith.addf %563, %597 : vector<16x128xf32>
    %c71 = arith.constant 71 : index
    %599 = memref.load %arg2[%c71] : memref<208xf32, #tpu.memory_space<smem>>
    %600 = vector.broadcast %599 : f32 to vector<16x128xf32>
    %601 = arith.mulf %600, %594 : vector<16x128xf32>
    %602 = arith.addf %567, %601 : vector<16x128xf32>
    %c91 = arith.constant 91 : index
    %603 = memref.load %arg2[%c91] : memref<208xf32, #tpu.memory_space<smem>>
    %604 = vector.broadcast %603 : f32 to vector<16x128xf32>
    %605 = arith.mulf %604, %594 : vector<16x128xf32>
    %606 = arith.addf %571, %605 : vector<16x128xf32>
    %c111 = arith.constant 111 : index
    %607 = memref.load %arg2[%c111] : memref<208xf32, #tpu.memory_space<smem>>
    %608 = vector.broadcast %607 : f32 to vector<16x128xf32>
    %609 = arith.mulf %608, %594 : vector<16x128xf32>
    %610 = arith.addf %575, %609 : vector<16x128xf32>
    %c131 = arith.constant 131 : index
    %611 = memref.load %arg2[%c131] : memref<208xf32, #tpu.memory_space<smem>>
    %612 = vector.broadcast %611 : f32 to vector<16x128xf32>
    %613 = arith.mulf %612, %594 : vector<16x128xf32>
    %614 = arith.addf %579, %613 : vector<16x128xf32>
    %c151 = arith.constant 151 : index
    %615 = memref.load %arg2[%c151] : memref<208xf32, #tpu.memory_space<smem>>
    %616 = vector.broadcast %615 : f32 to vector<16x128xf32>
    %617 = arith.mulf %616, %594 : vector<16x128xf32>
    %618 = arith.addf %583, %617 : vector<16x128xf32>
    %c171 = arith.constant 171 : index
    %619 = memref.load %arg2[%c171] : memref<208xf32, #tpu.memory_space<smem>>
    %620 = vector.broadcast %619 : f32 to vector<16x128xf32>
    %621 = arith.mulf %620, %594 : vector<16x128xf32>
    %622 = arith.addf %587, %621 : vector<16x128xf32>
    %c191 = arith.constant 191 : index
    %623 = memref.load %arg2[%c191] : memref<208xf32, #tpu.memory_space<smem>>
    %624 = vector.broadcast %623 : f32 to vector<16x128xf32>
    %625 = arith.mulf %624, %594 : vector<16x128xf32>
    %626 = arith.addf %591, %625 : vector<16x128xf32>
    %c52 = arith.constant 52 : index
    %627 = memref.load %arg2[%c52] : memref<208xf32, #tpu.memory_space<smem>>
    %628 = vector.broadcast %627 : f32 to vector<16x128xf32>
    %629 = arith.mulf %628, %197 : vector<16x128xf32>
    %630 = arith.addf %598, %629 : vector<16x128xf32>
    %c72 = arith.constant 72 : index
    %631 = memref.load %arg2[%c72] : memref<208xf32, #tpu.memory_space<smem>>
    %632 = vector.broadcast %631 : f32 to vector<16x128xf32>
    %633 = arith.mulf %632, %197 : vector<16x128xf32>
    %634 = arith.addf %602, %633 : vector<16x128xf32>
    %c92 = arith.constant 92 : index
    %635 = memref.load %arg2[%c92] : memref<208xf32, #tpu.memory_space<smem>>
    %636 = vector.broadcast %635 : f32 to vector<16x128xf32>
    %637 = arith.mulf %636, %197 : vector<16x128xf32>
    %638 = arith.addf %606, %637 : vector<16x128xf32>
    %c112 = arith.constant 112 : index
    %639 = memref.load %arg2[%c112] : memref<208xf32, #tpu.memory_space<smem>>
    %640 = vector.broadcast %639 : f32 to vector<16x128xf32>
    %641 = arith.mulf %640, %197 : vector<16x128xf32>
    %642 = arith.addf %610, %641 : vector<16x128xf32>
    %c132 = arith.constant 132 : index
    %643 = memref.load %arg2[%c132] : memref<208xf32, #tpu.memory_space<smem>>
    %644 = vector.broadcast %643 : f32 to vector<16x128xf32>
    %645 = arith.mulf %644, %197 : vector<16x128xf32>
    %646 = arith.addf %614, %645 : vector<16x128xf32>
    %c152 = arith.constant 152 : index
    %647 = memref.load %arg2[%c152] : memref<208xf32, #tpu.memory_space<smem>>
    %648 = vector.broadcast %647 : f32 to vector<16x128xf32>
    %649 = arith.mulf %648, %197 : vector<16x128xf32>
    %650 = arith.addf %618, %649 : vector<16x128xf32>
    %c172 = arith.constant 172 : index
    %651 = memref.load %arg2[%c172] : memref<208xf32, #tpu.memory_space<smem>>
    %652 = vector.broadcast %651 : f32 to vector<16x128xf32>
    %653 = arith.mulf %652, %197 : vector<16x128xf32>
    %654 = arith.addf %622, %653 : vector<16x128xf32>
    %c192 = arith.constant 192 : index
    %655 = memref.load %arg2[%c192] : memref<208xf32, #tpu.memory_space<smem>>
    %656 = vector.broadcast %655 : f32 to vector<16x128xf32>
    %657 = arith.mulf %656, %197 : vector<16x128xf32>
    %658 = arith.addf %626, %657 : vector<16x128xf32>
    %659 = vector.extract_strided_slice %197 {offsets = [0, 1], sizes = [16, 127], strides = [1, 1]} : vector<16x128xf32> to vector<16x127xf32>
    %660 = vector.extract_strided_slice %556 {offsets = [0, 0], sizes = [16, 1], strides = [1, 1]} : vector<16x128xf32> to vector<16x1xf32>
    %661 = tpu.concatenate %659, %660 in 1 : vector<16x127xf32>, vector<16x1xf32> -> vector<16x128xf32>
    %c53 = arith.constant 53 : index
    %662 = memref.load %arg2[%c53] : memref<208xf32, #tpu.memory_space<smem>>
    %663 = vector.broadcast %662 : f32 to vector<16x128xf32>
    %664 = arith.mulf %663, %661 : vector<16x128xf32>
    %665 = arith.addf %630, %664 : vector<16x128xf32>
    %c73 = arith.constant 73 : index
    %666 = memref.load %arg2[%c73] : memref<208xf32, #tpu.memory_space<smem>>
    %667 = vector.broadcast %666 : f32 to vector<16x128xf32>
    %668 = arith.mulf %667, %661 : vector<16x128xf32>
    %669 = arith.addf %634, %668 : vector<16x128xf32>
    %c93 = arith.constant 93 : index
    %670 = memref.load %arg2[%c93] : memref<208xf32, #tpu.memory_space<smem>>
    %671 = vector.broadcast %670 : f32 to vector<16x128xf32>
    %672 = arith.mulf %671, %661 : vector<16x128xf32>
    %673 = arith.addf %638, %672 : vector<16x128xf32>
    %c113 = arith.constant 113 : index
    %674 = memref.load %arg2[%c113] : memref<208xf32, #tpu.memory_space<smem>>
    %675 = vector.broadcast %674 : f32 to vector<16x128xf32>
    %676 = arith.mulf %675, %661 : vector<16x128xf32>
    %677 = arith.addf %642, %676 : vector<16x128xf32>
    %c133 = arith.constant 133 : index
    %678 = memref.load %arg2[%c133] : memref<208xf32, #tpu.memory_space<smem>>
    %679 = vector.broadcast %678 : f32 to vector<16x128xf32>
    %680 = arith.mulf %679, %661 : vector<16x128xf32>
    %681 = arith.addf %646, %680 : vector<16x128xf32>
    %c153 = arith.constant 153 : index
    %682 = memref.load %arg2[%c153] : memref<208xf32, #tpu.memory_space<smem>>
    %683 = vector.broadcast %682 : f32 to vector<16x128xf32>
    %684 = arith.mulf %683, %661 : vector<16x128xf32>
    %685 = arith.addf %650, %684 : vector<16x128xf32>
    %c173 = arith.constant 173 : index
    %686 = memref.load %arg2[%c173] : memref<208xf32, #tpu.memory_space<smem>>
    %687 = vector.broadcast %686 : f32 to vector<16x128xf32>
    %688 = arith.mulf %687, %661 : vector<16x128xf32>
    %689 = arith.addf %654, %688 : vector<16x128xf32>
    %c193 = arith.constant 193 : index
    %690 = memref.load %arg2[%c193] : memref<208xf32, #tpu.memory_space<smem>>
    %691 = vector.broadcast %690 : f32 to vector<16x128xf32>
    %692 = arith.mulf %691, %661 : vector<16x128xf32>
    %693 = arith.addf %658, %692 : vector<16x128xf32>
    %694 = vector.extract_strided_slice %197 {offsets = [0, 2], sizes = [16, 126], strides = [1, 1]} : vector<16x128xf32> to vector<16x126xf32>
    %695 = vector.extract_strided_slice %556 {offsets = [0, 0], sizes = [16, 2], strides = [1, 1]} : vector<16x128xf32> to vector<16x2xf32>
    %696 = tpu.concatenate %694, %695 in 1 : vector<16x126xf32>, vector<16x2xf32> -> vector<16x128xf32>
    %c54 = arith.constant 54 : index
    %697 = memref.load %arg2[%c54] : memref<208xf32, #tpu.memory_space<smem>>
    %698 = vector.broadcast %697 : f32 to vector<16x128xf32>
    %699 = arith.mulf %698, %696 : vector<16x128xf32>
    %700 = arith.addf %665, %699 : vector<16x128xf32>
    %c74 = arith.constant 74 : index
    %701 = memref.load %arg2[%c74] : memref<208xf32, #tpu.memory_space<smem>>
    %702 = vector.broadcast %701 : f32 to vector<16x128xf32>
    %703 = arith.mulf %702, %696 : vector<16x128xf32>
    %704 = arith.addf %669, %703 : vector<16x128xf32>
    %c94 = arith.constant 94 : index
    %705 = memref.load %arg2[%c94] : memref<208xf32, #tpu.memory_space<smem>>
    %706 = vector.broadcast %705 : f32 to vector<16x128xf32>
    %707 = arith.mulf %706, %696 : vector<16x128xf32>
    %708 = arith.addf %673, %707 : vector<16x128xf32>
    %c114 = arith.constant 114 : index
    %709 = memref.load %arg2[%c114] : memref<208xf32, #tpu.memory_space<smem>>
    %710 = vector.broadcast %709 : f32 to vector<16x128xf32>
    %711 = arith.mulf %710, %696 : vector<16x128xf32>
    %712 = arith.addf %677, %711 : vector<16x128xf32>
    %c134 = arith.constant 134 : index
    %713 = memref.load %arg2[%c134] : memref<208xf32, #tpu.memory_space<smem>>
    %714 = vector.broadcast %713 : f32 to vector<16x128xf32>
    %715 = arith.mulf %714, %696 : vector<16x128xf32>
    %716 = arith.addf %681, %715 : vector<16x128xf32>
    %c154 = arith.constant 154 : index
    %717 = memref.load %arg2[%c154] : memref<208xf32, #tpu.memory_space<smem>>
    %718 = vector.broadcast %717 : f32 to vector<16x128xf32>
    %719 = arith.mulf %718, %696 : vector<16x128xf32>
    %720 = arith.addf %685, %719 : vector<16x128xf32>
    %c174 = arith.constant 174 : index
    %721 = memref.load %arg2[%c174] : memref<208xf32, #tpu.memory_space<smem>>
    %722 = vector.broadcast %721 : f32 to vector<16x128xf32>
    %723 = arith.mulf %722, %696 : vector<16x128xf32>
    %724 = arith.addf %689, %723 : vector<16x128xf32>
    %c194 = arith.constant 194 : index
    %725 = memref.load %arg2[%c194] : memref<208xf32, #tpu.memory_space<smem>>
    %726 = vector.broadcast %725 : f32 to vector<16x128xf32>
    %727 = arith.mulf %726, %696 : vector<16x128xf32>
    %728 = arith.addf %693, %727 : vector<16x128xf32>
    %729 = vector.extract_strided_slice %202 {offsets = [0, 0], sizes = [16, 1], strides = [1, 1]} : vector<16x128xf32> to vector<16x1xf32>
    %730 = vector.shape_cast %729 : vector<16x1xf32> to vector<16x1xf32>
    %731 = vector.broadcast %730 : vector<16x1xf32> to vector<16x128xf32>
    %732 = vector.extract_strided_slice %202 {offsets = [0, 127], sizes = [16, 1], strides = [1, 1]} : vector<16x128xf32> to vector<16x1xf32>
    %733 = vector.shape_cast %732 : vector<16x1xf32> to vector<16x1xf32>
    %734 = vector.broadcast %733 : vector<16x1xf32> to vector<16x128xf32>
    %735 = vector.extract_strided_slice %731 {offsets = [0, 0], sizes = [16, 2], strides = [1, 1]} : vector<16x128xf32> to vector<16x2xf32>
    %736 = vector.extract_strided_slice %202 {offsets = [0, 0], sizes = [16, 126], strides = [1, 1]} : vector<16x128xf32> to vector<16x126xf32>
    %737 = tpu.concatenate %735, %736 in 1 : vector<16x2xf32>, vector<16x126xf32> -> vector<16x128xf32>
    %c55 = arith.constant 55 : index
    %738 = memref.load %arg2[%c55] : memref<208xf32, #tpu.memory_space<smem>>
    %739 = vector.broadcast %738 : f32 to vector<16x128xf32>
    %740 = arith.mulf %739, %737 : vector<16x128xf32>
    %741 = arith.addf %700, %740 : vector<16x128xf32>
    %c75 = arith.constant 75 : index
    %742 = memref.load %arg2[%c75] : memref<208xf32, #tpu.memory_space<smem>>
    %743 = vector.broadcast %742 : f32 to vector<16x128xf32>
    %744 = arith.mulf %743, %737 : vector<16x128xf32>
    %745 = arith.addf %704, %744 : vector<16x128xf32>
    %c95 = arith.constant 95 : index
    %746 = memref.load %arg2[%c95] : memref<208xf32, #tpu.memory_space<smem>>
    %747 = vector.broadcast %746 : f32 to vector<16x128xf32>
    %748 = arith.mulf %747, %737 : vector<16x128xf32>
    %749 = arith.addf %708, %748 : vector<16x128xf32>
    %c115 = arith.constant 115 : index
    %750 = memref.load %arg2[%c115] : memref<208xf32, #tpu.memory_space<smem>>
    %751 = vector.broadcast %750 : f32 to vector<16x128xf32>
    %752 = arith.mulf %751, %737 : vector<16x128xf32>
    %753 = arith.addf %712, %752 : vector<16x128xf32>
    %c135 = arith.constant 135 : index
    %754 = memref.load %arg2[%c135] : memref<208xf32, #tpu.memory_space<smem>>
    %755 = vector.broadcast %754 : f32 to vector<16x128xf32>
    %756 = arith.mulf %755, %737 : vector<16x128xf32>
    %757 = arith.addf %716, %756 : vector<16x128xf32>
    %c155 = arith.constant 155 : index
    %758 = memref.load %arg2[%c155] : memref<208xf32, #tpu.memory_space<smem>>
    %759 = vector.broadcast %758 : f32 to vector<16x128xf32>
    %760 = arith.mulf %759, %737 : vector<16x128xf32>
    %761 = arith.addf %720, %760 : vector<16x128xf32>
    %c175 = arith.constant 175 : index
    %762 = memref.load %arg2[%c175] : memref<208xf32, #tpu.memory_space<smem>>
    %763 = vector.broadcast %762 : f32 to vector<16x128xf32>
    %764 = arith.mulf %763, %737 : vector<16x128xf32>
    %765 = arith.addf %724, %764 : vector<16x128xf32>
    %c195 = arith.constant 195 : index
    %766 = memref.load %arg2[%c195] : memref<208xf32, #tpu.memory_space<smem>>
    %767 = vector.broadcast %766 : f32 to vector<16x128xf32>
    %768 = arith.mulf %767, %737 : vector<16x128xf32>
    %769 = arith.addf %728, %768 : vector<16x128xf32>
    %770 = vector.extract_strided_slice %731 {offsets = [0, 0], sizes = [16, 1], strides = [1, 1]} : vector<16x128xf32> to vector<16x1xf32>
    %771 = vector.extract_strided_slice %202 {offsets = [0, 0], sizes = [16, 127], strides = [1, 1]} : vector<16x128xf32> to vector<16x127xf32>
    %772 = tpu.concatenate %770, %771 in 1 : vector<16x1xf32>, vector<16x127xf32> -> vector<16x128xf32>
    %c56 = arith.constant 56 : index
    %773 = memref.load %arg2[%c56] : memref<208xf32, #tpu.memory_space<smem>>
    %774 = vector.broadcast %773 : f32 to vector<16x128xf32>
    %775 = arith.mulf %774, %772 : vector<16x128xf32>
    %776 = arith.addf %741, %775 : vector<16x128xf32>
    %c76 = arith.constant 76 : index
    %777 = memref.load %arg2[%c76] : memref<208xf32, #tpu.memory_space<smem>>
    %778 = vector.broadcast %777 : f32 to vector<16x128xf32>
    %779 = arith.mulf %778, %772 : vector<16x128xf32>
    %780 = arith.addf %745, %779 : vector<16x128xf32>
    %c96 = arith.constant 96 : index
    %781 = memref.load %arg2[%c96] : memref<208xf32, #tpu.memory_space<smem>>
    %782 = vector.broadcast %781 : f32 to vector<16x128xf32>
    %783 = arith.mulf %782, %772 : vector<16x128xf32>
    %784 = arith.addf %749, %783 : vector<16x128xf32>
    %c116 = arith.constant 116 : index
    %785 = memref.load %arg2[%c116] : memref<208xf32, #tpu.memory_space<smem>>
    %786 = vector.broadcast %785 : f32 to vector<16x128xf32>
    %787 = arith.mulf %786, %772 : vector<16x128xf32>
    %788 = arith.addf %753, %787 : vector<16x128xf32>
    %c136 = arith.constant 136 : index
    %789 = memref.load %arg2[%c136] : memref<208xf32, #tpu.memory_space<smem>>
    %790 = vector.broadcast %789 : f32 to vector<16x128xf32>
    %791 = arith.mulf %790, %772 : vector<16x128xf32>
    %792 = arith.addf %757, %791 : vector<16x128xf32>
    %c156 = arith.constant 156 : index
    %793 = memref.load %arg2[%c156] : memref<208xf32, #tpu.memory_space<smem>>
    %794 = vector.broadcast %793 : f32 to vector<16x128xf32>
    %795 = arith.mulf %794, %772 : vector<16x128xf32>
    %796 = arith.addf %761, %795 : vector<16x128xf32>
    %c176 = arith.constant 176 : index
    %797 = memref.load %arg2[%c176] : memref<208xf32, #tpu.memory_space<smem>>
    %798 = vector.broadcast %797 : f32 to vector<16x128xf32>
    %799 = arith.mulf %798, %772 : vector<16x128xf32>
    %800 = arith.addf %765, %799 : vector<16x128xf32>
    %c196 = arith.constant 196 : index
    %801 = memref.load %arg2[%c196] : memref<208xf32, #tpu.memory_space<smem>>
    %802 = vector.broadcast %801 : f32 to vector<16x128xf32>
    %803 = arith.mulf %802, %772 : vector<16x128xf32>
    %804 = arith.addf %769, %803 : vector<16x128xf32>
    %c57 = arith.constant 57 : index
    %805 = memref.load %arg2[%c57] : memref<208xf32, #tpu.memory_space<smem>>
    %806 = vector.broadcast %805 : f32 to vector<16x128xf32>
    %807 = arith.mulf %806, %202 : vector<16x128xf32>
    %808 = arith.addf %776, %807 : vector<16x128xf32>
    %c77 = arith.constant 77 : index
    %809 = memref.load %arg2[%c77] : memref<208xf32, #tpu.memory_space<smem>>
    %810 = vector.broadcast %809 : f32 to vector<16x128xf32>
    %811 = arith.mulf %810, %202 : vector<16x128xf32>
    %812 = arith.addf %780, %811 : vector<16x128xf32>
    %c97 = arith.constant 97 : index
    %813 = memref.load %arg2[%c97] : memref<208xf32, #tpu.memory_space<smem>>
    %814 = vector.broadcast %813 : f32 to vector<16x128xf32>
    %815 = arith.mulf %814, %202 : vector<16x128xf32>
    %816 = arith.addf %784, %815 : vector<16x128xf32>
    %c117 = arith.constant 117 : index
    %817 = memref.load %arg2[%c117] : memref<208xf32, #tpu.memory_space<smem>>
    %818 = vector.broadcast %817 : f32 to vector<16x128xf32>
    %819 = arith.mulf %818, %202 : vector<16x128xf32>
    %820 = arith.addf %788, %819 : vector<16x128xf32>
    %c137 = arith.constant 137 : index
    %821 = memref.load %arg2[%c137] : memref<208xf32, #tpu.memory_space<smem>>
    %822 = vector.broadcast %821 : f32 to vector<16x128xf32>
    %823 = arith.mulf %822, %202 : vector<16x128xf32>
    %824 = arith.addf %792, %823 : vector<16x128xf32>
    %c157 = arith.constant 157 : index
    %825 = memref.load %arg2[%c157] : memref<208xf32, #tpu.memory_space<smem>>
    %826 = vector.broadcast %825 : f32 to vector<16x128xf32>
    %827 = arith.mulf %826, %202 : vector<16x128xf32>
    %828 = arith.addf %796, %827 : vector<16x128xf32>
    %c177 = arith.constant 177 : index
    %829 = memref.load %arg2[%c177] : memref<208xf32, #tpu.memory_space<smem>>
    %830 = vector.broadcast %829 : f32 to vector<16x128xf32>
    %831 = arith.mulf %830, %202 : vector<16x128xf32>
    %832 = arith.addf %800, %831 : vector<16x128xf32>
    %c197 = arith.constant 197 : index
    %833 = memref.load %arg2[%c197] : memref<208xf32, #tpu.memory_space<smem>>
    %834 = vector.broadcast %833 : f32 to vector<16x128xf32>
    %835 = arith.mulf %834, %202 : vector<16x128xf32>
    %836 = arith.addf %804, %835 : vector<16x128xf32>
    %837 = vector.extract_strided_slice %202 {offsets = [0, 1], sizes = [16, 127], strides = [1, 1]} : vector<16x128xf32> to vector<16x127xf32>
    %838 = vector.extract_strided_slice %734 {offsets = [0, 0], sizes = [16, 1], strides = [1, 1]} : vector<16x128xf32> to vector<16x1xf32>
    %839 = tpu.concatenate %837, %838 in 1 : vector<16x127xf32>, vector<16x1xf32> -> vector<16x128xf32>
    %c58 = arith.constant 58 : index
    %840 = memref.load %arg2[%c58] : memref<208xf32, #tpu.memory_space<smem>>
    %841 = vector.broadcast %840 : f32 to vector<16x128xf32>
    %842 = arith.mulf %841, %839 : vector<16x128xf32>
    %843 = arith.addf %808, %842 : vector<16x128xf32>
    %c78 = arith.constant 78 : index
    %844 = memref.load %arg2[%c78] : memref<208xf32, #tpu.memory_space<smem>>
    %845 = vector.broadcast %844 : f32 to vector<16x128xf32>
    %846 = arith.mulf %845, %839 : vector<16x128xf32>
    %847 = arith.addf %812, %846 : vector<16x128xf32>
    %c98 = arith.constant 98 : index
    %848 = memref.load %arg2[%c98] : memref<208xf32, #tpu.memory_space<smem>>
    %849 = vector.broadcast %848 : f32 to vector<16x128xf32>
    %850 = arith.mulf %849, %839 : vector<16x128xf32>
    %851 = arith.addf %816, %850 : vector<16x128xf32>
    %c118 = arith.constant 118 : index
    %852 = memref.load %arg2[%c118] : memref<208xf32, #tpu.memory_space<smem>>
    %853 = vector.broadcast %852 : f32 to vector<16x128xf32>
    %854 = arith.mulf %853, %839 : vector<16x128xf32>
    %855 = arith.addf %820, %854 : vector<16x128xf32>
    %c138 = arith.constant 138 : index
    %856 = memref.load %arg2[%c138] : memref<208xf32, #tpu.memory_space<smem>>
    %857 = vector.broadcast %856 : f32 to vector<16x128xf32>
    %858 = arith.mulf %857, %839 : vector<16x128xf32>
    %859 = arith.addf %824, %858 : vector<16x128xf32>
    %c158 = arith.constant 158 : index
    %860 = memref.load %arg2[%c158] : memref<208xf32, #tpu.memory_space<smem>>
    %861 = vector.broadcast %860 : f32 to vector<16x128xf32>
    %862 = arith.mulf %861, %839 : vector<16x128xf32>
    %863 = arith.addf %828, %862 : vector<16x128xf32>
    %c178 = arith.constant 178 : index
    %864 = memref.load %arg2[%c178] : memref<208xf32, #tpu.memory_space<smem>>
    %865 = vector.broadcast %864 : f32 to vector<16x128xf32>
    %866 = arith.mulf %865, %839 : vector<16x128xf32>
    %867 = arith.addf %832, %866 : vector<16x128xf32>
    %c198 = arith.constant 198 : index
    %868 = memref.load %arg2[%c198] : memref<208xf32, #tpu.memory_space<smem>>
    %869 = vector.broadcast %868 : f32 to vector<16x128xf32>
    %870 = arith.mulf %869, %839 : vector<16x128xf32>
    %871 = arith.addf %836, %870 : vector<16x128xf32>
    %872 = vector.extract_strided_slice %202 {offsets = [0, 2], sizes = [16, 126], strides = [1, 1]} : vector<16x128xf32> to vector<16x126xf32>
    %873 = vector.extract_strided_slice %734 {offsets = [0, 0], sizes = [16, 2], strides = [1, 1]} : vector<16x128xf32> to vector<16x2xf32>
    %874 = tpu.concatenate %872, %873 in 1 : vector<16x126xf32>, vector<16x2xf32> -> vector<16x128xf32>
    %c59 = arith.constant 59 : index
    %875 = memref.load %arg2[%c59] : memref<208xf32, #tpu.memory_space<smem>>
    %876 = vector.broadcast %875 : f32 to vector<16x128xf32>
    %877 = arith.mulf %876, %874 : vector<16x128xf32>
    %878 = arith.addf %843, %877 : vector<16x128xf32>
    %c79 = arith.constant 79 : index
    %879 = memref.load %arg2[%c79] : memref<208xf32, #tpu.memory_space<smem>>
    %880 = vector.broadcast %879 : f32 to vector<16x128xf32>
    %881 = arith.mulf %880, %874 : vector<16x128xf32>
    %882 = arith.addf %847, %881 : vector<16x128xf32>
    %c99 = arith.constant 99 : index
    %883 = memref.load %arg2[%c99] : memref<208xf32, #tpu.memory_space<smem>>
    %884 = vector.broadcast %883 : f32 to vector<16x128xf32>
    %885 = arith.mulf %884, %874 : vector<16x128xf32>
    %886 = arith.addf %851, %885 : vector<16x128xf32>
    %c119 = arith.constant 119 : index
    %887 = memref.load %arg2[%c119] : memref<208xf32, #tpu.memory_space<smem>>
    %888 = vector.broadcast %887 : f32 to vector<16x128xf32>
    %889 = arith.mulf %888, %874 : vector<16x128xf32>
    %890 = arith.addf %855, %889 : vector<16x128xf32>
    %c139 = arith.constant 139 : index
    %891 = memref.load %arg2[%c139] : memref<208xf32, #tpu.memory_space<smem>>
    %892 = vector.broadcast %891 : f32 to vector<16x128xf32>
    %893 = arith.mulf %892, %874 : vector<16x128xf32>
    %894 = arith.addf %859, %893 : vector<16x128xf32>
    %c159 = arith.constant 159 : index
    %895 = memref.load %arg2[%c159] : memref<208xf32, #tpu.memory_space<smem>>
    %896 = vector.broadcast %895 : f32 to vector<16x128xf32>
    %897 = arith.mulf %896, %874 : vector<16x128xf32>
    %898 = arith.addf %863, %897 : vector<16x128xf32>
    %c179 = arith.constant 179 : index
    %899 = memref.load %arg2[%c179] : memref<208xf32, #tpu.memory_space<smem>>
    %900 = vector.broadcast %899 : f32 to vector<16x128xf32>
    %901 = arith.mulf %900, %874 : vector<16x128xf32>
    %902 = arith.addf %867, %901 : vector<16x128xf32>
    %c199 = arith.constant 199 : index
    %903 = memref.load %arg2[%c199] : memref<208xf32, #tpu.memory_space<smem>>
    %904 = vector.broadcast %903 : f32 to vector<16x128xf32>
    %905 = arith.mulf %904, %874 : vector<16x128xf32>
    %906 = arith.addf %871, %905 : vector<16x128xf32>
    %c200 = arith.constant 200 : index
    %907 = memref.load %arg2[%c200] : memref<208xf32, #tpu.memory_space<smem>>
    %908 = vector.broadcast %907 : f32 to vector<16x128xf32>
    %909 = arith.addf %878, %908 : vector<16x128xf32>
    %c201 = arith.constant 201 : index
    %910 = memref.load %arg2[%c201] : memref<208xf32, #tpu.memory_space<smem>>
    %911 = vector.broadcast %910 : f32 to vector<16x128xf32>
    %912 = arith.addf %882, %911 : vector<16x128xf32>
    %c202 = arith.constant 202 : index
    %913 = memref.load %arg2[%c202] : memref<208xf32, #tpu.memory_space<smem>>
    %914 = vector.broadcast %913 : f32 to vector<16x128xf32>
    %915 = arith.addf %886, %914 : vector<16x128xf32>
    %c203 = arith.constant 203 : index
    %916 = memref.load %arg2[%c203] : memref<208xf32, #tpu.memory_space<smem>>
    %917 = vector.broadcast %916 : f32 to vector<16x128xf32>
    %918 = arith.addf %890, %917 : vector<16x128xf32>
    %c204 = arith.constant 204 : index
    %919 = memref.load %arg2[%c204] : memref<208xf32, #tpu.memory_space<smem>>
    %920 = vector.broadcast %919 : f32 to vector<16x128xf32>
    %921 = arith.addf %894, %920 : vector<16x128xf32>
    %c205 = arith.constant 205 : index
    %922 = memref.load %arg2[%c205] : memref<208xf32, #tpu.memory_space<smem>>
    %923 = vector.broadcast %922 : f32 to vector<16x128xf32>
    %924 = arith.addf %898, %923 : vector<16x128xf32>
    %c206 = arith.constant 206 : index
    %925 = memref.load %arg2[%c206] : memref<208xf32, #tpu.memory_space<smem>>
    %926 = vector.broadcast %925 : f32 to vector<16x128xf32>
    %927 = arith.addf %902, %926 : vector<16x128xf32>
    %c207 = arith.constant 207 : index
    %928 = memref.load %arg2[%c207] : memref<208xf32, #tpu.memory_space<smem>>
    %929 = vector.broadcast %928 : f32 to vector<16x128xf32>
    %930 = arith.addf %906, %929 : vector<16x128xf32>
    %cst_9 = arith.constant 0.000000e+00 : f32
    %931 = vector.broadcast %cst_9 : f32 to vector<16x128xf32>
    %932 = arith.cmpf ogt, %909, %931 : vector<16x128xf32>
    %cst_10 = arith.constant 0.00999999977 : f32
    %933 = vector.broadcast %cst_10 : f32 to vector<16x128xf32>
    %934 = arith.mulf %933, %909 : vector<16x128xf32>
    %935 = arith.select %932, %909, %934 : vector<16x128xi1>, vector<16x128xf32>
    %cst_11 = arith.constant 0.000000e+00 : f32
    %936 = vector.broadcast %cst_11 : f32 to vector<16x128xf32>
    %937 = arith.cmpf ogt, %912, %936 : vector<16x128xf32>
    %cst_12 = arith.constant 0.00999999977 : f32
    %938 = vector.broadcast %cst_12 : f32 to vector<16x128xf32>
    %939 = arith.mulf %938, %912 : vector<16x128xf32>
    %940 = arith.select %937, %912, %939 : vector<16x128xi1>, vector<16x128xf32>
    %cst_13 = arith.constant 0.000000e+00 : f32
    %941 = vector.broadcast %cst_13 : f32 to vector<16x128xf32>
    %942 = arith.cmpf ogt, %915, %941 : vector<16x128xf32>
    %cst_14 = arith.constant 0.00999999977 : f32
    %943 = vector.broadcast %cst_14 : f32 to vector<16x128xf32>
    %944 = arith.mulf %943, %915 : vector<16x128xf32>
    %945 = arith.select %942, %915, %944 : vector<16x128xi1>, vector<16x128xf32>
    %cst_15 = arith.constant 0.000000e+00 : f32
    %946 = vector.broadcast %cst_15 : f32 to vector<16x128xf32>
    %947 = arith.cmpf ogt, %918, %946 : vector<16x128xf32>
    %cst_16 = arith.constant 0.00999999977 : f32
    %948 = vector.broadcast %cst_16 : f32 to vector<16x128xf32>
    %949 = arith.mulf %948, %918 : vector<16x128xf32>
    %950 = arith.select %947, %918, %949 : vector<16x128xi1>, vector<16x128xf32>
    %cst_17 = arith.constant 0.000000e+00 : f32
    %951 = vector.broadcast %cst_17 : f32 to vector<16x128xf32>
    %952 = arith.cmpf ogt, %921, %951 : vector<16x128xf32>
    %cst_18 = arith.constant 0.00999999977 : f32
    %953 = vector.broadcast %cst_18 : f32 to vector<16x128xf32>
    %954 = arith.mulf %953, %921 : vector<16x128xf32>
    %955 = arith.select %952, %921, %954 : vector<16x128xi1>, vector<16x128xf32>
    %cst_19 = arith.constant 0.000000e+00 : f32
    %956 = vector.broadcast %cst_19 : f32 to vector<16x128xf32>
    %957 = arith.cmpf ogt, %924, %956 : vector<16x128xf32>
    %cst_20 = arith.constant 0.00999999977 : f32
    %958 = vector.broadcast %cst_20 : f32 to vector<16x128xf32>
    %959 = arith.mulf %958, %924 : vector<16x128xf32>
    %960 = arith.select %957, %924, %959 : vector<16x128xi1>, vector<16x128xf32>
    %cst_21 = arith.constant 0.000000e+00 : f32
    %961 = vector.broadcast %cst_21 : f32 to vector<16x128xf32>
    %962 = arith.cmpf ogt, %927, %961 : vector<16x128xf32>
    %cst_22 = arith.constant 0.00999999977 : f32
    %963 = vector.broadcast %cst_22 : f32 to vector<16x128xf32>
    %964 = arith.mulf %963, %927 : vector<16x128xf32>
    %965 = arith.select %962, %927, %964 : vector<16x128xi1>, vector<16x128xf32>
    %cst_23 = arith.constant 0.000000e+00 : f32
    %966 = vector.broadcast %cst_23 : f32 to vector<16x128xf32>
    %967 = arith.cmpf ogt, %930, %966 : vector<16x128xf32>
    %cst_24 = arith.constant 0.00999999977 : f32
    %968 = vector.broadcast %cst_24 : f32 to vector<16x128xf32>
    %969 = arith.mulf %968, %930 : vector<16x128xf32>
    %970 = arith.select %967, %930, %969 : vector<16x128xi1>, vector<16x128xf32>
    %971 = tpu.concatenate %935, %940, %945, %950, %955, %960, %965, %970 in 0 : vector<16x128xf32>, vector<16x128xf32>, vector<16x128xf32>, vector<16x128xf32>, vector<16x128xf32>, vector<16x128xf32>, vector<16x128xf32>, vector<16x128xf32> -> vector<128x128xf32>
    %972 = arith.truncf %971 : vector<128x128xf32> to vector<128x128xbf16>
    %c0_25 = arith.constant 0 : index
    %c0_26 = arith.constant 0 : index
    %973 = vector.load %arg3[%c0_25, %c0_26] : memref<128x128xbf16, #tpu.memory_space<vmem>>, vector<128x128xbf16>
    %cst_27 = arith.constant dense<0.000000e+00> : vector<128x128xf32>
    %974 = tpu.matmul %972, %973, %cst_27 {dimension_numbers = #tpu.dot_dimension_numbers<[1], [0], [0], [1], [0, 0, 1, 1], [], []>} : vector<128x128xbf16>, vector<128x128xbf16>, vector<128x128xf32> -> vector<128x128xf32>
    %975 = vector.extract_strided_slice %974 {offsets = [0, 0], sizes = [128, 64], strides = [1, 1]} : vector<128x128xf32> to vector<128x64xf32>
    %976 = vector.extract_strided_slice %974 {offsets = [0, 64], sizes = [128, 64], strides = [1, 1]} : vector<128x128xf32> to vector<128x64xf32>
    %977 = arith.maximumf %975, %976 : vector<128x64xf32>
    %c0_28 = arith.constant 0 : index
    %c0_29 = arith.constant 0 : index
    %978 = vector.load %arg6[%c0_28, %c0_29] : memref<64x256xf32, #tpu.memory_space<vmem>>, vector<64x256xf32>
    %979 = arith.truncf %977 : vector<128x64xf32> to vector<128x64xbf16>
    %c0_30 = arith.constant 0 : index
    %c0_31 = arith.constant 0 : index
    %980 = vector.load %arg4[%c0_30, %c0_31] : memref<64x256xbf16, #tpu.memory_space<vmem>>, vector<64x256xbf16>
    %cst_32 = arith.constant dense<0.000000e+00> : vector<128x256xf32>
    %981 = tpu.matmul %979, %980, %cst_32 {dimension_numbers = #tpu.dot_dimension_numbers<[1], [0], [0], [1], [0, 0, 1, 1], [], []>} : vector<128x64xbf16>, vector<64x256xbf16>, vector<128x256xf32> -> vector<128x256xf32>
    %c0_33 = arith.constant 0 : index
    %c0_34 = arith.constant 0 : index
    %982 = vector.load %arg5[%c0_33, %c0_34] : memref<1x256xf32, #tpu.memory_space<vmem>>, vector<1x256xf32>
    %983 = vector.broadcast %982 : vector<1x256xf32> to vector<128x256xf32>
    %984 = arith.addf %981, %983 : vector<128x256xf32>
    %985 = vector.extract_strided_slice %984 {offsets = [0, 0], sizes = [16, 128], strides = [1, 1]} : vector<128x256xf32> to vector<16x128xf32>
    %986 = vector.extract_strided_slice %984 {offsets = [112, 128], sizes = [16, 128], strides = [1, 1]} : vector<128x256xf32> to vector<16x128xf32>
    %987 = vector.extract_strided_slice %985 {offsets = [0, 0], sizes = [16, 32], strides = [1, 1]} : vector<16x128xf32> to vector<16x32xf32>
    %988 = arith.negf %987 : vector<16x32xf32>
    %989 = math.exp %988 : vector<16x32xf32>
    %cst_35 = arith.constant 1.000000e+00 : f32
    %990 = vector.broadcast %cst_35 : f32 to vector<16x32xf32>
    %991 = arith.addf %990, %989 : vector<16x32xf32>
    %992 = arith.divf %990, %991 : vector<16x32xf32>
    %993 = vector.extract_strided_slice %985 {offsets = [0, 64], sizes = [16, 32], strides = [1, 1]} : vector<16x128xf32> to vector<16x32xf32>
    %994 = math.tanh %993 : vector<16x32xf32>
    %995 = vector.extract_strided_slice %985 {offsets = [0, 96], sizes = [16, 32], strides = [1, 1]} : vector<16x128xf32> to vector<16x32xf32>
    %996 = arith.negf %995 : vector<16x32xf32>
    %997 = math.exp %996 : vector<16x32xf32>
    %cst_36 = arith.constant 1.000000e+00 : f32
    %998 = vector.broadcast %cst_36 : f32 to vector<16x32xf32>
    %999 = arith.addf %998, %997 : vector<16x32xf32>
    %1000 = arith.divf %998, %999 : vector<16x32xf32>
    %1001 = arith.mulf %992, %994 : vector<16x32xf32>
    %1002 = math.tanh %1001 : vector<16x32xf32>
    %1003 = arith.mulf %1000, %1002 : vector<16x32xf32>
    %1004 = vector.extract_strided_slice %986 {offsets = [0, 0], sizes = [16, 32], strides = [1, 1]} : vector<16x128xf32> to vector<16x32xf32>
    %1005 = arith.negf %1004 : vector<16x32xf32>
    %1006 = math.exp %1005 : vector<16x32xf32>
    %cst_37 = arith.constant 1.000000e+00 : f32
    %1007 = vector.broadcast %cst_37 : f32 to vector<16x32xf32>
    %1008 = arith.addf %1007, %1006 : vector<16x32xf32>
    %1009 = arith.divf %1007, %1008 : vector<16x32xf32>
    %1010 = vector.extract_strided_slice %986 {offsets = [0, 64], sizes = [16, 32], strides = [1, 1]} : vector<16x128xf32> to vector<16x32xf32>
    %1011 = math.tanh %1010 : vector<16x32xf32>
    %1012 = vector.extract_strided_slice %986 {offsets = [0, 96], sizes = [16, 32], strides = [1, 1]} : vector<16x128xf32> to vector<16x32xf32>
    %1013 = arith.negf %1012 : vector<16x32xf32>
    %1014 = math.exp %1013 : vector<16x32xf32>
    %cst_38 = arith.constant 1.000000e+00 : f32
    %1015 = vector.broadcast %cst_38 : f32 to vector<16x32xf32>
    %1016 = arith.addf %1015, %1014 : vector<16x32xf32>
    %1017 = arith.divf %1015, %1016 : vector<16x32xf32>
    %1018 = arith.mulf %1009, %1011 : vector<16x32xf32>
    %1019 = math.tanh %1018 : vector<16x32xf32>
    %1020 = arith.mulf %1017, %1019 : vector<16x32xf32>
    %1021 = vector.extract_strided_slice %984 {offsets = [16, 0], sizes = [16, 128], strides = [1, 1]} : vector<128x256xf32> to vector<16x128xf32>
    %1022 = vector.extract_strided_slice %984 {offsets = [96, 128], sizes = [16, 128], strides = [1, 1]} : vector<128x256xf32> to vector<16x128xf32>
    %1023 = tpu.concatenate %1003, %1020 in 1 : vector<16x32xf32>, vector<16x32xf32> -> vector<16x64xf32>
    %cst_39 = arith.constant dense<0.000000e+00> : vector<16x256xf32>
    %1024 = tpu.matmul %1023, %978, %cst_39 {dimension_numbers = #tpu.dot_dimension_numbers<[1], [0], [0], [1], [0, 0, 1, 1], [], []>} : vector<16x64xf32>, vector<64x256xf32>, vector<16x256xf32> -> vector<16x256xf32>
    %1025 = vector.extract_strided_slice %1024 {offsets = [0, 0], sizes = [16, 128], strides = [1, 1]} : vector<16x256xf32> to vector<16x128xf32>
    %1026 = arith.addf %1021, %1025 : vector<16x128xf32>
    %1027 = vector.extract_strided_slice %1024 {offsets = [0, 128], sizes = [16, 128], strides = [1, 1]} : vector<16x256xf32> to vector<16x128xf32>
    %1028 = arith.addf %1022, %1027 : vector<16x128xf32>
    %1029 = vector.extract_strided_slice %1026 {offsets = [0, 0], sizes = [16, 32], strides = [1, 1]} : vector<16x128xf32> to vector<16x32xf32>
    %1030 = arith.negf %1029 : vector<16x32xf32>
    %1031 = math.exp %1030 : vector<16x32xf32>
    %cst_40 = arith.constant 1.000000e+00 : f32
    %1032 = vector.broadcast %cst_40 : f32 to vector<16x32xf32>
    %1033 = arith.addf %1032, %1031 : vector<16x32xf32>
    %1034 = arith.divf %1032, %1033 : vector<16x32xf32>
    %1035 = vector.extract_strided_slice %1026 {offsets = [0, 32], sizes = [16, 32], strides = [1, 1]} : vector<16x128xf32> to vector<16x32xf32>
    %1036 = arith.negf %1035 : vector<16x32xf32>
    %1037 = math.exp %1036 : vector<16x32xf32>
    %cst_41 = arith.constant 1.000000e+00 : f32
    %1038 = vector.broadcast %cst_41 : f32 to vector<16x32xf32>
    %1039 = arith.addf %1038, %1037 : vector<16x32xf32>
    %1040 = arith.divf %1038, %1039 : vector<16x32xf32>
    %1041 = vector.extract_strided_slice %1026 {offsets = [0, 64], sizes = [16, 32], strides = [1, 1]} : vector<16x128xf32> to vector<16x32xf32>
    %1042 = math.tanh %1041 : vector<16x32xf32>
    %1043 = vector.extract_strided_slice %1026 {offsets = [0, 96], sizes = [16, 32], strides = [1, 1]} : vector<16x128xf32> to vector<16x32xf32>
    %1044 = arith.negf %1043 : vector<16x32xf32>
    %1045 = math.exp %1044 : vector<16x32xf32>
    %cst_42 = arith.constant 1.000000e+00 : f32
    %1046 = vector.broadcast %cst_42 : f32 to vector<16x32xf32>
    %1047 = arith.addf %1046, %1045 : vector<16x32xf32>
    %1048 = arith.divf %1046, %1047 : vector<16x32xf32>
    %1049 = arith.mulf %1040, %1001 : vector<16x32xf32>
    %1050 = arith.mulf %1034, %1042 : vector<16x32xf32>
    %1051 = arith.addf %1049, %1050 : vector<16x32xf32>
    %1052 = math.tanh %1051 : vector<16x32xf32>
    %1053 = arith.mulf %1048, %1052 : vector<16x32xf32>
    %1054 = vector.extract_strided_slice %1028 {offsets = [0, 0], sizes = [16, 32], strides = [1, 1]} : vector<16x128xf32> to vector<16x32xf32>
    %1055 = arith.negf %1054 : vector<16x32xf32>
    %1056 = math.exp %1055 : vector<16x32xf32>
    %cst_43 = arith.constant 1.000000e+00 : f32
    %1057 = vector.broadcast %cst_43 : f32 to vector<16x32xf32>
    %1058 = arith.addf %1057, %1056 : vector<16x32xf32>
    %1059 = arith.divf %1057, %1058 : vector<16x32xf32>
    %1060 = vector.extract_strided_slice %1028 {offsets = [0, 32], sizes = [16, 32], strides = [1, 1]} : vector<16x128xf32> to vector<16x32xf32>
    %1061 = arith.negf %1060 : vector<16x32xf32>
    %1062 = math.exp %1061 : vector<16x32xf32>
    %cst_44 = arith.constant 1.000000e+00 : f32
    %1063 = vector.broadcast %cst_44 : f32 to vector<16x32xf32>
    %1064 = arith.addf %1063, %1062 : vector<16x32xf32>
    %1065 = arith.divf %1063, %1064 : vector<16x32xf32>
    %1066 = vector.extract_strided_slice %1028 {offsets = [0, 64], sizes = [16, 32], strides = [1, 1]} : vector<16x128xf32> to vector<16x32xf32>
    %1067 = math.tanh %1066 : vector<16x32xf32>
    %1068 = vector.extract_strided_slice %1028 {offsets = [0, 96], sizes = [16, 32], strides = [1, 1]} : vector<16x128xf32> to vector<16x32xf32>
    %1069 = arith.negf %1068 : vector<16x32xf32>
    %1070 = math.exp %1069 : vector<16x32xf32>
    %cst_45 = arith.constant 1.000000e+00 : f32
    %1071 = vector.broadcast %cst_45 : f32 to vector<16x32xf32>
    %1072 = arith.addf %1071, %1070 : vector<16x32xf32>
    %1073 = arith.divf %1071, %1072 : vector<16x32xf32>
    %1074 = arith.mulf %1065, %1018 : vector<16x32xf32>
    %1075 = arith.mulf %1059, %1067 : vector<16x32xf32>
    %1076 = arith.addf %1074, %1075 : vector<16x32xf32>
    %1077 = math.tanh %1076 : vector<16x32xf32>
    %1078 = arith.mulf %1073, %1077 : vector<16x32xf32>
    %1079 = vector.extract_strided_slice %984 {offsets = [32, 0], sizes = [16, 128], strides = [1, 1]} : vector<128x256xf32> to vector<16x128xf32>
    %1080 = vector.extract_strided_slice %984 {offsets = [80, 128], sizes = [16, 128], strides = [1, 1]} : vector<128x256xf32> to vector<16x128xf32>
    %1081 = tpu.concatenate %1053, %1078 in 1 : vector<16x32xf32>, vector<16x32xf32> -> vector<16x64xf32>
    %cst_46 = arith.constant dense<0.000000e+00> : vector<16x256xf32>
    %1082 = tpu.matmul %1081, %978, %cst_46 {dimension_numbers = #tpu.dot_dimension_numbers<[1], [0], [0], [1], [0, 0, 1, 1], [], []>} : vector<16x64xf32>, vector<64x256xf32>, vector<16x256xf32> -> vector<16x256xf32>
    %1083 = vector.extract_strided_slice %1082 {offsets = [0, 0], sizes = [16, 128], strides = [1, 1]} : vector<16x256xf32> to vector<16x128xf32>
    %1084 = arith.addf %1079, %1083 : vector<16x128xf32>
    %1085 = vector.extract_strided_slice %1082 {offsets = [0, 128], sizes = [16, 128], strides = [1, 1]} : vector<16x256xf32> to vector<16x128xf32>
    %1086 = arith.addf %1080, %1085 : vector<16x128xf32>
    %1087 = vector.extract_strided_slice %1084 {offsets = [0, 0], sizes = [16, 32], strides = [1, 1]} : vector<16x128xf32> to vector<16x32xf32>
    %1088 = arith.negf %1087 : vector<16x32xf32>
    %1089 = math.exp %1088 : vector<16x32xf32>
    %cst_47 = arith.constant 1.000000e+00 : f32
    %1090 = vector.broadcast %cst_47 : f32 to vector<16x32xf32>
    %1091 = arith.addf %1090, %1089 : vector<16x32xf32>
    %1092 = arith.divf %1090, %1091 : vector<16x32xf32>
    %1093 = vector.extract_strided_slice %1084 {offsets = [0, 32], sizes = [16, 32], strides = [1, 1]} : vector<16x128xf32> to vector<16x32xf32>
    %1094 = arith.negf %1093 : vector<16x32xf32>
    %1095 = math.exp %1094 : vector<16x32xf32>
    %cst_48 = arith.constant 1.000000e+00 : f32
    %1096 = vector.broadcast %cst_48 : f32 to vector<16x32xf32>
    %1097 = arith.addf %1096, %1095 : vector<16x32xf32>
    %1098 = arith.divf %1096, %1097 : vector<16x32xf32>
    %1099 = vector.extract_strided_slice %1084 {offsets = [0, 64], sizes = [16, 32], strides = [1, 1]} : vector<16x128xf32> to vector<16x32xf32>
    %1100 = math.tanh %1099 : vector<16x32xf32>
    %1101 = vector.extract_strided_slice %1084 {offsets = [0, 96], sizes = [16, 32], strides = [1, 1]} : vector<16x128xf32> to vector<16x32xf32>
    %1102 = arith.negf %1101 : vector<16x32xf32>
    %1103 = math.exp %1102 : vector<16x32xf32>
    %cst_49 = arith.constant 1.000000e+00 : f32
    %1104 = vector.broadcast %cst_49 : f32 to vector<16x32xf32>
    %1105 = arith.addf %1104, %1103 : vector<16x32xf32>
    %1106 = arith.divf %1104, %1105 : vector<16x32xf32>
    %1107 = arith.mulf %1098, %1051 : vector<16x32xf32>
    %1108 = arith.mulf %1092, %1100 : vector<16x32xf32>
    %1109 = arith.addf %1107, %1108 : vector<16x32xf32>
    %1110 = math.tanh %1109 : vector<16x32xf32>
    %1111 = arith.mulf %1106, %1110 : vector<16x32xf32>
    %1112 = vector.extract_strided_slice %1086 {offsets = [0, 0], sizes = [16, 32], strides = [1, 1]} : vector<16x128xf32> to vector<16x32xf32>
    %1113 = arith.negf %1112 : vector<16x32xf32>
    %1114 = math.exp %1113 : vector<16x32xf32>
    %cst_50 = arith.constant 1.000000e+00 : f32
    %1115 = vector.broadcast %cst_50 : f32 to vector<16x32xf32>
    %1116 = arith.addf %1115, %1114 : vector<16x32xf32>
    %1117 = arith.divf %1115, %1116 : vector<16x32xf32>
    %1118 = vector.extract_strided_slice %1086 {offsets = [0, 32], sizes = [16, 32], strides = [1, 1]} : vector<16x128xf32> to vector<16x32xf32>
    %1119 = arith.negf %1118 : vector<16x32xf32>
    %1120 = math.exp %1119 : vector<16x32xf32>
    %cst_51 = arith.constant 1.000000e+00 : f32
    %1121 = vector.broadcast %cst_51 : f32 to vector<16x32xf32>
    %1122 = arith.addf %1121, %1120 : vector<16x32xf32>
    %1123 = arith.divf %1121, %1122 : vector<16x32xf32>
    %1124 = vector.extract_strided_slice %1086 {offsets = [0, 64], sizes = [16, 32], strides = [1, 1]} : vector<16x128xf32> to vector<16x32xf32>
    %1125 = math.tanh %1124 : vector<16x32xf32>
    %1126 = vector.extract_strided_slice %1086 {offsets = [0, 96], sizes = [16, 32], strides = [1, 1]} : vector<16x128xf32> to vector<16x32xf32>
    %1127 = arith.negf %1126 : vector<16x32xf32>
    %1128 = math.exp %1127 : vector<16x32xf32>
    %cst_52 = arith.constant 1.000000e+00 : f32
    %1129 = vector.broadcast %cst_52 : f32 to vector<16x32xf32>
    %1130 = arith.addf %1129, %1128 : vector<16x32xf32>
    %1131 = arith.divf %1129, %1130 : vector<16x32xf32>
    %1132 = arith.mulf %1123, %1076 : vector<16x32xf32>
    %1133 = arith.mulf %1117, %1125 : vector<16x32xf32>
    %1134 = arith.addf %1132, %1133 : vector<16x32xf32>
    %1135 = math.tanh %1134 : vector<16x32xf32>
    %1136 = arith.mulf %1131, %1135 : vector<16x32xf32>
    %1137 = vector.extract_strided_slice %984 {offsets = [48, 0], sizes = [16, 128], strides = [1, 1]} : vector<128x256xf32> to vector<16x128xf32>
    %1138 = vector.extract_strided_slice %984 {offsets = [64, 128], sizes = [16, 128], strides = [1, 1]} : vector<128x256xf32> to vector<16x128xf32>
    %1139 = tpu.concatenate %1111, %1136 in 1 : vector<16x32xf32>, vector<16x32xf32> -> vector<16x64xf32>
    %cst_53 = arith.constant dense<0.000000e+00> : vector<16x256xf32>
    %1140 = tpu.matmul %1139, %978, %cst_53 {dimension_numbers = #tpu.dot_dimension_numbers<[1], [0], [0], [1], [0, 0, 1, 1], [], []>} : vector<16x64xf32>, vector<64x256xf32>, vector<16x256xf32> -> vector<16x256xf32>
    %1141 = vector.extract_strided_slice %1140 {offsets = [0, 0], sizes = [16, 128], strides = [1, 1]} : vector<16x256xf32> to vector<16x128xf32>
    %1142 = arith.addf %1137, %1141 : vector<16x128xf32>
    %1143 = vector.extract_strided_slice %1140 {offsets = [0, 128], sizes = [16, 128], strides = [1, 1]} : vector<16x256xf32> to vector<16x128xf32>
    %1144 = arith.addf %1138, %1143 : vector<16x128xf32>
    %1145 = vector.extract_strided_slice %1142 {offsets = [0, 0], sizes = [16, 32], strides = [1, 1]} : vector<16x128xf32> to vector<16x32xf32>
    %1146 = arith.negf %1145 : vector<16x32xf32>
    %1147 = math.exp %1146 : vector<16x32xf32>
    %cst_54 = arith.constant 1.000000e+00 : f32
    %1148 = vector.broadcast %cst_54 : f32 to vector<16x32xf32>
    %1149 = arith.addf %1148, %1147 : vector<16x32xf32>
    %1150 = arith.divf %1148, %1149 : vector<16x32xf32>
    %1151 = vector.extract_strided_slice %1142 {offsets = [0, 32], sizes = [16, 32], strides = [1, 1]} : vector<16x128xf32> to vector<16x32xf32>
    %1152 = arith.negf %1151 : vector<16x32xf32>
    %1153 = math.exp %1152 : vector<16x32xf32>
    %cst_55 = arith.constant 1.000000e+00 : f32
    %1154 = vector.broadcast %cst_55 : f32 to vector<16x32xf32>
    %1155 = arith.addf %1154, %1153 : vector<16x32xf32>
    %1156 = arith.divf %1154, %1155 : vector<16x32xf32>
    %1157 = vector.extract_strided_slice %1142 {offsets = [0, 64], sizes = [16, 32], strides = [1, 1]} : vector<16x128xf32> to vector<16x32xf32>
    %1158 = math.tanh %1157 : vector<16x32xf32>
    %1159 = vector.extract_strided_slice %1142 {offsets = [0, 96], sizes = [16, 32], strides = [1, 1]} : vector<16x128xf32> to vector<16x32xf32>
    %1160 = arith.negf %1159 : vector<16x32xf32>
    %1161 = math.exp %1160 : vector<16x32xf32>
    %cst_56 = arith.constant 1.000000e+00 : f32
    %1162 = vector.broadcast %cst_56 : f32 to vector<16x32xf32>
    %1163 = arith.addf %1162, %1161 : vector<16x32xf32>
    %1164 = arith.divf %1162, %1163 : vector<16x32xf32>
    %1165 = arith.mulf %1156, %1109 : vector<16x32xf32>
    %1166 = arith.mulf %1150, %1158 : vector<16x32xf32>
    %1167 = arith.addf %1165, %1166 : vector<16x32xf32>
    %1168 = math.tanh %1167 : vector<16x32xf32>
    %1169 = arith.mulf %1164, %1168 : vector<16x32xf32>
    %1170 = vector.extract_strided_slice %1144 {offsets = [0, 0], sizes = [16, 32], strides = [1, 1]} : vector<16x128xf32> to vector<16x32xf32>
    %1171 = arith.negf %1170 : vector<16x32xf32>
    %1172 = math.exp %1171 : vector<16x32xf32>
    %cst_57 = arith.constant 1.000000e+00 : f32
    %1173 = vector.broadcast %cst_57 : f32 to vector<16x32xf32>
    %1174 = arith.addf %1173, %1172 : vector<16x32xf32>
    %1175 = arith.divf %1173, %1174 : vector<16x32xf32>
    %1176 = vector.extract_strided_slice %1144 {offsets = [0, 32], sizes = [16, 32], strides = [1, 1]} : vector<16x128xf32> to vector<16x32xf32>
    %1177 = arith.negf %1176 : vector<16x32xf32>
    %1178 = math.exp %1177 : vector<16x32xf32>
    %cst_58 = arith.constant 1.000000e+00 : f32
    %1179 = vector.broadcast %cst_58 : f32 to vector<16x32xf32>
    %1180 = arith.addf %1179, %1178 : vector<16x32xf32>
    %1181 = arith.divf %1179, %1180 : vector<16x32xf32>
    %1182 = vector.extract_strided_slice %1144 {offsets = [0, 64], sizes = [16, 32], strides = [1, 1]} : vector<16x128xf32> to vector<16x32xf32>
    %1183 = math.tanh %1182 : vector<16x32xf32>
    %1184 = vector.extract_strided_slice %1144 {offsets = [0, 96], sizes = [16, 32], strides = [1, 1]} : vector<16x128xf32> to vector<16x32xf32>
    %1185 = arith.negf %1184 : vector<16x32xf32>
    %1186 = math.exp %1185 : vector<16x32xf32>
    %cst_59 = arith.constant 1.000000e+00 : f32
    %1187 = vector.broadcast %cst_59 : f32 to vector<16x32xf32>
    %1188 = arith.addf %1187, %1186 : vector<16x32xf32>
    %1189 = arith.divf %1187, %1188 : vector<16x32xf32>
    %1190 = arith.mulf %1181, %1134 : vector<16x32xf32>
    %1191 = arith.mulf %1175, %1183 : vector<16x32xf32>
    %1192 = arith.addf %1190, %1191 : vector<16x32xf32>
    %1193 = math.tanh %1192 : vector<16x32xf32>
    %1194 = arith.mulf %1189, %1193 : vector<16x32xf32>
    %1195 = vector.extract_strided_slice %984 {offsets = [64, 0], sizes = [16, 128], strides = [1, 1]} : vector<128x256xf32> to vector<16x128xf32>
    %1196 = vector.extract_strided_slice %984 {offsets = [48, 128], sizes = [16, 128], strides = [1, 1]} : vector<128x256xf32> to vector<16x128xf32>
    %1197 = tpu.concatenate %1169, %1194 in 1 : vector<16x32xf32>, vector<16x32xf32> -> vector<16x64xf32>
    %cst_60 = arith.constant dense<0.000000e+00> : vector<16x256xf32>
    %1198 = tpu.matmul %1197, %978, %cst_60 {dimension_numbers = #tpu.dot_dimension_numbers<[1], [0], [0], [1], [0, 0, 1, 1], [], []>} : vector<16x64xf32>, vector<64x256xf32>, vector<16x256xf32> -> vector<16x256xf32>
    %1199 = vector.extract_strided_slice %1198 {offsets = [0, 0], sizes = [16, 128], strides = [1, 1]} : vector<16x256xf32> to vector<16x128xf32>
    %1200 = arith.addf %1195, %1199 : vector<16x128xf32>
    %1201 = vector.extract_strided_slice %1198 {offsets = [0, 128], sizes = [16, 128], strides = [1, 1]} : vector<16x256xf32> to vector<16x128xf32>
    %1202 = arith.addf %1196, %1201 : vector<16x128xf32>
    %1203 = vector.extract_strided_slice %1200 {offsets = [0, 0], sizes = [16, 32], strides = [1, 1]} : vector<16x128xf32> to vector<16x32xf32>
    %1204 = arith.negf %1203 : vector<16x32xf32>
    %1205 = math.exp %1204 : vector<16x32xf32>
    %cst_61 = arith.constant 1.000000e+00 : f32
    %1206 = vector.broadcast %cst_61 : f32 to vector<16x32xf32>
    %1207 = arith.addf %1206, %1205 : vector<16x32xf32>
    %1208 = arith.divf %1206, %1207 : vector<16x32xf32>
    %1209 = vector.extract_strided_slice %1200 {offsets = [0, 32], sizes = [16, 32], strides = [1, 1]} : vector<16x128xf32> to vector<16x32xf32>
    %1210 = arith.negf %1209 : vector<16x32xf32>
    %1211 = math.exp %1210 : vector<16x32xf32>
    %cst_62 = arith.constant 1.000000e+00 : f32
    %1212 = vector.broadcast %cst_62 : f32 to vector<16x32xf32>
    %1213 = arith.addf %1212, %1211 : vector<16x32xf32>
    %1214 = arith.divf %1212, %1213 : vector<16x32xf32>
    %1215 = vector.extract_strided_slice %1200 {offsets = [0, 64], sizes = [16, 32], strides = [1, 1]} : vector<16x128xf32> to vector<16x32xf32>
    %1216 = math.tanh %1215 : vector<16x32xf32>
    %1217 = vector.extract_strided_slice %1200 {offsets = [0, 96], sizes = [16, 32], strides = [1, 1]} : vector<16x128xf32> to vector<16x32xf32>
    %1218 = arith.negf %1217 : vector<16x32xf32>
    %1219 = math.exp %1218 : vector<16x32xf32>
    %cst_63 = arith.constant 1.000000e+00 : f32
    %1220 = vector.broadcast %cst_63 : f32 to vector<16x32xf32>
    %1221 = arith.addf %1220, %1219 : vector<16x32xf32>
    %1222 = arith.divf %1220, %1221 : vector<16x32xf32>
    %1223 = arith.mulf %1214, %1167 : vector<16x32xf32>
    %1224 = arith.mulf %1208, %1216 : vector<16x32xf32>
    %1225 = arith.addf %1223, %1224 : vector<16x32xf32>
    %1226 = math.tanh %1225 : vector<16x32xf32>
    %1227 = arith.mulf %1222, %1226 : vector<16x32xf32>
    %1228 = vector.extract_strided_slice %1202 {offsets = [0, 0], sizes = [16, 32], strides = [1, 1]} : vector<16x128xf32> to vector<16x32xf32>
    %1229 = arith.negf %1228 : vector<16x32xf32>
    %1230 = math.exp %1229 : vector<16x32xf32>
    %cst_64 = arith.constant 1.000000e+00 : f32
    %1231 = vector.broadcast %cst_64 : f32 to vector<16x32xf32>
    %1232 = arith.addf %1231, %1230 : vector<16x32xf32>
    %1233 = arith.divf %1231, %1232 : vector<16x32xf32>
    %1234 = vector.extract_strided_slice %1202 {offsets = [0, 32], sizes = [16, 32], strides = [1, 1]} : vector<16x128xf32> to vector<16x32xf32>
    %1235 = arith.negf %1234 : vector<16x32xf32>
    %1236 = math.exp %1235 : vector<16x32xf32>
    %cst_65 = arith.constant 1.000000e+00 : f32
    %1237 = vector.broadcast %cst_65 : f32 to vector<16x32xf32>
    %1238 = arith.addf %1237, %1236 : vector<16x32xf32>
    %1239 = arith.divf %1237, %1238 : vector<16x32xf32>
    %1240 = vector.extract_strided_slice %1202 {offsets = [0, 64], sizes = [16, 32], strides = [1, 1]} : vector<16x128xf32> to vector<16x32xf32>
    %1241 = math.tanh %1240 : vector<16x32xf32>
    %1242 = vector.extract_strided_slice %1202 {offsets = [0, 96], sizes = [16, 32], strides = [1, 1]} : vector<16x128xf32> to vector<16x32xf32>
    %1243 = arith.negf %1242 : vector<16x32xf32>
    %1244 = math.exp %1243 : vector<16x32xf32>
    %cst_66 = arith.constant 1.000000e+00 : f32
    %1245 = vector.broadcast %cst_66 : f32 to vector<16x32xf32>
    %1246 = arith.addf %1245, %1244 : vector<16x32xf32>
    %1247 = arith.divf %1245, %1246 : vector<16x32xf32>
    %1248 = arith.mulf %1239, %1192 : vector<16x32xf32>
    %1249 = arith.mulf %1233, %1241 : vector<16x32xf32>
    %1250 = arith.addf %1248, %1249 : vector<16x32xf32>
    %1251 = math.tanh %1250 : vector<16x32xf32>
    %1252 = arith.mulf %1247, %1251 : vector<16x32xf32>
    %1253 = vector.extract_strided_slice %984 {offsets = [80, 0], sizes = [16, 128], strides = [1, 1]} : vector<128x256xf32> to vector<16x128xf32>
    %1254 = vector.extract_strided_slice %984 {offsets = [32, 128], sizes = [16, 128], strides = [1, 1]} : vector<128x256xf32> to vector<16x128xf32>
    %1255 = tpu.concatenate %1227, %1252 in 1 : vector<16x32xf32>, vector<16x32xf32> -> vector<16x64xf32>
    %cst_67 = arith.constant dense<0.000000e+00> : vector<16x256xf32>
    %1256 = tpu.matmul %1255, %978, %cst_67 {dimension_numbers = #tpu.dot_dimension_numbers<[1], [0], [0], [1], [0, 0, 1, 1], [], []>} : vector<16x64xf32>, vector<64x256xf32>, vector<16x256xf32> -> vector<16x256xf32>
    %1257 = vector.extract_strided_slice %1256 {offsets = [0, 0], sizes = [16, 128], strides = [1, 1]} : vector<16x256xf32> to vector<16x128xf32>
    %1258 = arith.addf %1253, %1257 : vector<16x128xf32>
    %1259 = vector.extract_strided_slice %1256 {offsets = [0, 128], sizes = [16, 128], strides = [1, 1]} : vector<16x256xf32> to vector<16x128xf32>
    %1260 = arith.addf %1254, %1259 : vector<16x128xf32>
    %1261 = vector.extract_strided_slice %1258 {offsets = [0, 0], sizes = [16, 32], strides = [1, 1]} : vector<16x128xf32> to vector<16x32xf32>
    %1262 = arith.negf %1261 : vector<16x32xf32>
    %1263 = math.exp %1262 : vector<16x32xf32>
    %cst_68 = arith.constant 1.000000e+00 : f32
    %1264 = vector.broadcast %cst_68 : f32 to vector<16x32xf32>
    %1265 = arith.addf %1264, %1263 : vector<16x32xf32>
    %1266 = arith.divf %1264, %1265 : vector<16x32xf32>
    %1267 = vector.extract_strided_slice %1258 {offsets = [0, 32], sizes = [16, 32], strides = [1, 1]} : vector<16x128xf32> to vector<16x32xf32>
    %1268 = arith.negf %1267 : vector<16x32xf32>
    %1269 = math.exp %1268 : vector<16x32xf32>
    %cst_69 = arith.constant 1.000000e+00 : f32
    %1270 = vector.broadcast %cst_69 : f32 to vector<16x32xf32>
    %1271 = arith.addf %1270, %1269 : vector<16x32xf32>
    %1272 = arith.divf %1270, %1271 : vector<16x32xf32>
    %1273 = vector.extract_strided_slice %1258 {offsets = [0, 64], sizes = [16, 32], strides = [1, 1]} : vector<16x128xf32> to vector<16x32xf32>
    %1274 = math.tanh %1273 : vector<16x32xf32>
    %1275 = vector.extract_strided_slice %1258 {offsets = [0, 96], sizes = [16, 32], strides = [1, 1]} : vector<16x128xf32> to vector<16x32xf32>
    %1276 = arith.negf %1275 : vector<16x32xf32>
    %1277 = math.exp %1276 : vector<16x32xf32>
    %cst_70 = arith.constant 1.000000e+00 : f32
    %1278 = vector.broadcast %cst_70 : f32 to vector<16x32xf32>
    %1279 = arith.addf %1278, %1277 : vector<16x32xf32>
    %1280 = arith.divf %1278, %1279 : vector<16x32xf32>
    %1281 = arith.mulf %1272, %1225 : vector<16x32xf32>
    %1282 = arith.mulf %1266, %1274 : vector<16x32xf32>
    %1283 = arith.addf %1281, %1282 : vector<16x32xf32>
    %1284 = math.tanh %1283 : vector<16x32xf32>
    %1285 = arith.mulf %1280, %1284 : vector<16x32xf32>
    %1286 = vector.extract_strided_slice %1260 {offsets = [0, 0], sizes = [16, 32], strides = [1, 1]} : vector<16x128xf32> to vector<16x32xf32>
    %1287 = arith.negf %1286 : vector<16x32xf32>
    %1288 = math.exp %1287 : vector<16x32xf32>
    %cst_71 = arith.constant 1.000000e+00 : f32
    %1289 = vector.broadcast %cst_71 : f32 to vector<16x32xf32>
    %1290 = arith.addf %1289, %1288 : vector<16x32xf32>
    %1291 = arith.divf %1289, %1290 : vector<16x32xf32>
    %1292 = vector.extract_strided_slice %1260 {offsets = [0, 32], sizes = [16, 32], strides = [1, 1]} : vector<16x128xf32> to vector<16x32xf32>
    %1293 = arith.negf %1292 : vector<16x32xf32>
    %1294 = math.exp %1293 : vector<16x32xf32>
    %cst_72 = arith.constant 1.000000e+00 : f32
    %1295 = vector.broadcast %cst_72 : f32 to vector<16x32xf32>
    %1296 = arith.addf %1295, %1294 : vector<16x32xf32>
    %1297 = arith.divf %1295, %1296 : vector<16x32xf32>
    %1298 = vector.extract_strided_slice %1260 {offsets = [0, 64], sizes = [16, 32], strides = [1, 1]} : vector<16x128xf32> to vector<16x32xf32>
    %1299 = math.tanh %1298 : vector<16x32xf32>
    %1300 = vector.extract_strided_slice %1260 {offsets = [0, 96], sizes = [16, 32], strides = [1, 1]} : vector<16x128xf32> to vector<16x32xf32>
    %1301 = arith.negf %1300 : vector<16x32xf32>
    %1302 = math.exp %1301 : vector<16x32xf32>
    %cst_73 = arith.constant 1.000000e+00 : f32
    %1303 = vector.broadcast %cst_73 : f32 to vector<16x32xf32>
    %1304 = arith.addf %1303, %1302 : vector<16x32xf32>
    %1305 = arith.divf %1303, %1304 : vector<16x32xf32>
    %1306 = arith.mulf %1297, %1250 : vector<16x32xf32>
    %1307 = arith.mulf %1291, %1299 : vector<16x32xf32>
    %1308 = arith.addf %1306, %1307 : vector<16x32xf32>
    %1309 = math.tanh %1308 : vector<16x32xf32>
    %1310 = arith.mulf %1305, %1309 : vector<16x32xf32>
    %1311 = vector.extract_strided_slice %984 {offsets = [96, 0], sizes = [16, 128], strides = [1, 1]} : vector<128x256xf32> to vector<16x128xf32>
    %1312 = vector.extract_strided_slice %984 {offsets = [16, 128], sizes = [16, 128], strides = [1, 1]} : vector<128x256xf32> to vector<16x128xf32>
    %1313 = tpu.concatenate %1285, %1310 in 1 : vector<16x32xf32>, vector<16x32xf32> -> vector<16x64xf32>
    %cst_74 = arith.constant dense<0.000000e+00> : vector<16x256xf32>
    %1314 = tpu.matmul %1313, %978, %cst_74 {dimension_numbers = #tpu.dot_dimension_numbers<[1], [0], [0], [1], [0, 0, 1, 1], [], []>} : vector<16x64xf32>, vector<64x256xf32>, vector<16x256xf32> -> vector<16x256xf32>
    %1315 = vector.extract_strided_slice %1314 {offsets = [0, 0], sizes = [16, 128], strides = [1, 1]} : vector<16x256xf32> to vector<16x128xf32>
    %1316 = arith.addf %1311, %1315 : vector<16x128xf32>
    %1317 = vector.extract_strided_slice %1314 {offsets = [0, 128], sizes = [16, 128], strides = [1, 1]} : vector<16x256xf32> to vector<16x128xf32>
    %1318 = arith.addf %1312, %1317 : vector<16x128xf32>
    %1319 = vector.extract_strided_slice %1316 {offsets = [0, 0], sizes = [16, 32], strides = [1, 1]} : vector<16x128xf32> to vector<16x32xf32>
    %1320 = arith.negf %1319 : vector<16x32xf32>
    %1321 = math.exp %1320 : vector<16x32xf32>
    %cst_75 = arith.constant 1.000000e+00 : f32
    %1322 = vector.broadcast %cst_75 : f32 to vector<16x32xf32>
    %1323 = arith.addf %1322, %1321 : vector<16x32xf32>
    %1324 = arith.divf %1322, %1323 : vector<16x32xf32>
    %1325 = vector.extract_strided_slice %1316 {offsets = [0, 32], sizes = [16, 32], strides = [1, 1]} : vector<16x128xf32> to vector<16x32xf32>
    %1326 = arith.negf %1325 : vector<16x32xf32>
    %1327 = math.exp %1326 : vector<16x32xf32>
    %cst_76 = arith.constant 1.000000e+00 : f32
    %1328 = vector.broadcast %cst_76 : f32 to vector<16x32xf32>
    %1329 = arith.addf %1328, %1327 : vector<16x32xf32>
    %1330 = arith.divf %1328, %1329 : vector<16x32xf32>
    %1331 = vector.extract_strided_slice %1316 {offsets = [0, 64], sizes = [16, 32], strides = [1, 1]} : vector<16x128xf32> to vector<16x32xf32>
    %1332 = math.tanh %1331 : vector<16x32xf32>
    %1333 = vector.extract_strided_slice %1316 {offsets = [0, 96], sizes = [16, 32], strides = [1, 1]} : vector<16x128xf32> to vector<16x32xf32>
    %1334 = arith.negf %1333 : vector<16x32xf32>
    %1335 = math.exp %1334 : vector<16x32xf32>
    %cst_77 = arith.constant 1.000000e+00 : f32
    %1336 = vector.broadcast %cst_77 : f32 to vector<16x32xf32>
    %1337 = arith.addf %1336, %1335 : vector<16x32xf32>
    %1338 = arith.divf %1336, %1337 : vector<16x32xf32>
    %1339 = arith.mulf %1330, %1283 : vector<16x32xf32>
    %1340 = arith.mulf %1324, %1332 : vector<16x32xf32>
    %1341 = arith.addf %1339, %1340 : vector<16x32xf32>
    %1342 = math.tanh %1341 : vector<16x32xf32>
    %1343 = arith.mulf %1338, %1342 : vector<16x32xf32>
    %1344 = vector.extract_strided_slice %1318 {offsets = [0, 0], sizes = [16, 32], strides = [1, 1]} : vector<16x128xf32> to vector<16x32xf32>
    %1345 = arith.negf %1344 : vector<16x32xf32>
    %1346 = math.exp %1345 : vector<16x32xf32>
    %cst_78 = arith.constant 1.000000e+00 : f32
    %1347 = vector.broadcast %cst_78 : f32 to vector<16x32xf32>
    %1348 = arith.addf %1347, %1346 : vector<16x32xf32>
    %1349 = arith.divf %1347, %1348 : vector<16x32xf32>
    %1350 = vector.extract_strided_slice %1318 {offsets = [0, 32], sizes = [16, 32], strides = [1, 1]} : vector<16x128xf32> to vector<16x32xf32>
    %1351 = arith.negf %1350 : vector<16x32xf32>
    %1352 = math.exp %1351 : vector<16x32xf32>
    %cst_79 = arith.constant 1.000000e+00 : f32
    %1353 = vector.broadcast %cst_79 : f32 to vector<16x32xf32>
    %1354 = arith.addf %1353, %1352 : vector<16x32xf32>
    %1355 = arith.divf %1353, %1354 : vector<16x32xf32>
    %1356 = vector.extract_strided_slice %1318 {offsets = [0, 64], sizes = [16, 32], strides = [1, 1]} : vector<16x128xf32> to vector<16x32xf32>
    %1357 = math.tanh %1356 : vector<16x32xf32>
    %1358 = vector.extract_strided_slice %1318 {offsets = [0, 96], sizes = [16, 32], strides = [1, 1]} : vector<16x128xf32> to vector<16x32xf32>
    %1359 = arith.negf %1358 : vector<16x32xf32>
    %1360 = math.exp %1359 : vector<16x32xf32>
    %cst_80 = arith.constant 1.000000e+00 : f32
    %1361 = vector.broadcast %cst_80 : f32 to vector<16x32xf32>
    %1362 = arith.addf %1361, %1360 : vector<16x32xf32>
    %1363 = arith.divf %1361, %1362 : vector<16x32xf32>
    %1364 = arith.mulf %1355, %1308 : vector<16x32xf32>
    %1365 = arith.mulf %1349, %1357 : vector<16x32xf32>
    %1366 = arith.addf %1364, %1365 : vector<16x32xf32>
    %1367 = math.tanh %1366 : vector<16x32xf32>
    %1368 = arith.mulf %1363, %1367 : vector<16x32xf32>
    %1369 = vector.extract_strided_slice %984 {offsets = [112, 0], sizes = [16, 128], strides = [1, 1]} : vector<128x256xf32> to vector<16x128xf32>
    %1370 = vector.extract_strided_slice %984 {offsets = [0, 128], sizes = [16, 128], strides = [1, 1]} : vector<128x256xf32> to vector<16x128xf32>
    %1371 = tpu.concatenate %1343, %1368 in 1 : vector<16x32xf32>, vector<16x32xf32> -> vector<16x64xf32>
    %cst_81 = arith.constant dense<0.000000e+00> : vector<16x256xf32>
    %1372 = tpu.matmul %1371, %978, %cst_81 {dimension_numbers = #tpu.dot_dimension_numbers<[1], [0], [0], [1], [0, 0, 1, 1], [], []>} : vector<16x64xf32>, vector<64x256xf32>, vector<16x256xf32> -> vector<16x256xf32>
    %1373 = vector.extract_strided_slice %1372 {offsets = [0, 0], sizes = [16, 128], strides = [1, 1]} : vector<16x256xf32> to vector<16x128xf32>
    %1374 = arith.addf %1369, %1373 : vector<16x128xf32>
    %1375 = vector.extract_strided_slice %1372 {offsets = [0, 128], sizes = [16, 128], strides = [1, 1]} : vector<16x256xf32> to vector<16x128xf32>
    %1376 = arith.addf %1370, %1375 : vector<16x128xf32>
    %1377 = vector.extract_strided_slice %1374 {offsets = [0, 0], sizes = [16, 32], strides = [1, 1]} : vector<16x128xf32> to vector<16x32xf32>
    %1378 = arith.negf %1377 : vector<16x32xf32>
    %1379 = math.exp %1378 : vector<16x32xf32>
    %cst_82 = arith.constant 1.000000e+00 : f32
    %1380 = vector.broadcast %cst_82 : f32 to vector<16x32xf32>
    %1381 = arith.addf %1380, %1379 : vector<16x32xf32>
    %1382 = arith.divf %1380, %1381 : vector<16x32xf32>
    %1383 = vector.extract_strided_slice %1374 {offsets = [0, 32], sizes = [16, 32], strides = [1, 1]} : vector<16x128xf32> to vector<16x32xf32>
    %1384 = arith.negf %1383 : vector<16x32xf32>
    %1385 = math.exp %1384 : vector<16x32xf32>
    %cst_83 = arith.constant 1.000000e+00 : f32
    %1386 = vector.broadcast %cst_83 : f32 to vector<16x32xf32>
    %1387 = arith.addf %1386, %1385 : vector<16x32xf32>
    %1388 = arith.divf %1386, %1387 : vector<16x32xf32>
    %1389 = vector.extract_strided_slice %1374 {offsets = [0, 64], sizes = [16, 32], strides = [1, 1]} : vector<16x128xf32> to vector<16x32xf32>
    %1390 = math.tanh %1389 : vector<16x32xf32>
    %1391 = vector.extract_strided_slice %1374 {offsets = [0, 96], sizes = [16, 32], strides = [1, 1]} : vector<16x128xf32> to vector<16x32xf32>
    %1392 = arith.negf %1391 : vector<16x32xf32>
    %1393 = math.exp %1392 : vector<16x32xf32>
    %cst_84 = arith.constant 1.000000e+00 : f32
    %1394 = vector.broadcast %cst_84 : f32 to vector<16x32xf32>
    %1395 = arith.addf %1394, %1393 : vector<16x32xf32>
    %1396 = arith.divf %1394, %1395 : vector<16x32xf32>
    %1397 = arith.mulf %1388, %1341 : vector<16x32xf32>
    %1398 = arith.mulf %1382, %1390 : vector<16x32xf32>
    %1399 = arith.addf %1397, %1398 : vector<16x32xf32>
    %1400 = math.tanh %1399 : vector<16x32xf32>
    %1401 = arith.mulf %1396, %1400 : vector<16x32xf32>
    %1402 = vector.extract_strided_slice %1376 {offsets = [0, 0], sizes = [16, 32], strides = [1, 1]} : vector<16x128xf32> to vector<16x32xf32>
    %1403 = arith.negf %1402 : vector<16x32xf32>
    %1404 = math.exp %1403 : vector<16x32xf32>
    %cst_85 = arith.constant 1.000000e+00 : f32
    %1405 = vector.broadcast %cst_85 : f32 to vector<16x32xf32>
    %1406 = arith.addf %1405, %1404 : vector<16x32xf32>
    %1407 = arith.divf %1405, %1406 : vector<16x32xf32>
    %1408 = vector.extract_strided_slice %1376 {offsets = [0, 32], sizes = [16, 32], strides = [1, 1]} : vector<16x128xf32> to vector<16x32xf32>
    %1409 = arith.negf %1408 : vector<16x32xf32>
    %1410 = math.exp %1409 : vector<16x32xf32>
    %cst_86 = arith.constant 1.000000e+00 : f32
    %1411 = vector.broadcast %cst_86 : f32 to vector<16x32xf32>
    %1412 = arith.addf %1411, %1410 : vector<16x32xf32>
    %1413 = arith.divf %1411, %1412 : vector<16x32xf32>
    %1414 = vector.extract_strided_slice %1376 {offsets = [0, 64], sizes = [16, 32], strides = [1, 1]} : vector<16x128xf32> to vector<16x32xf32>
    %1415 = math.tanh %1414 : vector<16x32xf32>
    %1416 = vector.extract_strided_slice %1376 {offsets = [0, 96], sizes = [16, 32], strides = [1, 1]} : vector<16x128xf32> to vector<16x32xf32>
    %1417 = arith.negf %1416 : vector<16x32xf32>
    %1418 = math.exp %1417 : vector<16x32xf32>
    %cst_87 = arith.constant 1.000000e+00 : f32
    %1419 = vector.broadcast %cst_87 : f32 to vector<16x32xf32>
    %1420 = arith.addf %1419, %1418 : vector<16x32xf32>
    %1421 = arith.divf %1419, %1420 : vector<16x32xf32>
    %1422 = arith.mulf %1413, %1366 : vector<16x32xf32>
    %1423 = arith.mulf %1407, %1415 : vector<16x32xf32>
    %1424 = arith.addf %1422, %1423 : vector<16x32xf32>
    %1425 = math.tanh %1424 : vector<16x32xf32>
    %1426 = arith.mulf %1421, %1425 : vector<16x32xf32>
    %1427 = tpu.concatenate %1401, %1426 in 1 : vector<16x32xf32>, vector<16x32xf32> -> vector<16x64xf32>
    %c0_88 = arith.constant 0 : index
    %c0_89 = arith.constant 0 : index
    %1428 = vector.load %arg7[%c0_88, %c0_89] : memref<64x64xf32, #tpu.memory_space<vmem>>, vector<64x64xf32>
    %cst_90 = arith.constant dense<0.000000e+00> : vector<16x64xf32>
    %1429 = tpu.matmul %1427, %1428, %cst_90 {dimension_numbers = #tpu.dot_dimension_numbers<[1], [0], [0], [1], [0, 0, 1, 1], [], []>} : vector<16x64xf32>, vector<64x64xf32>, vector<16x64xf32> -> vector<16x64xf32>
    %c0_91 = arith.constant 0 : index
    %c0_92 = arith.constant 0 : index
    %1430 = vector.load %arg8[%c0_91, %c0_92] : memref<1x64xf32, #tpu.memory_space<vmem>>, vector<1x64xf32>
    %1431 = vector.broadcast %1430 : vector<1x64xf32> to vector<16x64xf32>
    %1432 = arith.addf %1429, %1431 : vector<16x64xf32>
    %1433 = vector.extract_strided_slice %1432 {offsets = [0, 0], sizes = [16, 32], strides = [1, 1]} : vector<16x64xf32> to vector<16x32xf32>
    %1434 = vector.extract_strided_slice %1433 {offsets = [0, 0], sizes = [16, 8], strides = [1, 1]} : vector<16x32xf32> to vector<16x8xf32>
    %1435 = arith.negf %1434 : vector<16x8xf32>
    %1436 = math.exp %1435 : vector<16x8xf32>
    %cst_93 = arith.constant 1.000000e+00 : f32
    %1437 = vector.broadcast %cst_93 : f32 to vector<16x8xf32>
    %1438 = arith.addf %1437, %1436 : vector<16x8xf32>
    %1439 = arith.divf %1437, %1438 : vector<16x8xf32>
    %1440 = vector.extract_strided_slice %1433 {offsets = [0, 16], sizes = [16, 8], strides = [1, 1]} : vector<16x32xf32> to vector<16x8xf32>
    %1441 = math.tanh %1440 : vector<16x8xf32>
    %1442 = vector.extract_strided_slice %1433 {offsets = [0, 24], sizes = [16, 8], strides = [1, 1]} : vector<16x32xf32> to vector<16x8xf32>
    %1443 = arith.negf %1442 : vector<16x8xf32>
    %1444 = math.exp %1443 : vector<16x8xf32>
    %cst_94 = arith.constant 1.000000e+00 : f32
    %1445 = vector.broadcast %cst_94 : f32 to vector<16x8xf32>
    %1446 = arith.addf %1445, %1444 : vector<16x8xf32>
    %1447 = arith.divf %1445, %1446 : vector<16x8xf32>
    %1448 = arith.mulf %1439, %1441 : vector<16x8xf32>
    %1449 = math.tanh %1448 : vector<16x8xf32>
    %1450 = arith.mulf %1447, %1449 : vector<16x8xf32>
    %1451 = vector.extract_strided_slice %1432 {offsets = [0, 32], sizes = [16, 32], strides = [1, 1]} : vector<16x64xf32> to vector<16x32xf32>
    %1452 = vector.extract_strided_slice %1451 {offsets = [0, 0], sizes = [16, 8], strides = [1, 1]} : vector<16x32xf32> to vector<16x8xf32>
    %1453 = arith.negf %1452 : vector<16x8xf32>
    %1454 = math.exp %1453 : vector<16x8xf32>
    %cst_95 = arith.constant 1.000000e+00 : f32
    %1455 = vector.broadcast %cst_95 : f32 to vector<16x8xf32>
    %1456 = arith.addf %1455, %1454 : vector<16x8xf32>
    %1457 = arith.divf %1455, %1456 : vector<16x8xf32>
    %1458 = vector.extract_strided_slice %1451 {offsets = [0, 16], sizes = [16, 8], strides = [1, 1]} : vector<16x32xf32> to vector<16x8xf32>
    %1459 = math.tanh %1458 : vector<16x8xf32>
    %1460 = vector.extract_strided_slice %1451 {offsets = [0, 24], sizes = [16, 8], strides = [1, 1]} : vector<16x32xf32> to vector<16x8xf32>
    %1461 = arith.negf %1460 : vector<16x8xf32>
    %1462 = math.exp %1461 : vector<16x8xf32>
    %cst_96 = arith.constant 1.000000e+00 : f32
    %1463 = vector.broadcast %cst_96 : f32 to vector<16x8xf32>
    %1464 = arith.addf %1463, %1462 : vector<16x8xf32>
    %1465 = arith.divf %1463, %1464 : vector<16x8xf32>
    %1466 = arith.mulf %1457, %1459 : vector<16x8xf32>
    %1467 = math.tanh %1466 : vector<16x8xf32>
    %1468 = arith.mulf %1465, %1467 : vector<16x8xf32>
    %1469 = tpu.concatenate %1450, %1468 in 1 : vector<16x8xf32>, vector<16x8xf32> -> vector<16x16xf32>
    %1470 = arith.truncf %1469 : vector<16x16xf32> to vector<16x16xbf16>
    %c0_97 = arith.constant 0 : index
    %c0_98 = arith.constant 0 : index
    %1471 = vector.load %arg9[%c0_97, %c0_98] : memref<16x128xbf16, #tpu.memory_space<vmem>>, vector<16x128xbf16>
    %cst_99 = arith.constant dense<0.000000e+00> : vector<16x128xf32>
    %1472 = tpu.matmul %1470, %1471, %cst_99 {dimension_numbers = #tpu.dot_dimension_numbers<[1], [0], [0], [1], [0, 0, 1, 1], [], []>} : vector<16x16xbf16>, vector<16x128xbf16>, vector<16x128xf32> -> vector<16x128xf32>
    %c0_100 = arith.constant 0 : index
    %c0_101 = arith.constant 0 : index
    %1473 = vector.load %arg10[%c0_100, %c0_101] : memref<1x128xf32, #tpu.memory_space<vmem>>, vector<1x128xf32>
    %1474 = vector.broadcast %1473 : vector<1x128xf32> to vector<16x128xf32>
    %1475 = arith.addf %1472, %1474 : vector<16x128xf32>
    %c0_102 = arith.constant 0 : index
    %c0_103 = arith.constant 0 : index
    %1476 = vector.load %arg11[%c0_102, %c0_103] : memref<16x128xf32, #tpu.memory_space<vmem>>, vector<16x128xf32>
    tpu.vector_store %arg11[%c0_102, %c0_103], %1475 {strides = array<i32>} : memref<16x128xf32, #tpu.memory_space<vmem>>, vector<16x128xf32>,
    return
  }
  func.func @transform_0(%arg0: i32) -> (i32, i32) {
    %c0_i32 = arith.constant 0 : i32
    %c0_i32_0 = arith.constant 0 : i32
    return %arg0, %c0_i32 : i32, i32
  }
  func.func @transform_1(%arg0: i32) -> i32 {
    %c0_i32 = arith.constant 0 : i32
    %c0_i32_0 = arith.constant 0 : i32
    return %c0_i32 : i32
  }
  func.func @transform_2(%arg0: i32) -> (i32, i32) {
    %c0_i32 = arith.constant 0 : i32
    %c0_i32_0 = arith.constant 0 : i32
    %c0_i32_1 = arith.constant 0 : i32
    return %c0_i32, %c0_i32_0 : i32, i32
  }
  func.func @transform_3(%arg0: i32) -> (i32, i32) {
    %c0_i32 = arith.constant 0 : i32
    %c0_i32_0 = arith.constant 0 : i32
    %c0_i32_1 = arith.constant 0 : i32
    return %c0_i32, %c0_i32_0 : i32, i32
  }
  func.func @transform_4(%arg0: i32) -> (i32, i32) {
    %c0_i32 = arith.constant 0 : i32
    %c0_i32_0 = arith.constant 0 : i32
    %c0_i32_1 = arith.constant 0 : i32
    return %c0_i32, %c0_i32_0 : i32, i32
  }
  func.func @transform_5(%arg0: i32) -> (i32, i32) {
    %c0_i32 = arith.constant 0 : i32
    %c0_i32_0 = arith.constant 0 : i32
    %c0_i32_1 = arith.constant 0 : i32
    return %c0_i32, %c0_i32_0 : i32, i32
  }
  func.func @transform_6(%arg0: i32) -> (i32, i32) {
    %c0_i32 = arith.constant 0 : i32
    %c0_i32_0 = arith.constant 0 : i32
    %c0_i32_1 = arith.constant 0 : i32
    return %c0_i32, %c0_i32_0 : i32, i32
  }
  func.func @transform_7(%arg0: i32) -> (i32, i32) {
    %c0_i32 = arith.constant 0 : i32
    %c0_i32_0 = arith.constant 0 : i32
    %c0_i32_1 = arith.constant 0 : i32
    return %c0_i32, %c0_i32_0 : i32, i32
  }
  func.func @transform_8(%arg0: i32) -> (i32, i32) {
    %c0_i32 = arith.constant 0 : i32
    %c0_i32_0 = arith.constant 0 : i32
    %c0_i32_1 = arith.constant 0 : i32
    return %c0_i32, %c0_i32_0 : i32, i32
  }
  func.func @transform_9(%arg0: i32) -> (i32, i32) {
    %c0_i32 = arith.constant 0 : i32
    %c0_i32_0 = arith.constant 0 : i32
    %c0_i32_1 = arith.constant 0 : i32
    return %c0_i32, %c0_i32_0 : i32, i32
  }
  func.func @transform_10(%arg0: i32) -> (i32, i32) {
    %c0_i32 = arith.constant 0 : i32
    %c0_i32_0 = arith.constant 0 : i32
    return %arg0, %c0_i32 : i32, i32
  }
}

</mosaic_0001>

<llo_original>
// kernel: tpu_custom_call.1
$region0: #{tpu_custom_call.1}
  #allocation0 [shape = 'u32[]', space=smem, size = 0x4, offset = 0x4, fixed_abs, tag = 'smem constant byte address 0x4 - core index']
  #allocation1 [shape = 'u32[144,128]{1,0:T(1,128)}', space=vmem, size = 0x12000, scoped, tag = 'internal scratch']
  %s0 = inlined_call_operand.hbm [shape: f32[16,128], index: 0, kind: input, shape index: {}]
  %s1 = inlined_call_operand.vmem [shape: f32[208], index: 1, kind: input, shape index: {}]
  %s2 = inlined_call_operand.hbm [shape: bf16[128,128], index: 2, kind: input, shape index: {}]
  %s3 = inlined_call_operand.hbm [shape: bf16[64,256], index: 3, kind: input, shape index: {}]
  %s4 = inlined_call_operand.vmem [shape: f32[1,256], index: 4, kind: input, shape index: {}]
  %s5 = inlined_call_operand.hbm [shape: f32[64,256], index: 5, kind: input, shape index: {}]
  %s6 = inlined_call_operand.hbm [shape: f32[64,64], index: 6, kind: input, shape index: {}]
  %s7 = inlined_call_operand.vmem [shape: f32[1,64], index: 7, kind: input, shape index: {}]
  %s8 = inlined_call_operand.vmem [shape: bf16[16,128], index: 8, kind: input, shape index: {}]
  %s9 = inlined_call_operand.vmem [shape: f32[1,128], index: 9, kind: input, shape index: {}]
  %s10 = inlined_call_operand.hbm [shape: f32[16,128], index: 10, kind: output, shape index: {}]
  %s11 = sld [smem:[#allocation0]]
  $region74: #{tpu_custom_call.1} parent=0
    _
  %s13 = ssub.s32 1, %s11
  %s14 = scalar_select 0, %s13, %s11
  $region1: #{tpu_custom_call.1} parent=0
    #allocation2 [shape = 'u8[8192]{0}', space=vmem, size = 0x2000, scoped, tag = 'input window, operand 0, single buffered']
    #allocation3 [shape = 's32[1]{0}', space=sflag, size = 0x4, scoped, tag = 'scoped memory for tpu_custom_call.1']
    #allocation4 [shape = 's32[1]{0}', space=sflag, size = 0x4, scoped, tag = 'scoped memory for tpu_custom_call.1']
    #allocation5 [shape = 's32[1]{0}', space=sflag, size = 0x4, scoped, tag = 'scoped memory for tpu_custom_call.1']
    #allocation6 [shape = 'u8[1024]{0}', space=smem, size = 0x400, scoped, tag = 'input window, operand 1, single buffered']
    #allocation7 [shape = 'u8[32768]{0}', space=vmem, size = 0x8000, scoped, tag = 'input window, operand 2, single buffered']
    #allocation8 [shape = 's32[1]{0}', space=sflag, size = 0x4, scoped, tag = 'scoped memory for tpu_custom_call.1']
    #allocation9 [shape = 'u8[32768]{0}', space=vmem, size = 0x8000, scoped, tag = 'input window, operand 3, single buffered']
    #allocation10 [shape = 'u8[65536]{0}', space=vmem, size = 0x10000, scoped, tag = 'input window, operand 5, single buffered']
    #allocation11 [shape = 's32[1]{0}', space=sflag, size = 0x4, scoped, tag = 'scoped memory for tpu_custom_call.1']
    #allocation12 [shape = 'u8[32768]{0}', space=vmem, size = 0x8000, scoped, tag = 'input window, operand 6, single buffered']
    #allocation13 [shape = 'u8[8192]{0}', space=vmem, size = 0x2000, scoped, tag = 'output window, operand 0, single buffered']
    %15 = vsyncpa [#allocation3], 0
    %16 = vsyncpa [#allocation5], 0
    %17 = vsyncpa [#allocation8], 0
    %18 = vsyncpa [#allocation11], 0
    %19 = vsyncpa [#allocation4], 0
    // Predicated region
    $region2: #{tpu_custom_call.1} parent=1 // pred_check
      _
    $region3: #{tpu_custom_call.1} parent=1 // pred_check_branch
      %21 = sbr.rel (0) target = $region5
    $region4: #{tpu_custom_call.1} parent=1 // pred_region
      %s23 = ssub.s32 256, 256
      %24 = vsyncadd [#allocation3], %s23
      %s25 = sshll.u32 [#allocation2], 4
      %s26 = int_to_ptr.vmem [resolvable:$true] %s25
      %31 = dma.hbm_to_vmem [thread:$0]  %s0, 256, %s26, [#allocation3], 128, 128, 8
    $region5: #{tpu_custom_call.1} parent=1 // pred_fallthru
      _
    // Predicated region
    $region6: #{tpu_custom_call.1} parent=1 // pred_check
      _
    $region7: #{tpu_custom_call.1} parent=1 // pred_check_branch
      %33 = sbr.rel (0) target = $region9
    $region8: #{tpu_custom_call.1} parent=1 // pred_region
      %s35 = ssub.s32 32, 32
      %36 = vsyncadd [#allocation5], %s35
      %s38 = sshll.u32 %s1, 4
      %s39 = int_to_ptr.vmem [resolvable:$true] %s38
      %41 = dma.vmem_to_smem %s39, 32, [#allocation6], [#allocation5]
    $region9: #{tpu_custom_call.1} parent=1 // pred_fallthru
      _
    // Predicated region
    $region10: #{tpu_custom_call.1} parent=1 // pred_check
      _
    $region11: #{tpu_custom_call.1} parent=1 // pred_check_branch
      %43 = sbr.rel (0) target = $region13
    $region12: #{tpu_custom_call.1} parent=1 // pred_region
      %s45 = ssub.s32 1024, 1024
      %46 = vsyncadd [#allocation8], %s45
      %s47 = sshll.u32 [#allocation7], 4
      %s48 = int_to_ptr.vmem [resolvable:$true] %s47
      %53 = dma.hbm_to_vmem [thread:$0]  %s2, 1024, %s48, [#allocation8], 64, 64, 4
    $region13: #{tpu_custom_call.1} parent=1 // pred_fallthru
      _
    // Predicated region
    $region14: #{tpu_custom_call.1} parent=1 // pred_check
      _
    $region15: #{tpu_custom_call.1} parent=1 // pred_check_branch
      %55 = sbr.rel (0) target = $region17
    $region16: #{tpu_custom_call.1} parent=1 // pred_region
      %s57 = ssub.s32 1024, 1024
      %58 = vsyncadd [#allocation8], %s57
      %s59 = sshll.u32 [#allocation9], 4
      %s60 = int_to_ptr.vmem [resolvable:$true] %s59
      %65 = dma.hbm_to_vmem [thread:$0]  %s3, 1024, %s60, [#allocation8], 128, 128, 8
    $region17: #{tpu_custom_call.1} parent=1 // pred_fallthru
      _
    // Predicated region
    $region18: #{tpu_custom_call.1} parent=1 // pred_check
      _
    $region19: #{tpu_custom_call.1} parent=1 // pred_check_branch
      %67 = sbr.rel (0) target = $region21
    $region20: #{tpu_custom_call.1} parent=1 // pred_region
      _
    $region21: #{tpu_custom_call.1} parent=1 // pred_fallthru
      _
    // Predicated region
    $region22: #{tpu_custom_call.1} parent=1 // pred_check
      _
    $region23: #{tpu_custom_call.1} parent=1 // pred_check_branch
      %69 = sbr.rel (0) target = $region25
    $region24: #{tpu_custom_call.1} parent=1 // pred_region
      %s71 = ssub.s32 2048, 2048
      %72 = vsyncadd [#allocation11], %s71
      %s73 = sshll.u32 [#allocation10], 4
      %s74 = int_to_ptr.vmem [resolvable:$true] %s73
      %79 = dma.hbm_to_vmem [thread:$0]  %s5, 2048, %s74, [#allocation11], 256, 256, 16
    $region25: #{tpu_custom_call.1} parent=1 // pred_fallthru
      _
    // Predicated region
    $region26: #{tpu_custom_call.1} parent=1 // pred_check
      _
    $region27: #{tpu_custom_call.1} parent=1 // pred_check_branch
      %81 = sbr.rel (0) target = $region29
    $region28: #{tpu_custom_call.1} parent=1 // pred_region
      %s83 = ssub.s32 1024, 1024
      %84 = vsyncadd [#allocation11], %s83
      %s85 = sshll.u32 [#allocation12], 4
      %s86 = int_to_ptr.vmem [resolvable:$true] %s85
      %91 = dma.hbm_to_vmem [thread:$0]  %s6, 1024, %s86, [#allocation11], 128, 128, 8
    $region29: #{tpu_custom_call.1} parent=1 // pred_fallthru
      _
    // Predicated region
    $region30: #{tpu_custom_call.1} parent=1 // pred_check
      _
    $region31: #{tpu_custom_call.1} parent=1 // pred_check_branch
      %93 = sbr.rel (0) target = $region33
    $region32: #{tpu_custom_call.1} parent=1 // pred_region
      _
    $region33: #{tpu_custom_call.1} parent=1 // pred_fallthru
      _
    // Predicated region
    $region34: #{tpu_custom_call.1} parent=1 // pred_check
      _
    $region35: #{tpu_custom_call.1} parent=1 // pred_check_branch
      %95 = sbr.rel (0) target = $region37
    $region36: #{tpu_custom_call.1} parent=1 // pred_region
      _
    $region37: #{tpu_custom_call.1} parent=1 // pred_fallthru
      _
    // Predicated region
    $region38: #{tpu_custom_call.1} parent=1 // pred_check
      _
    $region39: #{tpu_custom_call.1} parent=1 // pred_check_branch
      %97 = sbr.rel (0) target = $region41
    $region40: #{tpu_custom_call.1} parent=1 // pred_region
      _
    $region41: #{tpu_custom_call.1} parent=1 // pred_fallthru
      _
    // Predicated region
    $region42: #{tpu_custom_call.1} parent=1 // pred_check
      _
    $region43: #{tpu_custom_call.1} parent=1 // pred_check_branch
      %99 = sbr.rel (0) target = $region45
    $region44: #{tpu_custom_call.1} parent=1 // pred_region
      %100 = dma.done [#allocation3], 256
    $region45: #{tpu_custom_call.1} parent=1 // pred_fallthru
      _
    // Predicated region
    $region46: #{tpu_custom_call.1} parent=1 // pred_check
      _
    $region47: #{tpu_custom_call.1} parent=1 // pred_check_branch
      %102 = sbr.rel (0) target = $region49
    $region48: #{tpu_custom_call.1} parent=1 // pred_region
      %103 = dma.done [#allocation5], 32
    $region49: #{tpu_custom_call.1} parent=1 // pred_fallthru
      _
    // Predicated region
    $region50: #{tpu_custom_call.1} parent=1 // pred_check
      _
    $region51: #{tpu_custom_call.1} parent=1 // pred_check_branch
      %105 = sbr.rel (0) target = $region53
    $region52: #{tpu_custom_call.1} parent=1 // pred_region
      %106 = dma.done [#allocation8], 1024
    $region53: #{tpu_custom_call.1} parent=1 // pred_fallthru
      _
    // Predicated region
    $region54: #{tpu_custom_call.1} parent=1 // pred_check
      _
    $region55: #{tpu_custom_call.1} parent=1 // pred_check_branch
      %108 = sbr.rel (0) target = $region57
    $region56: #{tpu_custom_call.1} parent=1 // pred_region
      %109 = dma.done [#allocation8], 1024
    $region57: #{tpu_custom_call.1} parent=1 // pred_fallthru
      _
    // Predicated region
    $region58: #{tpu_custom_call.1} parent=1 // pred_check
      _
    $region59: #{tpu_custom_call.1} parent=1 // pred_check_branch
      %111 = sbr.rel (0) target = $region61
    $region60: #{tpu_custom_call.1} parent=1 // pred_region
      %112 = dma.done [#allocation11], 2048
    $region61: #{tpu_custom_call.1} parent=1 // pred_fallthru
      _
    // Predicated region
    $region62: #{tpu_custom_call.1} parent=1 // pred_check
      _
    $region63: #{tpu_custom_call.1} parent=1 // pred_check_branch
      %114 = sbr.rel (0) target = $region65
    $region64: #{tpu_custom_call.1} parent=1 // pred_region
      %115 = dma.done [#allocation11], 1024
    $region65: #{tpu_custom_call.1} parent=1 // pred_fallthru
      _
    %116 = sfence
    %v118 = vld [vmem:[#allocation2] sm:$0xff]
    %v119 = vld [vmem:[#allocation2 + $0x8] sm:$0xff]
    %121 = vset.pattern.permute.xlu0 0
    %122 = vperm.xlu0 %121, %v118
    %v123 = vpop.permute.xlu0 %122
    %126 = vset.pattern.permute.xlu0 0
    %127 = vperm.xlu0 %126, %v119
    %v128 = vpop.permute.xlu0 %127
    %130 = vrot.lane.b32.xlu0 %v118, 4
    %v131 = vpop.permute.xlu0 %130
    %132 = vrot.lane.b32.xlu0 %v119, 4
    %v133 = vpop.permute.xlu0 %132
    %vm136 = vcmask 31744
    %v137 = vsel %vm136, %v123, %v131
    %v138 = vsel %vm136, %v128, %v133
    %s139 = sld [smem:[#allocation6]]
    %v140 = vstv %s139
    %v141 = vmul.f32 %v140, %v137
    %v142 = vmul.f32 %v140, %v138
    %s143 = sld [smem:[#allocation6 + $0x9]]
    %v144 = vstv %s143
    %v145 = vmul.f32 %v144, %v137
    %v146 = vmul.f32 %v144, %v138
    %s147 = sld [smem:[#allocation6 + $0x12]]
    %v148 = vstv %s147
    %v149 = vmul.f32 %v148, %v137
    %v150 = vmul.f32 %v148, %v138
    %s151 = sld [smem:[#allocation6 + $0x1b]]
    %v152 = vstv %s151
    %v153 = vmul.f32 %v152, %v137
    %v154 = vmul.f32 %v152, %v138
    %155 = vrot.lane.b32.xlu0 %v118, 3
    %v156 = vpop.permute.xlu0 %155
    %157 = vrot.lane.b32.xlu0 %v119, 3
    %v158 = vpop.permute.xlu0 %157
    %vm161 = vcmask 23552
    %v162 = vsel %vm161, %v123, %v156
    %v163 = vsel %vm161, %v128, %v158
    %s164 = sld [smem:[#allocation6 + $0x1]]
    %v165 = vstv %s164
    %v166 = vmul.f32 %v165, %v162
    %v167 = vmul.f32 %v165, %v163
    %v168 = vadd.f32 %v141, %v166
    %v169 = vadd.f32 %v142, %v167
    %s170 = sld [smem:[#allocation6 + $0xa]]
    %v171 = vstv %s170
    %v172 = vmul.f32 %v171, %v162
    %v173 = vmul.f32 %v171, %v163
    %v174 = vadd.f32 %v145, %v172
    %v175 = vadd.f32 %v146, %v173
    %s176 = sld [smem:[#allocation6 + $0x13]]
    %v177 = vstv %s176
    %v178 = vmul.f32 %v177, %v162
    %v179 = vmul.f32 %v177, %v163
    %v180 = vadd.f32 %v149, %v178
    %v181 = vadd.f32 %v150, %v179
    %s182 = sld [smem:[#allocation6 + $0x1c]]
    %v183 = vstv %s182
    %v184 = vmul.f32 %v183, %v162
    %v185 = vmul.f32 %v183, %v163
    %v186 = vadd.f32 %v153, %v184
    %v187 = vadd.f32 %v154, %v185
    %188 = vrot.lane.b32.xlu0 %v118, 2
    %v189 = vpop.permute.xlu0 %188
    %190 = vrot.lane.b32.xlu0 %v119, 2
    %v191 = vpop.permute.xlu0 %190
    %vm194 = vcmask 15360
    %v195 = vsel %vm194, %v123, %v189
    %v196 = vsel %vm194, %v128, %v191
    %s197 = sld [smem:[#allocation6 + $0x2]]
    %v198 = vstv %s197
    %v199 = vmul.f32 %v198, %v195
    %v200 = vmul.f32 %v198, %v196
    %v201 = vadd.f32 %v168, %v199
    %v202 = vadd.f32 %v169, %v200
    %s203 = sld [smem:[#allocation6 + $0xb]]
    %v204 = vstv %s203
    %v205 = vmul.f32 %v204, %v195
    %v206 = vmul.f32 %v204, %v196
    %v207 = vadd.f32 %v174, %v205
    %v208 = vadd.f32 %v175, %v206
    %s209 = sld [smem:[#allocation6 + $0x14]]
    %v210 = vstv %s209
    %v211 = vmul.f32 %v210, %v195
    %v212 = vmul.f32 %v210, %v196
    %v213 = vadd.f32 %v180, %v211
    %v214 = vadd.f32 %v181, %v212
    %s215 = sld [smem:[#allocation6 + $0x1d]]
    %v216 = vstv %s215
    %v217 = vmul.f32 %v216, %v195
    %v218 = vmul.f32 %v216, %v196
    %v219 = vadd.f32 %v186, %v217
    %v220 = vadd.f32 %v187, %v218
    %221 = vrot.lane.b32.xlu0 %v118, 1
    %v222 = vpop.permute.xlu0 %221
    %223 = vrot.lane.b32.xlu0 %v119, 1
    %v224 = vpop.permute.xlu0 %223
    %vm227 = vcmask 7168
    %v228 = vsel %vm227, %v118, %v222
    %v229 = vsel %vm227, %v119, %v224
    %s230 = sld [smem:[#allocation6 + $0x3]]
    %v231 = vstv %s230
    %v232 = vmul.f32 %v231, %v228
    %v233 = vmul.f32 %v231, %v229
    %v234 = vadd.f32 %v201, %v232
    %v235 = vadd.f32 %v202, %v233
    %s236 = sld [smem:[#allocation6 + $0xc]]
    %v237 = vstv %s236
    %v238 = vmul.f32 %v237, %v228
    %v239 = vmul.f32 %v237, %v229
    %v240 = vadd.f32 %v207, %v238
    %v241 = vadd.f32 %v208, %v239
    %s242 = sld [smem:[#allocation6 + $0x15]]
    %v243 = vstv %s242
    %v244 = vmul.f32 %v243, %v228
    %v245 = vmul.f32 %v243, %v229
    %v246 = vadd.f32 %v213, %v244
    %v247 = vadd.f32 %v214, %v245
    %s248 = sld [smem:[#allocation6 + $0x1e]]
    %v249 = vstv %s248
    %v250 = vmul.f32 %v249, %v228
    %v251 = vmul.f32 %v249, %v229
    %v252 = vadd.f32 %v219, %v250
    %v253 = vadd.f32 %v220, %v251
    %s254 = sld [smem:[#allocation6 + $0x4]]
    %v255 = vstv %s254
    %v256 = vmul.f32 %v255, %v118
    %v257 = vmul.f32 %v255, %v119
    %v258 = vadd.f32 %v234, %v256
    %v259 = vadd.f32 %v235, %v257
    %s260 = sld [smem:[#allocation6 + $0xd]]
    %v261 = vstv %s260
    %v262 = vmul.f32 %v261, %v118
    %v263 = vmul.f32 %v261, %v119
    %v264 = vadd.f32 %v240, %v262
    %v265 = vadd.f32 %v241, %v263
    %s266 = sld [smem:[#allocation6 + $0x16]]
    %v267 = vstv %s266
    %v268 = vmul.f32 %v267, %v118
    %v269 = vmul.f32 %v267, %v119
    %v270 = vadd.f32 %v246, %v268
    %v271 = vadd.f32 %v247, %v269
    %s272 = sld [smem:[#allocation6 + $0x1f]]
    %v273 = vstv %s272
    %v274 = vmul.f32 %v273, %v118
    %v275 = vmul.f32 %v273, %v119
    %v276 = vadd.f32 %v252, %v274
    %v277 = vadd.f32 %v253, %v275
    %278 = vrot.lane.b32.xlu0 %v118, 127
    %v279 = vpop.permute.xlu0 %278
    %280 = vrot.lane.b32.xlu0 %v119, 127
    %v281 = vpop.permute.xlu0 %280
    %vm284 = vcmask 1039360
    %v285 = vsel %vm284, %v279, %v118
    %v286 = vsel %vm284, %v281, %v119
    %s287 = sld [smem:[#allocation6 + $0x5]]
    %v288 = vstv %s287
    %v289 = vmul.f32 %v288, %v285
    %v290 = vmul.f32 %v288, %v286
    %v291 = vadd.f32 %v258, %v289
    %v292 = vadd.f32 %v259, %v290
    %s293 = sld [smem:[#allocation6 + $0xe]]
    %v294 = vstv %s293
    %v295 = vmul.f32 %v294, %v285
    %v296 = vmul.f32 %v294, %v286
    %v297 = vadd.f32 %v264, %v295
    %v298 = vadd.f32 %v265, %v296
    %s299 = sld [smem:[#allocation6 + $0x17]]
    %v300 = vstv %s299
    %v301 = vmul.f32 %v300, %v285
    %v302 = vmul.f32 %v300, %v286
    %v303 = vadd.f32 %v270, %v301
    %v304 = vadd.f32 %v271, %v302
    %s305 = sld [smem:[#allocation6 + $0x20]]
    %v306 = vstv %s305
    %v307 = vmul.f32 %v306, %v285
    %v308 = vmul.f32 %v306, %v286
    %v309 = vadd.f32 %v276, %v307
    %v310 = vadd.f32 %v277, %v308
    %311 = vset.pattern.permute.xlu0 127
    %312 = vperm.xlu0 %311, %v118
    %v313 = vpop.permute.xlu0 %312
    %315 = vset.pattern.permute.xlu0 127
    %316 = vperm.xlu0 %315, %v119
    %v317 = vpop.permute.xlu0 %316
    %319 = vrot.lane.b32.xlu0 %v118, 126
    %v320 = vpop.permute.xlu0 %319
    %321 = vrot.lane.b32.xlu0 %v119, 126
    %v322 = vpop.permute.xlu0 %321
    %vm325 = vcmask 1031168
    %v326 = vsel %vm325, %v320, %v313
    %v327 = vsel %vm325, %v322, %v317
    %s328 = sld [smem:[#allocation6 + $0x6]]
    %v329 = vstv %s328
    %v330 = vmul.f32 %v329, %v326
    %v331 = vmul.f32 %v329, %v327
    %v332 = vadd.f32 %v291, %v330
    %v333 = vadd.f32 %v292, %v331
    %s334 = sld [smem:[#allocation6 + $0xf]]
    %v335 = vstv %s334
    %v336 = vmul.f32 %v335, %v326
    %v337 = vmul.f32 %v335, %v327
    %v338 = vadd.f32 %v297, %v336
    %v339 = vadd.f32 %v298, %v337
    %s340 = sld [smem:[#allocation6 + $0x18]]
    %v341 = vstv %s340
    %v342 = vmul.f32 %v341, %v326
    %v343 = vmul.f32 %v341, %v327
    %v344 = vadd.f32 %v303, %v342
    %v345 = vadd.f32 %v304, %v343
    %s346 = sld [smem:[#allocation6 + $0x21]]
    %v347 = vstv %s346
    %v348 = vmul.f32 %v347, %v326
    %v349 = vmul.f32 %v347, %v327
    %v350 = vadd.f32 %v309, %v348
    %v351 = vadd.f32 %v310, %v349
    %352 = vrot.lane.b32.xlu0 %v118, 125
    %v353 = vpop.permute.xlu0 %352
    %354 = vrot.lane.b32.xlu0 %v119, 125
    %v355 = vpop.permute.xlu0 %354
    %vm358 = vcmask 1022976
    %v359 = vsel %vm358, %v353, %v313
    %v360 = vsel %vm358, %v355, %v317
    %s361 = sld [smem:[#allocation6 + $0x7]]
    %v362 = vstv %s361
    %v363 = vmul.f32 %v362, %v359
    %v364 = vmul.f32 %v362, %v360
    %v365 = vadd.f32 %v332, %v363
    %v366 = vadd.f32 %v333, %v364
    %s367 = sld [smem:[#allocation6 + $0x10]]
    %v368 = vstv %s367
    %v369 = vmul.f32 %v368, %v359
    %v370 = vmul.f32 %v368, %v360
    %v371 = vadd.f32 %v338, %v369
    %v372 = vadd.f32 %v339, %v370
    %s373 = sld [smem:[#allocation6 + $0x19]]
    %v374 = vstv %s373
    %v375 = vmul.f32 %v374, %v359
    %v376 = vmul.f32 %v374, %v360
    %v377 = vadd.f32 %v344, %v375
    %v378 = vadd.f32 %v345, %v376
    %s379 = sld [smem:[#allocation6 + $0x22]]
    %v380 = vstv %s379
    %v381 = vmul.f32 %v380, %v359
    %v382 = vmul.f32 %v380, %v360
    %v383 = vadd.f32 %v350, %v381
    %v384 = vadd.f32 %v351, %v382
    %385 = vrot.lane.b32.xlu0 %v118, 124
    %v386 = vpop.permute.xlu0 %385
    %387 = vrot.lane.b32.xlu0 %v119, 124
    %v388 = vpop.permute.xlu0 %387
    %vm391 = vcmask 1014784
    %v392 = vsel %vm391, %v386, %v313
    %v393 = vsel %vm391, %v388, %v317
    %s394 = sld [smem:[#allocation6 + $0x8]]
    %v395 = vstv %s394
    %v396 = vmul.f32 %v395, %v392
    %v397 = vmul.f32 %v395, %v393
    %v398 = vadd.f32 %v365, %v396
    %v399 = vadd.f32 %v366, %v397
    %s400 = sld [smem:[#allocation6 + $0x11]]
    %v401 = vstv %s400
    %v402 = vmul.f32 %v401, %v392
    %v403 = vmul.f32 %v401, %v393
    %v404 = vadd.f32 %v371, %v402
    %v405 = vadd.f32 %v372, %v403
    %s406 = sld [smem:[#allocation6 + $0x1a]]
    %v407 = vstv %s406
    %v408 = vmul.f32 %v407, %v392
    %v409 = vmul.f32 %v407, %v393
    %v410 = vadd.f32 %v377, %v408
    %v411 = vadd.f32 %v378, %v409
    %s412 = sld [smem:[#allocation6 + $0x23]]
    %v413 = vstv %s412
    %v414 = vmul.f32 %v413, %v392
    %v415 = vmul.f32 %v413, %v393
    %v416 = vadd.f32 %v383, %v414
    %v417 = vadd.f32 %v384, %v415
    %s418 = sld [smem:[#allocation6 + $0x24]]
    %v419 = vstv %s418
    %v420 = vadd.f32 %v398, %v419
    %v421 = vadd.f32 %v399, %v419
    %s422 = sld [smem:[#allocation6 + $0x25]]
    %v423 = vstv %s422
    %v424 = vadd.f32 %v404, %v423
    %v425 = vadd.f32 %v405, %v423
    %s426 = sld [smem:[#allocation6 + $0x26]]
    %v427 = vstv %s426
    %v428 = vadd.f32 %v410, %v427
    %v429 = vadd.f32 %v411, %v427
    %s430 = sld [smem:[#allocation6 + $0x27]]
    %v431 = vstv %s430
    %v432 = vadd.f32 %v416, %v431
    %v433 = vadd.f32 %v417, %v431
    %vm434 = vcmp.gt.f32.partialorder %v420, 0.0
    %vm435 = vcmp.gt.f32.partialorder %v421, 0.0
    %v436 = vmul.f32 %v420, 0.01
    %v437 = vmul.f32 %v421, 0.01
    %v438 = vsel %vm434, %v420, %v436
    %v439 = vsel %vm435, %v421, %v437
    %vm440 = vcmp.gt.f32.partialorder %v424, 0.0
    %vm441 = vcmp.gt.f32.partialorder %v425, 0.0
    %v442 = vmul.f32 %v424, 0.01
    %v443 = vmul.f32 %v425, 0.01
    %v444 = vsel %vm440, %v424, %v442
    %v445 = vsel %vm441, %v425, %v443
    %vm446 = vcmp.gt.f32.partialorder %v428, 0.0
    %vm447 = vcmp.gt.f32.partialorder %v429, 0.0
    %v448 = vmul.f32 %v428, 0.01
    %v449 = vmul.f32 %v429, 0.01
    %v450 = vsel %vm446, %v428, %v448
    %v451 = vsel %vm447, %v429, %v449
    %vm452 = vcmp.gt.f32.partialorder %v432, 0.0
    %vm453 = vcmp.gt.f32.partialorder %v433, 0.0
    %v454 = vmul.f32 %v432, 0.01
    %v455 = vmul.f32 %v433, 0.01
    %v456 = vsel %vm452, %v432, %v454
    %v457 = vsel %vm453, %v433, %v455
    %459 = vset.pattern.permute.xlu0 0
    %460 = vperm.xlu0 %459, %v438
    %v461 = vpop.permute.xlu0 %460
    %464 = vset.pattern.permute.xlu0 0
    %465 = vperm.xlu0 %464, %v439
    %v466 = vpop.permute.xlu0 %465
    %468 = vrot.lane.b32.xlu0 %v438, 2
    %v469 = vpop.permute.xlu0 %468
    %470 = vrot.lane.b32.xlu0 %v439, 2
    %v471 = vpop.permute.xlu0 %470
    %v474 = vsel %vm194, %v461, %v469
    %v475 = vsel %vm194, %v466, %v471
    %s476 = sld [smem:[#allocation6 + $0x28]]
    %v477 = vstv %s476
    %v478 = vmul.f32 %v477, %v474
    %v479 = vmul.f32 %v477, %v475
    %s480 = sld [smem:[#allocation6 + $0x3c]]
    %v481 = vstv %s480
    %v482 = vmul.f32 %v481, %v474
    %v483 = vmul.f32 %v481, %v475
    %s484 = sld [smem:[#allocation6 + $0x50]]
    %v485 = vstv %s484
    %v486 = vmul.f32 %v485, %v474
    %v487 = vmul.f32 %v485, %v475
    %s488 = sld [smem:[#allocation6 + $0x64]]
    %v489 = vstv %s488
    %v490 = vmul.f32 %v489, %v474
    %v491 = vmul.f32 %v489, %v475
    %s492 = sld [smem:[#allocation6 + $0x78]]
    %v493 = vstv %s492
    %v494 = vmul.f32 %v493, %v474
    %v495 = vmul.f32 %v493, %v475
    %s496 = sld [smem:[#allocation6 + $0x8c]]
    %v497 = vstv %s496
    %v498 = vmul.f32 %v497, %v474
    %v499 = vmul.f32 %v497, %v475
    %s500 = sld [smem:[#allocation6 + $0xa0]]
    %v501 = vstv %s500
    %v502 = vmul.f32 %v501, %v474
    %v503 = vmul.f32 %v501, %v475
    %s504 = sld [smem:[#allocation6 + $0xb4]]
    %v505 = vstv %s504
    %v506 = vmul.f32 %v505, %v474
    %v507 = vmul.f32 %v505, %v475
    %508 = vrot.lane.b32.xlu0 %v438, 1
    %v509 = vpop.permute.xlu0 %508
    %510 = vrot.lane.b32.xlu0 %v439, 1
    %v511 = vpop.permute.xlu0 %510
    %v514 = vsel %vm227, %v438, %v509
    %v515 = vsel %vm227, %v439, %v511
    %s516 = sld [smem:[#allocation6 + $0x29]]
    %v517 = vstv %s516
    %v518 = vmul.f32 %v517, %v514
    %v519 = vmul.f32 %v517, %v515
    %v520 = vadd.f32 %v478, %v518
    %v521 = vadd.f32 %v479, %v519
    %s522 = sld [smem:[#allocation6 + $0x3d]]
    %v523 = vstv %s522
    %v524 = vmul.f32 %v523, %v514
    %v525 = vmul.f32 %v523, %v515
    %v526 = vadd.f32 %v482, %v524
    %v527 = vadd.f32 %v483, %v525
    %s528 = sld [smem:[#allocation6 + $0x51]]
    %v529 = vstv %s528
    %v530 = vmul.f32 %v529, %v514
    %v531 = vmul.f32 %v529, %v515
    %v532 = vadd.f32 %v486, %v530
    %v533 = vadd.f32 %v487, %v531
    %s534 = sld [smem:[#allocation6 + $0x65]]
    %v535 = vstv %s534
    %v536 = vmul.f32 %v535, %v514
    %v537 = vmul.f32 %v535, %v515
    %v538 = vadd.f32 %v490, %v536
    %v539 = vadd.f32 %v491, %v537
    %s540 = sld [smem:[#allocation6 + $0x79]]
    %v541 = vstv %s540
    %v542 = vmul.f32 %v541, %v514
    %v543 = vmul.f32 %v541, %v515
    %v544 = vadd.f32 %v494, %v542
    %v545 = vadd.f32 %v495, %v543
    %s546 = sld [smem:[#allocation6 + $0x8d]]
    %v547 = vstv %s546
    %v548 = vmul.f32 %v547, %v514
    %v549 = vmul.f32 %v547, %v515
    %v550 = vadd.f32 %v498, %v548
    %v551 = vadd.f32 %v499, %v549
    %s552 = sld [smem:[#allocation6 + $0xa1]]
    %v553 = vstv %s552
    %v554 = vmul.f32 %v553, %v514
    %v555 = vmul.f32 %v553, %v515
    %v556 = vadd.f32 %v502, %v554
    %v557 = vadd.f32 %v503, %v555
    %s558 = sld [smem:[#allocation6 + $0xb5]]
    %v559 = vstv %s558
    %v560 = vmul.f32 %v559, %v514
    %v561 = vmul.f32 %v559, %v515
    %v562 = vadd.f32 %v506, %v560
    %v563 = vadd.f32 %v507, %v561
    %s564 = sld [smem:[#allocation6 + $0x2a]]
    %v565 = vstv %s564
    %v566 = vmul.f32 %v565, %v438
    %v567 = vmul.f32 %v565, %v439
    %v568 = vadd.f32 %v520, %v566
    %v569 = vadd.f32 %v521, %v567
    %s570 = sld [smem:[#allocation6 + $0x3e]]
    %v571 = vstv %s570
    %v572 = vmul.f32 %v571, %v438
    %v573 = vmul.f32 %v571, %v439
    %v574 = vadd.f32 %v526, %v572
    %v575 = vadd.f32 %v527, %v573
    %s576 = sld [smem:[#allocation6 + $0x52]]
    %v577 = vstv %s576
    %v578 = vmul.f32 %v577, %v438
    %v579 = vmul.f32 %v577, %v439
    %v580 = vadd.f32 %v532, %v578
    %v581 = vadd.f32 %v533, %v579
    %s582 = sld [smem:[#allocation6 + $0x66]]
    %v583 = vstv %s582
    %v584 = vmul.f32 %v583, %v438
    %v585 = vmul.f32 %v583, %v439
    %v586 = vadd.f32 %v538, %v584
    %v587 = vadd.f32 %v539, %v585
    %s588 = sld [smem:[#allocation6 + $0x7a]]
    %v589 = vstv %s588
    %v590 = vmul.f32 %v589, %v438
    %v591 = vmul.f32 %v589, %v439
    %v592 = vadd.f32 %v544, %v590
    %v593 = vadd.f32 %v545, %v591
    %s594 = sld [smem:[#allocation6 + $0x8e]]
    %v595 = vstv %s594
    %v596 = vmul.f32 %v595, %v438
    %v597 = vmul.f32 %v595, %v439
    %v598 = vadd.f32 %v550, %v596
    %v599 = vadd.f32 %v551, %v597
    %s600 = sld [smem:[#allocation6 + $0xa2]]
    %v601 = vstv %s600
    %v602 = vmul.f32 %v601, %v438
    %v603 = vmul.f32 %v601, %v439
    %v604 = vadd.f32 %v556, %v602
    %v605 = vadd.f32 %v557, %v603
    %s606 = sld [smem:[#allocation6 + $0xb6]]
    %v607 = vstv %s606
    %v608 = vmul.f32 %v607, %v438
    %v609 = vmul.f32 %v607, %v439
    %v610 = vadd.f32 %v562, %v608
    %v611 = vadd.f32 %v563, %v609
    %612 = vrot.lane.b32.xlu0 %v438, 127
    %v613 = vpop.permute.xlu0 %612
    %614 = vrot.lane.b32.xlu0 %v439, 127
    %v615 = vpop.permute.xlu0 %614
    %v618 = vsel %vm284, %v613, %v438
    %v619 = vsel %vm284, %v615, %v439
    %s620 = sld [smem:[#allocation6 + $0x2b]]
    %v621 = vstv %s620
    %v622 = vmul.f32 %v621, %v618
    %v623 = vmul.f32 %v621, %v619
    %v624 = vadd.f32 %v568, %v622
    %v625 = vadd.f32 %v569, %v623
    %s626 = sld [smem:[#allocation6 + $0x3f]]
    %v627 = vstv %s626
    %v628 = vmul.f32 %v627, %v618
    %v629 = vmul.f32 %v627, %v619
    %v630 = vadd.f32 %v574, %v628
    %v631 = vadd.f32 %v575, %v629
    %s632 = sld [smem:[#allocation6 + $0x53]]
    %v633 = vstv %s632
    %v634 = vmul.f32 %v633, %v618
    %v635 = vmul.f32 %v633, %v619
    %v636 = vadd.f32 %v580, %v634
    %v637 = vadd.f32 %v581, %v635
    %s638 = sld [smem:[#allocation6 + $0x67]]
    %v639 = vstv %s638
    %v640 = vmul.f32 %v639, %v618
    %v641 = vmul.f32 %v639, %v619
    %v642 = vadd.f32 %v586, %v640
    %v643 = vadd.f32 %v587, %v641
    %s644 = sld [smem:[#allocation6 + $0x7b]]
    %v645 = vstv %s644
    %v646 = vmul.f32 %v645, %v618
    %v647 = vmul.f32 %v645, %v619
    %v648 = vadd.f32 %v592, %v646
    %v649 = vadd.f32 %v593, %v647
    %s650 = sld [smem:[#allocation6 + $0x8f]]
    %v651 = vstv %s650
    %v652 = vmul.f32 %v651, %v618
    %v653 = vmul.f32 %v651, %v619
    %v654 = vadd.f32 %v598, %v652
    %v655 = vadd.f32 %v599, %v653
    %s656 = sld [smem:[#allocation6 + $0xa3]]
    %v657 = vstv %s656
    %v658 = vmul.f32 %v657, %v618
    %v659 = vmul.f32 %v657, %v619
    %v660 = vadd.f32 %v604, %v658
    %v661 = vadd.f32 %v605, %v659
    %s662 = sld [smem:[#allocation6 + $0xb7]]
    %v663 = vstv %s662
    %v664 = vmul.f32 %v663, %v618
    %v665 = vmul.f32 %v663, %v619
    %v666 = vadd.f32 %v610, %v664
    %v667 = vadd.f32 %v611, %v665
    %668 = vset.pattern.permute.xlu0 127
    %669 = vperm.xlu0 %668, %v438
    %v670 = vpop.permute.xlu0 %669
    %672 = vset.pattern.permute.xlu0 127
    %673 = vperm.xlu0 %672, %v439
    %v674 = vpop.permute.xlu0 %673
    %676 = vrot.lane.b32.xlu0 %v438, 126
    %v677 = vpop.permute.xlu0 %676
    %678 = vrot.lane.b32.xlu0 %v439, 126
    %v679 = vpop.permute.xlu0 %678
    %v682 = vsel %vm325, %v677, %v670
    %v683 = vsel %vm325, %v679, %v674
    %s684 = sld [smem:[#allocation6 + $0x2c]]
    %v685 = vstv %s684
    %v686 = vmul.f32 %v685, %v682
    %v687 = vmul.f32 %v685, %v683
    %v688 = vadd.f32 %v624, %v686
    %v689 = vadd.f32 %v625, %v687
    %s690 = sld [smem:[#allocation6 + $0x40]]
    %v691 = vstv %s690
    %v692 = vmul.f32 %v691, %v682
    %v693 = vmul.f32 %v691, %v683
    %v694 = vadd.f32 %v630, %v692
    %v695 = vadd.f32 %v631, %v693
    %s696 = sld [smem:[#allocation6 + $0x54]]
    %v697 = vstv %s696
    %v698 = vmul.f32 %v697, %v682
    %v699 = vmul.f32 %v697, %v683
    %v700 = vadd.f32 %v636, %v698
    %v701 = vadd.f32 %v637, %v699
    %s702 = sld [smem:[#allocation6 + $0x68]]
    %v703 = vstv %s702
    %v704 = vmul.f32 %v703, %v682
    %v705 = vmul.f32 %v703, %v683
    %v706 = vadd.f32 %v642, %v704
    %v707 = vadd.f32 %v643, %v705
    %s708 = sld [smem:[#allocation6 + $0x7c]]
    %v709 = vstv %s708
    %v710 = vmul.f32 %v709, %v682
    %v711 = vmul.f32 %v709, %v683
    %v712 = vadd.f32 %v648, %v710
    %v713 = vadd.f32 %v649, %v711
    %s714 = sld [smem:[#allocation6 + $0x90]]
    %v715 = vstv %s714
    %v716 = vmul.f32 %v715, %v682
    %v717 = vmul.f32 %v715, %v683
    %v718 = vadd.f32 %v654, %v716
    %v719 = vadd.f32 %v655, %v717
    %s720 = sld [smem:[#allocation6 + $0xa4]]
    %v721 = vstv %s720
    %v722 = vmul.f32 %v721, %v682
    %v723 = vmul.f32 %v721, %v683
    %v724 = vadd.f32 %v660, %v722
    %v725 = vadd.f32 %v661, %v723
    %s726 = sld [smem:[#allocation6 + $0xb8]]
    %v727 = vstv %s726
    %v728 = vmul.f32 %v727, %v682
    %v729 = vmul.f32 %v727, %v683
    %v730 = vadd.f32 %v666, %v728
    %v731 = vadd.f32 %v667, %v729
    %733 = vset.pattern.permute.xlu0 0
    %734 = vperm.xlu0 %733, %v444
    %v735 = vpop.permute.xlu0 %734
    %738 = vset.pattern.permute.xlu0 0
    %739 = vperm.xlu0 %738, %v445
    %v740 = vpop.permute.xlu0 %739
    %742 = vrot.lane.b32.xlu0 %v444, 2
    %v743 = vpop.permute.xlu0 %742
    %744 = vrot.lane.b32.xlu0 %v445, 2
    %v745 = vpop.permute.xlu0 %744
    %v748 = vsel %vm194, %v735, %v743
    %v749 = vsel %vm194, %v740, %v745
    %s750 = sld [smem:[#allocation6 + $0x2d]]
    %v751 = vstv %s750
    %v752 = vmul.f32 %v751, %v748
    %v753 = vmul.f32 %v751, %v749
    %v754 = vadd.f32 %v688, %v752
    %v755 = vadd.f32 %v689, %v753
    %s756 = sld [smem:[#allocation6 + $0x41]]
    %v757 = vstv %s756
    %v758 = vmul.f32 %v757, %v748
    %v759 = vmul.f32 %v757, %v749
    %v760 = vadd.f32 %v694, %v758
    %v761 = vadd.f32 %v695, %v759
    %s762 = sld [smem:[#allocation6 + $0x55]]
    %v763 = vstv %s762
    %v764 = vmul.f32 %v763, %v748
    %v765 = vmul.f32 %v763, %v749
    %v766 = vadd.f32 %v700, %v764
    %v767 = vadd.f32 %v701, %v765
    %s768 = sld [smem:[#allocation6 + $0x69]]
    %v769 = vstv %s768
    %v770 = vmul.f32 %v769, %v748
    %v771 = vmul.f32 %v769, %v749
    %v772 = vadd.f32 %v706, %v770
    %v773 = vadd.f32 %v707, %v771
    %s774 = sld [smem:[#allocation6 + $0x7d]]
    %v775 = vstv %s774
    %v776 = vmul.f32 %v775, %v748
    %v777 = vmul.f32 %v775, %v749
    %v778 = vadd.f32 %v712, %v776
    %v779 = vadd.f32 %v713, %v777
    %s780 = sld [smem:[#allocation6 + $0x91]]
    %v781 = vstv %s780
    %v782 = vmul.f32 %v781, %v748
    %v783 = vmul.f32 %v781, %v749
    %v784 = vadd.f32 %v718, %v782
    %v785 = vadd.f32 %v719, %v783
    %s786 = sld [smem:[#allocation6 + $0xa5]]
    %v787 = vstv %s786
    %v788 = vmul.f32 %v787, %v748
    %v789 = vmul.f32 %v787, %v749
    %v790 = vadd.f32 %v724, %v788
    %v791 = vadd.f32 %v725, %v789
    %s792 = sld [smem:[#allocation6 + $0xb9]]
    %v793 = vstv %s792
    %v794 = vmul.f32 %v793, %v748
    %v795 = vmul.f32 %v793, %v749
    %v796 = vadd.f32 %v730, %v794
    %v797 = vadd.f32 %v731, %v795
    %798 = vrot.lane.b32.xlu0 %v444, 1
    %v799 = vpop.permute.xlu0 %798
    %800 = vrot.lane.b32.xlu0 %v445, 1
    %v801 = vpop.permute.xlu0 %800
    %v804 = vsel %vm227, %v444, %v799
    %v805 = vsel %vm227, %v445, %v801
    %s806 = sld [smem:[#allocation6 + $0x2e]]
    %v807 = vstv %s806
    %v808 = vmul.f32 %v807, %v804
    %v809 = vmul.f32 %v807, %v805
    %v810 = vadd.f32 %v754, %v808
    %v811 = vadd.f32 %v755, %v809
    %s812 = sld [smem:[#allocation6 + $0x42]]
    %v813 = vstv %s812
    %v814 = vmul.f32 %v813, %v804
    %v815 = vmul.f32 %v813, %v805
    %v816 = vadd.f32 %v760, %v814
    %v817 = vadd.f32 %v761, %v815
    %s818 = sld [smem:[#allocation6 + $0x56]]
    %v819 = vstv %s818
    %v820 = vmul.f32 %v819, %v804
    %v821 = vmul.f32 %v819, %v805
    %v822 = vadd.f32 %v766, %v820
    %v823 = vadd.f32 %v767, %v821
    %s824 = sld [smem:[#allocation6 + $0x6a]]
    %v825 = vstv %s824
    %v826 = vmul.f32 %v825, %v804
    %v827 = vmul.f32 %v825, %v805
    %v828 = vadd.f32 %v772, %v826
    %v829 = vadd.f32 %v773, %v827
    %s830 = sld [smem:[#allocation6 + $0x7e]]
    %v831 = vstv %s830
    %v832 = vmul.f32 %v831, %v804
    %v833 = vmul.f32 %v831, %v805
    %v834 = vadd.f32 %v778, %v832
    %v835 = vadd.f32 %v779, %v833
    %s836 = sld [smem:[#allocation6 + $0x92]]
    %v837 = vstv %s836
    %v838 = vmul.f32 %v837, %v804
    %v839 = vmul.f32 %v837, %v805
    %v840 = vadd.f32 %v784, %v838
    %v841 = vadd.f32 %v785, %v839
    %s842 = sld [smem:[#allocation6 + $0xa6]]
    %v843 = vstv %s842
    %v844 = vmul.f32 %v843, %v804
    %v845 = vmul.f32 %v843, %v805
    %v846 = vadd.f32 %v790, %v844
    %v847 = vadd.f32 %v791, %v845
    %s848 = sld [smem:[#allocation6 + $0xba]]
    %v849 = vstv %s848
    %v850 = vmul.f32 %v849, %v804
    %v851 = vmul.f32 %v849, %v805
    %v852 = vadd.f32 %v796, %v850
    %v853 = vadd.f32 %v797, %v851
    %s854 = sld [smem:[#allocation6 + $0x2f]]
    %v855 = vstv %s854
    %v856 = vmul.f32 %v855, %v444
    %v857 = vmul.f32 %v855, %v445
    %v858 = vadd.f32 %v810, %v856
    %v859 = vadd.f32 %v811, %v857
    %s860 = sld [smem:[#allocation6 + $0x43]]
    %v861 = vstv %s860
    %v862 = vmul.f32 %v861, %v444
    %v863 = vmul.f32 %v861, %v445
    %v864 = vadd.f32 %v816, %v862
    %v865 = vadd.f32 %v817, %v863
    %s866 = sld [smem:[#allocation6 + $0x57]]
    %v867 = vstv %s866
    %v868 = vmul.f32 %v867, %v444
    %v869 = vmul.f32 %v867, %v445
    %v870 = vadd.f32 %v822, %v868
    %v871 = vadd.f32 %v823, %v869
    %s872 = sld [smem:[#allocation6 + $0x6b]]
    %v873 = vstv %s872
    %v874 = vmul.f32 %v873, %v444
    %v875 = vmul.f32 %v873, %v445
    %v876 = vadd.f32 %v828, %v874
    %v877 = vadd.f32 %v829, %v875
    %s878 = sld [smem:[#allocation6 + $0x7f]]
    %v879 = vstv %s878
    %v880 = vmul.f32 %v879, %v444
    %v881 = vmul.f32 %v879, %v445
    %v882 = vadd.f32 %v834, %v880
    %v883 = vadd.f32 %v835, %v881
    %s884 = sld [smem:[#allocation6 + $0x93]]
    %v885 = vstv %s884
    %v886 = vmul.f32 %v885, %v444
    %v887 = vmul.f32 %v885, %v445
    %v888 = vadd.f32 %v840, %v886
    %v889 = vadd.f32 %v841, %v887
    %s890 = sld [smem:[#allocation6 + $0xa7]]
    %v891 = vstv %s890
    %v892 = vmul.f32 %v891, %v444
    %v893 = vmul.f32 %v891, %v445
    %v894 = vadd.f32 %v846, %v892
    %v895 = vadd.f32 %v847, %v893
    %s896 = sld [smem:[#allocation6 + $0xbb]]
    %v897 = vstv %s896
    %v898 = vmul.f32 %v897, %v444
    %v899 = vmul.f32 %v897, %v445
    %v900 = vadd.f32 %v852, %v898
    %v901 = vadd.f32 %v853, %v899
    %902 = vrot.lane.b32.xlu0 %v444, 127
    %v903 = vpop.permute.xlu0 %902
    %904 = vrot.lane.b32.xlu0 %v445, 127
    %v905 = vpop.permute.xlu0 %904
    %v908 = vsel %vm284, %v903, %v444
    %v909 = vsel %vm284, %v905, %v445
    %s910 = sld [smem:[#allocation6 + $0x30]]
    %v911 = vstv %s910
    %v912 = vmul.f32 %v911, %v908
    %v913 = vmul.f32 %v911, %v909
    %v914 = vadd.f32 %v858, %v912
    %v915 = vadd.f32 %v859, %v913
    %s916 = sld [smem:[#allocation6 + $0x44]]
    %v917 = vstv %s916
    %v918 = vmul.f32 %v917, %v908
    %v919 = vmul.f32 %v917, %v909
    %v920 = vadd.f32 %v864, %v918
    %v921 = vadd.f32 %v865, %v919
    %s922 = sld [smem:[#allocation6 + $0x58]]
    %v923 = vstv %s922
    %v924 = vmul.f32 %v923, %v908
    %v925 = vmul.f32 %v923, %v909
    %v926 = vadd.f32 %v870, %v924
    %v927 = vadd.f32 %v871, %v925
    %s928 = sld [smem:[#allocation6 + $0x6c]]
    %v929 = vstv %s928
    %v930 = vmul.f32 %v929, %v908
    %v931 = vmul.f32 %v929, %v909
    %v932 = vadd.f32 %v876, %v930
    %v933 = vadd.f32 %v877, %v931
    %s934 = sld [smem:[#allocation6 + $0x80]]
    %v935 = vstv %s934
    %v936 = vmul.f32 %v935, %v908
    %v937 = vmul.f32 %v935, %v909
    %v938 = vadd.f32 %v882, %v936
    %v939 = vadd.f32 %v883, %v937
    %s940 = sld [smem:[#allocation6 + $0x94]]
    %v941 = vstv %s940
    %v942 = vmul.f32 %v941, %v908
    %v943 = vmul.f32 %v941, %v909
    %v944 = vadd.f32 %v888, %v942
    %v945 = vadd.f32 %v889, %v943
    %s946 = sld [smem:[#allocation6 + $0xa8]]
    %v947 = vstv %s946
    %v948 = vmul.f32 %v947, %v908
    %v949 = vmul.f32 %v947, %v909
    %v950 = vadd.f32 %v894, %v948
    %v951 = vadd.f32 %v895, %v949
    %s952 = sld [smem:[#allocation6 + $0xbc]]
    %v953 = vstv %s952
    %v954 = vmul.f32 %v953, %v908
    %v955 = vmul.f32 %v953, %v909
    %v956 = vadd.f32 %v900, %v954
    %v957 = vadd.f32 %v901, %v955
    %958 = vset.pattern.permute.xlu0 127
    %959 = vperm.xlu0 %958, %v444
    %v960 = vpop.permute.xlu0 %959
    %962 = vset.pattern.permute.xlu0 127
    %963 = vperm.xlu0 %962, %v445
    %v964 = vpop.permute.xlu0 %963
    %966 = vrot.lane.b32.xlu0 %v444, 126
    %v967 = vpop.permute.xlu0 %966
    %968 = vrot.lane.b32.xlu0 %v445, 126
    %v969 = vpop.permute.xlu0 %968
    %v972 = vsel %vm325, %v967, %v960
    %v973 = vsel %vm325, %v969, %v964
    %s974 = sld [smem:[#allocation6 + $0x31]]
    %v975 = vstv %s974
    %v976 = vmul.f32 %v975, %v972
    %v977 = vmul.f32 %v975, %v973
    %v978 = vadd.f32 %v914, %v976
    %v979 = vadd.f32 %v915, %v977
    %s980 = sld [smem:[#allocation6 + $0x45]]
    %v981 = vstv %s980
    %v982 = vmul.f32 %v981, %v972
    %v983 = vmul.f32 %v981, %v973
    %v984 = vadd.f32 %v920, %v982
    %v985 = vadd.f32 %v921, %v983
    %s986 = sld [smem:[#allocation6 + $0x59]]
    %v987 = vstv %s986
    %v988 = vmul.f32 %v987, %v972
    %v989 = vmul.f32 %v987, %v973
    %v990 = vadd.f32 %v926, %v988
    %v991 = vadd.f32 %v927, %v989
    %s992 = sld [smem:[#allocation6 + $0x6d]]
    %v993 = vstv %s992
    %v994 = vmul.f32 %v993, %v972
    %v995 = vmul.f32 %v993, %v973
    %v996 = vadd.f32 %v932, %v994
    %v997 = vadd.f32 %v933, %v995
    %s998 = sld [smem:[#allocation6 + $0x81]]
    %v999 = vstv %s998
    %v1000 = vmul.f32 %v999, %v972
    %v1001 = vmul.f32 %v999, %v973
    %v1002 = vadd.f32 %v938, %v1000
    %v1003 = vadd.f32 %v939, %v1001
    %s1004 = sld [smem:[#allocation6 + $0x95]]
    %v1005 = vstv %s1004
    %v1006 = vmul.f32 %v1005, %v972
    %v1007 = vmul.f32 %v1005, %v973
    %v1008 = vadd.f32 %v944, %v1006
    %v1009 = vadd.f32 %v945, %v1007
    %s1010 = sld [smem:[#allocation6 + $0xa9]]
    %v1011 = vstv %s1010
    %v1012 = vmul.f32 %v1011, %v972
    %v1013 = vmul.f32 %v1011, %v973
    %v1014 = vadd.f32 %v950, %v1012
    %v1015 = vadd.f32 %v951, %v1013
    %s1016 = sld [smem:[#allocation6 + $0xbd]]
    %v1017 = vstv %s1016
    %v1018 = vmul.f32 %v1017, %v972
    %v1019 = vmul.f32 %v1017, %v973
    %v1020 = vadd.f32 %v956, %v1018
    %v1021 = vadd.f32 %v957, %v1019
    %1023 = vset.pattern.permute.xlu0 0
    %1024 = vperm.xlu0 %1023, %v450
    %v1025 = vpop.permute.xlu0 %1024
    %1028 = vset.pattern.permute.xlu0 0
    %1029 = vperm.xlu0 %1028, %v451
    %v1030 = vpop.permute.xlu0 %1029
    %1032 = vrot.lane.b32.xlu0 %v450, 2
    %v1033 = vpop.permute.xlu0 %1032
    %1034 = vrot.lane.b32.xlu0 %v451, 2
    %v1035 = vpop.permute.xlu0 %1034
    %v1038 = vsel %vm194, %v1025, %v1033
    %v1039 = vsel %vm194, %v1030, %v1035
    %s1040 = sld [smem:[#allocation6 + $0x32]]
    %v1041 = vstv %s1040
    %v1042 = vmul.f32 %v1041, %v1038
    %v1043 = vmul.f32 %v1041, %v1039
    %v1044 = vadd.f32 %v978, %v1042
    %v1045 = vadd.f32 %v979, %v1043
    %s1046 = sld [smem:[#allocation6 + $0x46]]
    %v1047 = vstv %s1046
    %v1048 = vmul.f32 %v1047, %v1038
    %v1049 = vmul.f32 %v1047, %v1039
    %v1050 = vadd.f32 %v984, %v1048
    %v1051 = vadd.f32 %v985, %v1049
    %s1052 = sld [smem:[#allocation6 + $0x5a]]
    %v1053 = vstv %s1052
    %v1054 = vmul.f32 %v1053, %v1038
    %v1055 = vmul.f32 %v1053, %v1039
    %v1056 = vadd.f32 %v990, %v1054
    %v1057 = vadd.f32 %v991, %v1055
    %s1058 = sld [smem:[#allocation6 + $0x6e]]
    %v1059 = vstv %s1058
    %v1060 = vmul.f32 %v1059, %v1038
    %v1061 = vmul.f32 %v1059, %v1039
    %v1062 = vadd.f32 %v996, %v1060
    %v1063 = vadd.f32 %v997, %v1061
    %s1064 = sld [smem:[#allocation6 + $0x82]]
    %v1065 = vstv %s1064
    %v1066 = vmul.f32 %v1065, %v1038
    %v1067 = vmul.f32 %v1065, %v1039
    %v1068 = vadd.f32 %v1002, %v1066
    %v1069 = vadd.f32 %v1003, %v1067
    %s1070 = sld [smem:[#allocation6 + $0x96]]
    %v1071 = vstv %s1070
    %v1072 = vmul.f32 %v1071, %v1038
    %v1073 = vmul.f32 %v1071, %v1039
    %v1074 = vadd.f32 %v1008, %v1072
    %v1075 = vadd.f32 %v1009, %v1073
    %s1076 = sld [smem:[#allocation6 + $0xaa]]
    %v1077 = vstv %s1076
    %v1078 = vmul.f32 %v1077, %v1038
    %v1079 = vmul.f32 %v1077, %v1039
    %v1080 = vadd.f32 %v1014, %v1078
    %v1081 = vadd.f32 %v1015, %v1079
    %s1082 = sld [smem:[#allocation6 + $0xbe]]
    %v1083 = vstv %s1082
    %v1084 = vmul.f32 %v1083, %v1038
    %v1085 = vmul.f32 %v1083, %v1039
    %v1086 = vadd.f32 %v1020, %v1084
    %v1087 = vadd.f32 %v1021, %v1085
    %1088 = vrot.lane.b32.xlu0 %v450, 1
    %v1089 = vpop.permute.xlu0 %1088
    %1090 = vrot.lane.b32.xlu0 %v451, 1
    %v1091 = vpop.permute.xlu0 %1090
    %v1094 = vsel %vm227, %v450, %v1089
    %v1095 = vsel %vm227, %v451, %v1091
    %s1096 = sld [smem:[#allocation6 + $0x33]]
    %v1097 = vstv %s1096
    %v1098 = vmul.f32 %v1097, %v1094
    %v1099 = vmul.f32 %v1097, %v1095
    %v1100 = vadd.f32 %v1044, %v1098
    %v1101 = vadd.f32 %v1045, %v1099
    %s1102 = sld [smem:[#allocation6 + $0x47]]
    %v1103 = vstv %s1102
    %v1104 = vmul.f32 %v1103, %v1094
    %v1105 = vmul.f32 %v1103, %v1095
    %v1106 = vadd.f32 %v1050, %v1104
    %v1107 = vadd.f32 %v1051, %v1105
    %s1108 = sld [smem:[#allocation6 + $0x5b]]
    %v1109 = vstv %s1108
    %v1110 = vmul.f32 %v1109, %v1094
    %v1111 = vmul.f32 %v1109, %v1095
    %v1112 = vadd.f32 %v1056, %v1110
    %v1113 = vadd.f32 %v1057, %v1111
    %s1114 = sld [smem:[#allocation6 + $0x6f]]
    %v1115 = vstv %s1114
    %v1116 = vmul.f32 %v1115, %v1094
    %v1117 = vmul.f32 %v1115, %v1095
    %v1118 = vadd.f32 %v1062, %v1116
    %v1119 = vadd.f32 %v1063, %v1117
    %s1120 = sld [smem:[#allocation6 + $0x83]]
    %v1121 = vstv %s1120
    %v1122 = vmul.f32 %v1121, %v1094
    %v1123 = vmul.f32 %v1121, %v1095
    %v1124 = vadd.f32 %v1068, %v1122
    %v1125 = vadd.f32 %v1069, %v1123
    %s1126 = sld [smem:[#allocation6 + $0x97]]
    %v1127 = vstv %s1126
    %v1128 = vmul.f32 %v1127, %v1094
    %v1129 = vmul.f32 %v1127, %v1095
    %v1130 = vadd.f32 %v1074, %v1128
    %v1131 = vadd.f32 %v1075, %v1129
    %s1132 = sld [smem:[#allocation6 + $0xab]]
    %v1133 = vstv %s1132
    %v1134 = vmul.f32 %v1133, %v1094
    %v1135 = vmul.f32 %v1133, %v1095
    %v1136 = vadd.f32 %v1080, %v1134
    %v1137 = vadd.f32 %v1081, %v1135
    %s1138 = sld [smem:[#allocation6 + $0xbf]]
    %v1139 = vstv %s1138
    %v1140 = vmul.f32 %v1139, %v1094
    %v1141 = vmul.f32 %v1139, %v1095
    %v1142 = vadd.f32 %v1086, %v1140
    %v1143 = vadd.f32 %v1087, %v1141
    %s1144 = sld [smem:[#allocation6 + $0x34]]
    %v1145 = vstv %s1144
    %v1146 = vmul.f32 %v1145, %v450
    %v1147 = vmul.f32 %v1145, %v451
    %v1148 = vadd.f32 %v1100, %v1146
    %v1149 = vadd.f32 %v1101, %v1147
    %s1150 = sld [smem:[#allocation6 + $0x48]]
    %v1151 = vstv %s1150
    %v1152 = vmul.f32 %v1151, %v450
    %v1153 = vmul.f32 %v1151, %v451
    %v1154 = vadd.f32 %v1106, %v1152
    %v1155 = vadd.f32 %v1107, %v1153
    %s1156 = sld [smem:[#allocation6 + $0x5c]]
    %v1157 = vstv %s1156
    %v1158 = vmul.f32 %v1157, %v450
    %v1159 = vmul.f32 %v1157, %v451
    %v1160 = vadd.f32 %v1112, %v1158
    %v1161 = vadd.f32 %v1113, %v1159
    %s1162 = sld [smem:[#allocation6 + $0x70]]
    %v1163 = vstv %s1162
    %v1164 = vmul.f32 %v1163, %v450
    %v1165 = vmul.f32 %v1163, %v451
    %v1166 = vadd.f32 %v1118, %v1164
    %v1167 = vadd.f32 %v1119, %v1165
    %s1168 = sld [smem:[#allocation6 + $0x84]]
    %v1169 = vstv %s1168
    %v1170 = vmul.f32 %v1169, %v450
    %v1171 = vmul.f32 %v1169, %v451
    %v1172 = vadd.f32 %v1124, %v1170
    %v1173 = vadd.f32 %v1125, %v1171
    %s1174 = sld [smem:[#allocation6 + $0x98]]
    %v1175 = vstv %s1174
    %v1176 = vmul.f32 %v1175, %v450
    %v1177 = vmul.f32 %v1175, %v451
    %v1178 = vadd.f32 %v1130, %v1176
    %v1179 = vadd.f32 %v1131, %v1177
    %s1180 = sld [smem:[#allocation6 + $0xac]]
    %v1181 = vstv %s1180
    %v1182 = vmul.f32 %v1181, %v450
    %v1183 = vmul.f32 %v1181, %v451
    %v1184 = vadd.f32 %v1136, %v1182
    %v1185 = vadd.f32 %v1137, %v1183
    %s1186 = sld [smem:[#allocation6 + $0xc0]]
    %v1187 = vstv %s1186
    %v1188 = vmul.f32 %v1187, %v450
    %v1189 = vmul.f32 %v1187, %v451
    %v1190 = vadd.f32 %v1142, %v1188
    %v1191 = vadd.f32 %v1143, %v1189
    %1192 = vrot.lane.b32.xlu0 %v450, 127
    %v1193 = vpop.permute.xlu0 %1192
    %1194 = vrot.lane.b32.xlu0 %v451, 127
    %v1195 = vpop.permute.xlu0 %1194
    %v1198 = vsel %vm284, %v1193, %v450
    %v1199 = vsel %vm284, %v1195, %v451
    %s1200 = sld [smem:[#allocation6 + $0x35]]
    %v1201 = vstv %s1200
    %v1202 = vmul.f32 %v1201, %v1198
    %v1203 = vmul.f32 %v1201, %v1199
    %v1204 = vadd.f32 %v1148, %v1202
    %v1205 = vadd.f32 %v1149, %v1203
    %s1206 = sld [smem:[#allocation6 + $0x49]]
    %v1207 = vstv %s1206
    %v1208 = vmul.f32 %v1207, %v1198
    %v1209 = vmul.f32 %v1207, %v1199
    %v1210 = vadd.f32 %v1154, %v1208
    %v1211 = vadd.f32 %v1155, %v1209
    %s1212 = sld [smem:[#allocation6 + $0x5d]]
    %v1213 = vstv %s1212
    %v1214 = vmul.f32 %v1213, %v1198
    %v1215 = vmul.f32 %v1213, %v1199
    %v1216 = vadd.f32 %v1160, %v1214
    %v1217 = vadd.f32 %v1161, %v1215
    %s1218 = sld [smem:[#allocation6 + $0x71]]
    %v1219 = vstv %s1218
    %v1220 = vmul.f32 %v1219, %v1198
    %v1221 = vmul.f32 %v1219, %v1199
    %v1222 = vadd.f32 %v1166, %v1220
    %v1223 = vadd.f32 %v1167, %v1221
    %s1224 = sld [smem:[#allocation6 + $0x85]]
    %v1225 = vstv %s1224
    %v1226 = vmul.f32 %v1225, %v1198
    %v1227 = vmul.f32 %v1225, %v1199
    %v1228 = vadd.f32 %v1172, %v1226
    %v1229 = vadd.f32 %v1173, %v1227
    %s1230 = sld [smem:[#allocation6 + $0x99]]
    %v1231 = vstv %s1230
    %v1232 = vmul.f32 %v1231, %v1198
    %v1233 = vmul.f32 %v1231, %v1199
    %v1234 = vadd.f32 %v1178, %v1232
    %v1235 = vadd.f32 %v1179, %v1233
    %s1236 = sld [smem:[#allocation6 + $0xad]]
    %v1237 = vstv %s1236
    %v1238 = vmul.f32 %v1237, %v1198
    %v1239 = vmul.f32 %v1237, %v1199
    %v1240 = vadd.f32 %v1184, %v1238
    %v1241 = vadd.f32 %v1185, %v1239
    %s1242 = sld [smem:[#allocation6 + $0xc1]]
    %v1243 = vstv %s1242
    %v1244 = vmul.f32 %v1243, %v1198
    %v1245 = vmul.f32 %v1243, %v1199
    %v1246 = vadd.f32 %v1190, %v1244
    %v1247 = vadd.f32 %v1191, %v1245
    %1248 = vset.pattern.permute.xlu0 127
    %1249 = vperm.xlu0 %1248, %v450
    %v1250 = vpop.permute.xlu0 %1249
    %1252 = vset.pattern.permute.xlu0 127
    %1253 = vperm.xlu0 %1252, %v451
    %v1254 = vpop.permute.xlu0 %1253
    %1256 = vrot.lane.b32.xlu0 %v450, 126
    %v1257 = vpop.permute.xlu0 %1256
    %1258 = vrot.lane.b32.xlu0 %v451, 126
    %v1259 = vpop.permute.xlu0 %1258
    %v1262 = vsel %vm325, %v1257, %v1250
    %v1263 = vsel %vm325, %v1259, %v1254
    %s1264 = sld [smem:[#allocation6 + $0x36]]
    %v1265 = vstv %s1264
    %v1266 = vmul.f32 %v1265, %v1262
    %v1267 = vmul.f32 %v1265, %v1263
    %v1268 = vadd.f32 %v1204, %v1266
    %v1269 = vadd.f32 %v1205, %v1267
    %s1270 = sld [smem:[#allocation6 + $0x4a]]
    %v1271 = vstv %s1270
    %v1272 = vmul.f32 %v1271, %v1262
    %v1273 = vmul.f32 %v1271, %v1263
    %v1274 = vadd.f32 %v1210, %v1272
    %v1275 = vadd.f32 %v1211, %v1273
    %s1276 = sld [smem:[#allocation6 + $0x5e]]
    %v1277 = vstv %s1276
    %v1278 = vmul.f32 %v1277, %v1262
    %v1279 = vmul.f32 %v1277, %v1263
    %v1280 = vadd.f32 %v1216, %v1278
    %v1281 = vadd.f32 %v1217, %v1279
    %s1282 = sld [smem:[#allocation6 + $0x72]]
    %v1283 = vstv %s1282
    %v1284 = vmul.f32 %v1283, %v1262
    %v1285 = vmul.f32 %v1283, %v1263
    %v1286 = vadd.f32 %v1222, %v1284
    %v1287 = vadd.f32 %v1223, %v1285
    %s1288 = sld [smem:[#allocation6 + $0x86]]
    %v1289 = vstv %s1288
    %v1290 = vmul.f32 %v1289, %v1262
    %v1291 = vmul.f32 %v1289, %v1263
    %v1292 = vadd.f32 %v1228, %v1290
    %v1293 = vadd.f32 %v1229, %v1291
    %s1294 = sld [smem:[#allocation6 + $0x9a]]
    %v1295 = vstv %s1294
    %v1296 = vmul.f32 %v1295, %v1262
    %v1297 = vmul.f32 %v1295, %v1263
    %v1298 = vadd.f32 %v1234, %v1296
    %v1299 = vadd.f32 %v1235, %v1297
    %s1300 = sld [smem:[#allocation6 + $0xae]]
    %v1301 = vstv %s1300
    %v1302 = vmul.f32 %v1301, %v1262
    %v1303 = vmul.f32 %v1301, %v1263
    %v1304 = vadd.f32 %v1240, %v1302
    %v1305 = vadd.f32 %v1241, %v1303
    %s1306 = sld [smem:[#allocation6 + $0xc2]]
    %v1307 = vstv %s1306
    %v1308 = vmul.f32 %v1307, %v1262
    %v1309 = vmul.f32 %v1307, %v1263
    %v1310 = vadd.f32 %v1246, %v1308
    %v1311 = vadd.f32 %v1247, %v1309
    %1313 = vset.pattern.permute.xlu0 0
    %1314 = vperm.xlu0 %1313, %v456
    %v1315 = vpop.permute.xlu0 %1314
    %1318 = vset.pattern.permute.xlu0 0
    %1319 = vperm.xlu0 %1318, %v457
    %v1320 = vpop.permute.xlu0 %1319
    %1322 = vrot.lane.b32.xlu0 %v456, 2
    %v1323 = vpop.permute.xlu0 %1322
    %1324 = vrot.lane.b32.xlu0 %v457, 2
    %v1325 = vpop.permute.xlu0 %1324
    %v1328 = vsel %vm194, %v1315, %v1323
    %v1329 = vsel %vm194, %v1320, %v1325
    %s1330 = sld [smem:[#allocation6 + $0x37]]
    %v1331 = vstv %s1330
    %v1332 = vmul.f32 %v1331, %v1328
    %v1333 = vmul.f32 %v1331, %v1329
    %v1334 = vadd.f32 %v1268, %v1332
    %v1335 = vadd.f32 %v1269, %v1333
    %s1336 = sld [smem:[#allocation6 + $0x4b]]
    %v1337 = vstv %s1336
    %v1338 = vmul.f32 %v1337, %v1328
    %v1339 = vmul.f32 %v1337, %v1329
    %v1340 = vadd.f32 %v1274, %v1338
    %v1341 = vadd.f32 %v1275, %v1339
    %s1342 = sld [smem:[#allocation6 + $0x5f]]
    %v1343 = vstv %s1342
    %v1344 = vmul.f32 %v1343, %v1328
    %v1345 = vmul.f32 %v1343, %v1329
    %v1346 = vadd.f32 %v1280, %v1344
    %v1347 = vadd.f32 %v1281, %v1345
    %s1348 = sld [smem:[#allocation6 + $0x73]]
    %v1349 = vstv %s1348
    %v1350 = vmul.f32 %v1349, %v1328
    %v1351 = vmul.f32 %v1349, %v1329
    %v1352 = vadd.f32 %v1286, %v1350
    %v1353 = vadd.f32 %v1287, %v1351
    %s1354 = sld [smem:[#allocation6 + $0x87]]
    %v1355 = vstv %s1354
    %v1356 = vmul.f32 %v1355, %v1328
    %v1357 = vmul.f32 %v1355, %v1329
    %v1358 = vadd.f32 %v1292, %v1356
    %v1359 = vadd.f32 %v1293, %v1357
    %s1360 = sld [smem:[#allocation6 + $0x9b]]
    %v1361 = vstv %s1360
    %v1362 = vmul.f32 %v1361, %v1328
    %v1363 = vmul.f32 %v1361, %v1329
    %v1364 = vadd.f32 %v1298, %v1362
    %v1365 = vadd.f32 %v1299, %v1363
    %s1366 = sld [smem:[#allocation6 + $0xaf]]
    %v1367 = vstv %s1366
    %v1368 = vmul.f32 %v1367, %v1328
    %v1369 = vmul.f32 %v1367, %v1329
    %v1370 = vadd.f32 %v1304, %v1368
    %v1371 = vadd.f32 %v1305, %v1369
    %s1372 = sld [smem:[#allocation6 + $0xc3]]
    %v1373 = vstv %s1372
    %v1374 = vmul.f32 %v1373, %v1328
    %v1375 = vmul.f32 %v1373, %v1329
    %v1376 = vadd.f32 %v1310, %v1374
    %v1377 = vadd.f32 %v1311, %v1375
    %1378 = vrot.lane.b32.xlu0 %v456, 1
    %v1379 = vpop.permute.xlu0 %1378
    %1380 = vrot.lane.b32.xlu0 %v457, 1
    %v1381 = vpop.permute.xlu0 %1380
    %v1384 = vsel %vm227, %v456, %v1379
    %v1385 = vsel %vm227, %v457, %v1381
    %s1386 = sld [smem:[#allocation6 + $0x38]]
    %v1387 = vstv %s1386
    %v1388 = vmul.f32 %v1387, %v1384
    %v1389 = vmul.f32 %v1387, %v1385
    %v1390 = vadd.f32 %v1334, %v1388
    %v1391 = vadd.f32 %v1335, %v1389
    %s1392 = sld [smem:[#allocation6 + $0x4c]]
    %v1393 = vstv %s1392
    %v1394 = vmul.f32 %v1393, %v1384
    %v1395 = vmul.f32 %v1393, %v1385
    %v1396 = vadd.f32 %v1340, %v1394
    %v1397 = vadd.f32 %v1341, %v1395
    %s1398 = sld [smem:[#allocation6 + $0x60]]
    %v1399 = vstv %s1398
    %v1400 = vmul.f32 %v1399, %v1384
    %v1401 = vmul.f32 %v1399, %v1385
    %v1402 = vadd.f32 %v1346, %v1400
    %v1403 = vadd.f32 %v1347, %v1401
    %s1404 = sld [smem:[#allocation6 + $0x74]]
    %v1405 = vstv %s1404
    %v1406 = vmul.f32 %v1405, %v1384
    %v1407 = vmul.f32 %v1405, %v1385
    %v1408 = vadd.f32 %v1352, %v1406
    %v1409 = vadd.f32 %v1353, %v1407
    %s1410 = sld [smem:[#allocation6 + $0x88]]
    %v1411 = vstv %s1410
    %v1412 = vmul.f32 %v1411, %v1384
    %v1413 = vmul.f32 %v1411, %v1385
    %v1414 = vadd.f32 %v1358, %v1412
    %v1415 = vadd.f32 %v1359, %v1413
    %s1416 = sld [smem:[#allocation6 + $0x9c]]
    %v1417 = vstv %s1416
    %v1418 = vmul.f32 %v1417, %v1384
    %v1419 = vmul.f32 %v1417, %v1385
    %v1420 = vadd.f32 %v1364, %v1418
    %v1421 = vadd.f32 %v1365, %v1419
    %s1422 = sld [smem:[#allocation6 + $0xb0]]
    %v1423 = vstv %s1422
    %v1424 = vmul.f32 %v1423, %v1384
    %v1425 = vmul.f32 %v1423, %v1385
    %v1426 = vadd.f32 %v1370, %v1424
    %v1427 = vadd.f32 %v1371, %v1425
    %s1428 = sld [smem:[#allocation6 + $0xc4]]
    %v1429 = vstv %s1428
    %v1430 = vmul.f32 %v1429, %v1384
    %v1431 = vmul.f32 %v1429, %v1385
    %v1432 = vadd.f32 %v1376, %v1430
    %v1433 = vadd.f32 %v1377, %v1431
    %s1434 = sld [smem:[#allocation6 + $0x39]]
    %v1435 = vstv %s1434
    %v1436 = vmul.f32 %v1435, %v456
    %v1437 = vmul.f32 %v1435, %v457
    %v1438 = vadd.f32 %v1390, %v1436
    %v1439 = vadd.f32 %v1391, %v1437
    %s1440 = sld [smem:[#allocation6 + $0x4d]]
    %v1441 = vstv %s1440
    %v1442 = vmul.f32 %v1441, %v456
    %v1443 = vmul.f32 %v1441, %v457
    %v1444 = vadd.f32 %v1396, %v1442
    %v1445 = vadd.f32 %v1397, %v1443
    %s1446 = sld [smem:[#allocation6 + $0x61]]
    %v1447 = vstv %s1446
    %v1448 = vmul.f32 %v1447, %v456
    %v1449 = vmul.f32 %v1447, %v457
    %v1450 = vadd.f32 %v1402, %v1448
    %v1451 = vadd.f32 %v1403, %v1449
    %s1452 = sld [smem:[#allocation6 + $0x75]]
    %v1453 = vstv %s1452
    %v1454 = vmul.f32 %v1453, %v456
    %v1455 = vmul.f32 %v1453, %v457
    %v1456 = vadd.f32 %v1408, %v1454
    %v1457 = vadd.f32 %v1409, %v1455
    %s1458 = sld [smem:[#allocation6 + $0x89]]
    %v1459 = vstv %s1458
    %v1460 = vmul.f32 %v1459, %v456
    %v1461 = vmul.f32 %v1459, %v457
    %v1462 = vadd.f32 %v1414, %v1460
    %v1463 = vadd.f32 %v1415, %v1461
    %s1464 = sld [smem:[#allocation6 + $0x9d]]
    %v1465 = vstv %s1464
    %v1466 = vmul.f32 %v1465, %v456
    %v1467 = vmul.f32 %v1465, %v457
    %v1468 = vadd.f32 %v1420, %v1466
    %v1469 = vadd.f32 %v1421, %v1467
    %s1470 = sld [smem:[#allocation6 + $0xb1]]
    %v1471 = vstv %s1470
    %v1472 = vmul.f32 %v1471, %v456
    %v1473 = vmul.f32 %v1471, %v457
    %v1474 = vadd.f32 %v1426, %v1472
    %v1475 = vadd.f32 %v1427, %v1473
    %s1476 = sld [smem:[#allocation6 + $0xc5]]
    %v1477 = vstv %s1476
    %v1478 = vmul.f32 %v1477, %v456
    %v1479 = vmul.f32 %v1477, %v457
    %v1480 = vadd.f32 %v1432, %v1478
    %v1481 = vadd.f32 %v1433, %v1479
    %1482 = vrot.lane.b32.xlu0 %v456, 127
    %v1483 = vpop.permute.xlu0 %1482
    %1484 = vrot.lane.b32.xlu0 %v457, 127
    %v1485 = vpop.permute.xlu0 %1484
    %v1488 = vsel %vm284, %v1483, %v456
    %v1489 = vsel %vm284, %v1485, %v457
    %s1490 = sld [smem:[#allocation6 + $0x3a]]
    %v1491 = vstv %s1490
    %v1492 = vmul.f32 %v1491, %v1488
    %v1493 = vmul.f32 %v1491, %v1489
    %v1494 = vadd.f32 %v1438, %v1492
    %v1495 = vadd.f32 %v1439, %v1493
    %s1496 = sld [smem:[#allocation6 + $0x4e]]
    %v1497 = vstv %s1496
    %v1498 = vmul.f32 %v1497, %v1488
    %v1499 = vmul.f32 %v1497, %v1489
    %v1500 = vadd.f32 %v1444, %v1498
    %v1501 = vadd.f32 %v1445, %v1499
    %s1502 = sld [smem:[#allocation6 + $0x62]]
    %v1503 = vstv %s1502
    %v1504 = vmul.f32 %v1503, %v1488
    %v1505 = vmul.f32 %v1503, %v1489
    %v1506 = vadd.f32 %v1450, %v1504
    %v1507 = vadd.f32 %v1451, %v1505
    %s1508 = sld [smem:[#allocation6 + $0x76]]
    %v1509 = vstv %s1508
    %v1510 = vmul.f32 %v1509, %v1488
    %v1511 = vmul.f32 %v1509, %v1489
    %v1512 = vadd.f32 %v1456, %v1510
    %v1513 = vadd.f32 %v1457, %v1511
    %s1514 = sld [smem:[#allocation6 + $0x8a]]
    %v1515 = vstv %s1514
    %v1516 = vmul.f32 %v1515, %v1488
    %v1517 = vmul.f32 %v1515, %v1489
    %v1518 = vadd.f32 %v1462, %v1516
    %v1519 = vadd.f32 %v1463, %v1517
    %s1520 = sld [smem:[#allocation6 + $0x9e]]
    %v1521 = vstv %s1520
    %v1522 = vmul.f32 %v1521, %v1488
    %v1523 = vmul.f32 %v1521, %v1489
    %v1524 = vadd.f32 %v1468, %v1522
    %v1525 = vadd.f32 %v1469, %v1523
    %s1526 = sld [smem:[#allocation6 + $0xb2]]
    %v1527 = vstv %s1526
    %v1528 = vmul.f32 %v1527, %v1488
    %v1529 = vmul.f32 %v1527, %v1489
    %v1530 = vadd.f32 %v1474, %v1528
    %v1531 = vadd.f32 %v1475, %v1529
    %s1532 = sld [smem:[#allocation6 + $0xc6]]
    %v1533 = vstv %s1532
    %v1534 = vmul.f32 %v1533, %v1488
    %v1535 = vmul.f32 %v1533, %v1489
    %v1536 = vadd.f32 %v1480, %v1534
    %v1537 = vadd.f32 %v1481, %v1535
    %1538 = vset.pattern.permute.xlu0 127
    %1539 = vperm.xlu0 %1538, %v456
    %v1540 = vpop.permute.xlu0 %1539
    %1542 = vset.pattern.permute.xlu0 127
    %1543 = vperm.xlu0 %1542, %v457
    %v1544 = vpop.permute.xlu0 %1543
    %1546 = vrot.lane.b32.xlu0 %v456, 126
    %v1547 = vpop.permute.xlu0 %1546
    %1548 = vrot.lane.b32.xlu0 %v457, 126
    %v1549 = vpop.permute.xlu0 %1548
    %v1552 = vsel %vm325, %v1547, %v1540
    %v1553 = vsel %vm325, %v1549, %v1544
    %s1554 = sld [smem:[#allocation6 + $0x3b]]
    %v1555 = vstv %s1554
    %v1556 = vmul.f32 %v1555, %v1552
    %v1557 = vmul.f32 %v1555, %v1553
    %v1558 = vadd.f32 %v1494, %v1556
    %v1559 = vadd.f32 %v1495, %v1557
    %s1560 = sld [smem:[#allocation6 + $0x4f]]
    %v1561 = vstv %s1560
    %v1562 = vmul.f32 %v1561, %v1552
    %v1563 = vmul.f32 %v1561, %v1553
    %v1564 = vadd.f32 %v1500, %v1562
    %v1565 = vadd.f32 %v1501, %v1563
    %s1566 = sld [smem:[#allocation6 + $0x63]]
    %v1567 = vstv %s1566
    %v1568 = vmul.f32 %v1567, %v1552
    %v1569 = vmul.f32 %v1567, %v1553
    %v1570 = vadd.f32 %v1506, %v1568
    %v1571 = vadd.f32 %v1507, %v1569
    %s1572 = sld [smem:[#allocation6 + $0x77]]
    %v1573 = vstv %s1572
    %v1574 = vmul.f32 %v1573, %v1552
    %v1575 = vmul.f32 %v1573, %v1553
    %v1576 = vadd.f32 %v1512, %v1574
    %v1577 = vadd.f32 %v1513, %v1575
    %s1578 = sld [smem:[#allocation6 + $0x8b]]
    %v1579 = vstv %s1578
    %v1580 = vmul.f32 %v1579, %v1552
    %v1581 = vmul.f32 %v1579, %v1553
    %v1582 = vadd.f32 %v1518, %v1580
    %v1583 = vadd.f32 %v1519, %v1581
    %s1584 = sld [smem:[#allocation6 + $0x9f]]
    %v1585 = vstv %s1584
    %v1586 = vmul.f32 %v1585, %v1552
    %v1587 = vmul.f32 %v1585, %v1553
    %v1588 = vadd.f32 %v1524, %v1586
    %v1589 = vadd.f32 %v1525, %v1587
    %s1590 = sld [smem:[#allocation6 + $0xb3]]
    %v1591 = vstv %s1590
    %v1592 = vmul.f32 %v1591, %v1552
    %v1593 = vmul.f32 %v1591, %v1553
    %v1594 = vadd.f32 %v1530, %v1592
    %v1595 = vadd.f32 %v1531, %v1593
    %s1596 = sld [smem:[#allocation6 + $0xc7]]
    %v1597 = vstv %s1596
    %v1598 = vmul.f32 %v1597, %v1552
    %v1599 = vmul.f32 %v1597, %v1553
    %v1600 = vadd.f32 %v1536, %v1598
    %v1601 = vadd.f32 %v1537, %v1599
    %s1602 = sld [smem:[#allocation6 + $0xc8]]
    %v1603 = vstv %s1602
    %v1604 = vadd.f32 %v1558, %v1603
    %v1605 = vadd.f32 %v1559, %v1603
    %s1606 = sld [smem:[#allocation6 + $0xc9]]
    %v1607 = vstv %s1606
    %v1608 = vadd.f32 %v1564, %v1607
    %v1609 = vadd.f32 %v1565, %v1607
    %s1610 = sld [smem:[#allocation6 + $0xca]]
    %v1611 = vstv %s1610
    %v1612 = vadd.f32 %v1570, %v1611
    %v1613 = vadd.f32 %v1571, %v1611
    %s1614 = sld [smem:[#allocation6 + $0xcb]]
    %v1615 = vstv %s1614
    %v1616 = vadd.f32 %v1576, %v1615
    %v1617 = vadd.f32 %v1577, %v1615
    %s1618 = sld [smem:[#allocation6 + $0xcc]]
    %v1619 = vstv %s1618
    %v1620 = vadd.f32 %v1582, %v1619
    %v1621 = vadd.f32 %v1583, %v1619
    %s1622 = sld [smem:[#allocation6 + $0xcd]]
    %v1623 = vstv %s1622
    %v1624 = vadd.f32 %v1588, %v1623
    %v1625 = vadd.f32 %v1589, %v1623
    %s1626 = sld [smem:[#allocation6 + $0xce]]
    %v1627 = vstv %s1626
    %v1628 = vadd.f32 %v1594, %v1627
    %v1629 = vadd.f32 %v1595, %v1627
    %s1630 = sld [smem:[#allocation6 + $0xcf]]
    %v1631 = vstv %s1630
    %v1632 = vadd.f32 %v1600, %v1631
    %v1633 = vadd.f32 %v1601, %v1631
    %vm1634 = vcmp.gt.f32.partialorder %v1604, 0.0
    %vm1635 = vcmp.gt.f32.partialorder %v1605, 0.0
    %v1636 = vmul.f32 %v1604, 0.01
    %v1637 = vmul.f32 %v1605, 0.01
    %v1638 = vsel %vm1634, %v1604, %v1636
    %v1639 = vsel %vm1635, %v1605, %v1637
    %vm1640 = vcmp.gt.f32.partialorder %v1608, 0.0
    %vm1641 = vcmp.gt.f32.partialorder %v1609, 0.0
    %v1642 = vmul.f32 %v1608, 0.01
    %v1643 = vmul.f32 %v1609, 0.01
    %v1644 = vsel %vm1640, %v1608, %v1642
    %v1645 = vsel %vm1641, %v1609, %v1643
    %vm1646 = vcmp.gt.f32.partialorder %v1612, 0.0
    %vm1647 = vcmp.gt.f32.partialorder %v1613, 0.0
    %v1648 = vmul.f32 %v1612, 0.01
    %v1649 = vmul.f32 %v1613, 0.01
    %v1650 = vsel %vm1646, %v1612, %v1648
    %v1651 = vsel %vm1647, %v1613, %v1649
    %vm1652 = vcmp.gt.f32.partialorder %v1616, 0.0
    %vm1653 = vcmp.gt.f32.partialorder %v1617, 0.0
    %v1654 = vmul.f32 %v1616, 0.01
    %v1655 = vmul.f32 %v1617, 0.01
    %v1656 = vsel %vm1652, %v1616, %v1654
    %v1657 = vsel %vm1653, %v1617, %v1655
    %vm1658 = vcmp.gt.f32.partialorder %v1620, 0.0
    %vm1659 = vcmp.gt.f32.partialorder %v1621, 0.0
    %v1660 = vmul.f32 %v1620, 0.01
    %v1661 = vmul.f32 %v1621, 0.01
    %v1662 = vsel %vm1658, %v1620, %v1660
    %v1663 = vsel %vm1659, %v1621, %v1661
    %vm1664 = vcmp.gt.f32.partialorder %v1624, 0.0
    %vm1665 = vcmp.gt.f32.partialorder %v1625, 0.0
    %v1666 = vmul.f32 %v1624, 0.01
    %v1667 = vmul.f32 %v1625, 0.01
    %v1668 = vsel %vm1664, %v1624, %v1666
    %v1669 = vsel %vm1665, %v1625, %v1667
    %vm1670 = vcmp.gt.f32.partialorder %v1628, 0.0
    %vm1671 = vcmp.gt.f32.partialorder %v1629, 0.0
    %v1672 = vmul.f32 %v1628, 0.01
    %v1673 = vmul.f32 %v1629, 0.01
    %v1674 = vsel %vm1670, %v1628, %v1672
    %v1675 = vsel %vm1671, %v1629, %v1673
    %vm1676 = vcmp.gt.f32.partialorder %v1632, 0.0
    %vm1677 = vcmp.gt.f32.partialorder %v1633, 0.0
    %v1678 = vmul.f32 %v1632, 0.01
    %v1679 = vmul.f32 %v1633, 0.01
    %v1680 = vsel %vm1676, %v1632, %v1678
    %v1681 = vsel %vm1677, %v1633, %v1679
    %v1682 = vpack.c.bf16 %v1639, %v1638
    %v1683 = vpack.c.bf16 %v1645, %v1644
    %v1684 = vpack.c.bf16 %v1651, %v1650
    %v1685 = vpack.c.bf16 %v1657, %v1656
    %v1686 = vpack.c.bf16 %v1663, %v1662
    %v1687 = vpack.c.bf16 %v1669, %v1668
    %v1688 = vpack.c.bf16 %v1675, %v1674
    %v1689 = vpack.c.bf16 %v1681, %v1680
    %v1690 = vld [vmem:[#allocation7] sm:$0xf]
    %v1691 = vld [vmem:[#allocation7 + $0x4] sm:$0xf]
    %v1692 = vld [vmem:[#allocation7 + $0x8] sm:$0xf]
    %v1693 = vld [vmem:[#allocation7 + $0xc] sm:$0xf]
    %v1694 = vld [vmem:[#allocation7 + $0x10] sm:$0xf]
    %v1695 = vld [vmem:[#allocation7 + $0x14] sm:$0xf]
    %v1696 = vld [vmem:[#allocation7 + $0x18] sm:$0xf]
    %v1697 = vld [vmem:[#allocation7 + $0x1c] sm:$0xf]
    %v1698 = vld [vmem:[#allocation7 + $0x20] sm:$0xf]
    %v1699 = vld [vmem:[#allocation7 + $0x24] sm:$0xf]
    %v1700 = vld [vmem:[#allocation7 + $0x28] sm:$0xf]
    %v1701 = vld [vmem:[#allocation7 + $0x2c] sm:$0xf]
    %v1702 = vld [vmem:[#allocation7 + $0x30] sm:$0xf]
    %v1703 = vld [vmem:[#allocation7 + $0x34] sm:$0xf]
    %v1704 = vld [vmem:[#allocation7 + $0x38] sm:$0xf]
    %v1705 = vld [vmem:[#allocation7 + $0x3c] sm:$0xf]
    %v1722 = vunpack.c.l.b16 %v1690
    %v1723 = vunpack.c.l.b16 %v1691
    %v1724 = vunpack.c.l.b16 %v1692
    %v1725 = vunpack.c.l.b16 %v1693
    %v1726 = vunpack.c.l.b16 %v1694
    %v1727 = vunpack.c.l.b16 %v1695
    %v1728 = vunpack.c.l.b16 %v1696
    %v1729 = vunpack.c.l.b16 %v1697
    %v1730 = vunpack.c.l.b16 %v1698
    %v1731 = vunpack.c.l.b16 %v1699
    %v1732 = vunpack.c.l.b16 %v1700
    %v1733 = vunpack.c.l.b16 %v1701
    %v1734 = vunpack.c.l.b16 %v1702
    %v1735 = vunpack.c.l.b16 %v1703
    %v1736 = vunpack.c.l.b16 %v1704
    %v1737 = vunpack.c.l.b16 %v1705
    %v1738 = vpack.c.b16 %v1723, %v1722
    %v1739 = vpack.c.b16 %v1725, %v1724
    %v1740 = vpack.c.b16 %v1727, %v1726
    %v1741 = vpack.c.b16 %v1729, %v1728
    %v1742 = vpack.c.b16 %v1731, %v1730
    %v1743 = vpack.c.b16 %v1733, %v1732
    %v1744 = vpack.c.b16 %v1735, %v1734
    %v1745 = vpack.c.b16 %v1737, %v1736
    %1754 = vmatprep.subr.bf16.mxu0 0
    %1755 = vmatpush1.bf16.msra.mxu0 %v1738
    %1756 = vmatprep.subr.bf16.mxu0 0
    %1757 = vmatpush1.bf16.msra.mxu0 %v1739
    %1758 = vmatprep.subr.bf16.mxu0 0
    %1759 = vmatpush1.bf16.msra.mxu0 %v1740
    %1760 = vmatprep.subr.bf16.mxu0 0
    %1761 = vmatpush1.bf16.msra.mxu0 %v1741
    %1762 = vmatprep.subr.bf16.mxu0 0
    %1763 = vmatpush1.bf16.msra.mxu0 %v1742
    %1764 = vmatprep.subr.bf16.mxu0 0
    %1765 = vmatpush1.bf16.msra.mxu0 %v1743
    %1766 = vmatprep.subr.bf16.mxu0 0
    %1767 = vmatpush1.bf16.msra.mxu0 %v1744
    %1768 = vmatprep.subr.bf16.mxu0 0
    %1769 = vmatpush1.bf16.msra.mxu0 %v1745
    %1770 = vmatprep.subr.bf16.mxu0 0
    %1771 = vmatpush1.bf16.msra.mxu0 0
    %1772 = vmatprep.subr.bf16.mxu0 0
    %1773 = vmatpush1.bf16.msra.mxu0 0
    %1774 = vmatprep.subr.bf16.mxu0 0
    %1775 = vmatpush1.bf16.msra.mxu0 0
    %1776 = vmatprep.subr.bf16.mxu0 0
    %1777 = vmatpush1.bf16.msra.mxu0 0
    %1778 = vmatprep.subr.bf16.mxu0 0
    %1779 = vmatpush1.bf16.msra.mxu0 0
    %1780 = vmatprep.subr.bf16.mxu0 0
    %1781 = vmatpush1.bf16.msra.mxu0 0
    %1782 = vmatprep.subr.bf16.mxu0 0
    %1783 = vmatpush1.bf16.msra.mxu0 0
    %1784 = vmatprep.subr.bf16.mxu0 0
    %1785 = vmatpush1.bf16.msra.mxu0 0
    %1786 = vmatprep.mubr.bf16.mxu0 0
    %1787 = vmatmul.mubr.bf16.gmra.mrb[0].mxu0 %v1682
    %v1788 = vpop.f32.mrb[0].mxu0
    %v1789 = vadd.f32 0.0, %v1788
    %v1790 = vpop.f32.mrb[0].mxu0
    %v1791 = vpop.f32.mrb[0].mxu0
    %v1792 = vadd.f32 0.0, %v1791
    %v1793 = vpop.f32.mrb[0].mxu0
    %1794 = vmatprep.mubr.bf16.mxu0 0
    %1795 = vmatmul.mubr.bf16.gmra.mrb[0].mxu0 %v1683
    %v1796 = vpop.f32.mrb[0].mxu0
    %v1797 = vadd.f32 0.0, %v1796
    %v1798 = vpop.f32.mrb[0].mxu0
    %v1799 = vpop.f32.mrb[0].mxu0
    %v1800 = vadd.f32 0.0, %v1799
    %v1801 = vpop.f32.mrb[0].mxu0
    %1802 = vmatprep.mubr.bf16.mxu0 0
    %1803 = vmatmul.mubr.bf16.gmra.mrb[0].mxu0 %v1684
    %v1804 = vpop.f32.mrb[0].mxu0
    %v1805 = vadd.f32 0.0, %v1804
    %v1806 = vpop.f32.mrb[0].mxu0
    %v1807 = vpop.f32.mrb[0].mxu0
    %v1808 = vadd.f32 0.0, %v1807
    %v1809 = vpop.f32.mrb[0].mxu0
    %1810 = vmatprep.mubr.bf16.mxu0 0
    %1811 = vmatmul.mubr.bf16.gmra.mrb[0].mxu0 %v1685
    %v1812 = vpop.f32.mrb[0].mxu0
    %v1813 = vadd.f32 0.0, %v1812
    %v1814 = vpop.f32.mrb[0].mxu0
    %v1815 = vpop.f32.mrb[0].mxu0
    %v1816 = vadd.f32 0.0, %v1815
    %v1817 = vpop.f32.mrb[0].mxu0
    %1818 = vmatprep.mubr.bf16.mxu0 0
    %1819 = vmatmul.mubr.bf16.gmra.mrb[0].mxu0 %v1686
    %v1820 = vpop.f32.mrb[0].mxu0
    %v1821 = vadd.f32 0.0, %v1820
    %v1822 = vpop.f32.mrb[0].mxu0
    %v1823 = vpop.f32.mrb[0].mxu0
    %v1824 = vadd.f32 0.0, %v1823
    %v1825 = vpop.f32.mrb[0].mxu0
    %1826 = vmatprep.mubr.bf16.mxu0 0
    %1827 = vmatmul.mubr.bf16.gmra.mrb[0].mxu0 %v1687
    %v1828 = vpop.f32.mrb[0].mxu0
    %v1829 = vadd.f32 0.0, %v1828
    %v1830 = vpop.f32.mrb[0].mxu0
    %v1831 = vpop.f32.mrb[0].mxu0
    %v1832 = vadd.f32 0.0, %v1831
    %v1833 = vpop.f32.mrb[0].mxu0
    %1834 = vmatprep.mubr.bf16.mxu0 0
    %1835 = vmatmul.mubr.bf16.gmra.mrb[0].mxu0 %v1688
    %v1836 = vpop.f32.mrb[0].mxu0
    %v1837 = vadd.f32 0.0, %v1836
    %v1838 = vpop.f32.mrb[0].mxu0
    %v1839 = vpop.f32.mrb[0].mxu0
    %v1840 = vadd.f32 0.0, %v1839
    %v1841 = vpop.f32.mrb[0].mxu0
    %1842 = vmatprep.mubr.bf16.mxu0 0
    %1843 = vmatmul.mubr.bf16.gmra.mrb[0].mxu0 %v1689
    %v1844 = vpop.f32.mrb[0].mxu0
    %v1845 = vadd.f32 0.0, %v1844
    %v1846 = vpop.f32.mrb[0].mxu0
    %v1847 = vpop.f32.mrb[0].mxu0
    %v1848 = vadd.f32 0.0, %v1847
    %v1849 = vpop.f32.mrb[0].mxu0
    %1850 = vdwg.mxu0
    %1867 = vrot.lane.b32.xlu0 %v1789, 64
    %v1868 = vpop.permute.xlu0 %1867
    %1869 = vrot.lane.b32.xlu0 %v1792, 64
    %v1870 = vpop.permute.xlu0 %1869
    %1871 = vrot.lane.b32.xlu0 %v1797, 64
    %v1872 = vpop.permute.xlu0 %1871
    %1873 = vrot.lane.b32.xlu0 %v1800, 64
    %v1874 = vpop.permute.xlu0 %1873
    %1875 = vrot.lane.b32.xlu0 %v1805, 64
    %v1876 = vpop.permute.xlu0 %1875
    %1877 = vrot.lane.b32.xlu0 %v1808, 64
    %v1878 = vpop.permute.xlu0 %1877
    %1879 = vrot.lane.b32.xlu0 %v1813, 64
    %v1880 = vpop.permute.xlu0 %1879
    %1881 = vrot.lane.b32.xlu0 %v1816, 64
    %v1882 = vpop.permute.xlu0 %1881
    %1883 = vrot.lane.b32.xlu0 %v1821, 64
    %v1884 = vpop.permute.xlu0 %1883
    %1885 = vrot.lane.b32.xlu0 %v1824, 64
    %v1886 = vpop.permute.xlu0 %1885
    %1887 = vrot.lane.b32.xlu0 %v1829, 64
    %v1888 = vpop.permute.xlu0 %1887
    %1889 = vrot.lane.b32.xlu0 %v1832, 64
    %v1890 = vpop.permute.xlu0 %1889
    %1891 = vrot.lane.b32.xlu0 %v1837, 64
    %v1892 = vpop.permute.xlu0 %1891
    %1893 = vrot.lane.b32.xlu0 %v1840, 64
    %v1894 = vpop.permute.xlu0 %1893
    %1895 = vrot.lane.b32.xlu0 %v1845, 64
    %v1896 = vpop.permute.xlu0 %1895
    %1897 = vrot.lane.b32.xlu0 %v1848, 64
    %v1898 = vpop.permute.xlu0 %1897
    %v1915 = vmax.f32 %v1789, %v1868
    %v1916 = vmax.f32 %v1792, %v1870
    %v1917 = vmax.f32 %v1797, %v1872
    %v1918 = vmax.f32 %v1800, %v1874
    %v1919 = vmax.f32 %v1805, %v1876
    %v1920 = vmax.f32 %v1808, %v1878
    %v1921 = vmax.f32 %v1813, %v1880
    %v1922 = vmax.f32 %v1816, %v1882
    %v1923 = vmax.f32 %v1821, %v1884
    %v1924 = vmax.f32 %v1824, %v1886
    %v1925 = vmax.f32 %v1829, %v1888
    %v1926 = vmax.f32 %v1832, %v1890
    %v1927 = vmax.f32 %v1837, %v1892
    %v1928 = vmax.f32 %v1840, %v1894
    %v1929 = vmax.f32 %v1845, %v1896
    %v1930 = vmax.f32 %v1848, %v1898
    %v1931 = vld [vmem:[#allocation10] sm:$0xff]
    %v1932 = vld [vmem:[#allocation10 + $0x8] sm:$0xff]
    %v1933 = vld [vmem:[#allocation10 + $0x10] sm:$0xff]
    %v1934 = vld [vmem:[#allocation10 + $0x18] sm:$0xff]
    %v1935 = vld [vmem:[#allocation10 + $0x20] sm:$0xff]
    %v1936 = vld [vmem:[#allocation10 + $0x28] sm:$0xff]
    %v1937 = vld [vmem:[#allocation10 + $0x30] sm:$0xff]
    %v1938 = vld [vmem:[#allocation10 + $0x38] sm:$0xff]
    %v1939 = vld [vmem:[#allocation10 + $0x40] sm:$0xff]
    %v1940 = vld [vmem:[#allocation10 + $0x48] sm:$0xff]
    %v1941 = vld [vmem:[#allocation10 + $0x50] sm:$0xff]
    %v1942 = vld [vmem:[#allocation10 + $0x58] sm:$0xff]
    %v1943 = vld [vmem:[#allocation10 + $0x60] sm:$0xff]
    %v1944 = vld [vmem:[#allocation10 + $0x68] sm:$0xff]
    %v1945 = vld [vmem:[#allocation10 + $0x70] sm:$0xff]
    %v1946 = vld [vmem:[#allocation10 + $0x78] sm:$0xff]
    %v1947 = vpack.c.bf16 %v1916, %v1915
    %v1948 = vpack.c.bf16 %v1918, %v1917
    %v1949 = vpack.c.bf16 %v1920, %v1919
    %v1950 = vpack.c.bf16 %v1922, %v1921
    %v1951 = vpack.c.bf16 %v1924, %v1923
    %v1952 = vpack.c.bf16 %v1926, %v1925
    %v1953 = vpack.c.bf16 %v1928, %v1927
    %v1954 = vpack.c.bf16 %v1930, %v1929
    %v1955 = vld [vmem:[#allocation9] sm:$0xff]
    %v1956 = vld [vmem:[#allocation9 + $0x8] sm:$0xff]
    %v1957 = vld [vmem:[#allocation9 + $0x10] sm:$0xff]
    %v1958 = vld [vmem:[#allocation9 + $0x18] sm:$0xff]
    %v1959 = vld [vmem:[#allocation9 + $0x20] sm:$0xff]
    %v1960 = vld [vmem:[#allocation9 + $0x28] sm:$0xff]
    %v1961 = vld [vmem:[#allocation9 + $0x30] sm:$0xff]
    %v1962 = vld [vmem:[#allocation9 + $0x38] sm:$0xff]
    %v1963 = vld [vmem:[%s4] sm:$0x3]
    %v1965 = vlaneseq
    %v1966 = vshrl.u32 %v1965, 7
    %v1967 = vsub.s32 0, %v1966
    %v1968 = vrot.slane %v1963, %v1967
    %v1969 = vlaneseq
    %v1970 = vshrl.u32 %v1969, 7
    %v1971 = vsub.s32 1, %v1970
    %v1972 = vrot.slane %v1963, %v1971
    %v1983 = vunpack.c.l.b16 %v1955
    %v1984 = vunpack.c.h.b16 %v1955
    %v1985 = vunpack.c.l.b16 %v1956
    %v1986 = vunpack.c.h.b16 %v1956
    %v1987 = vunpack.c.l.b16 %v1957
    %v1988 = vunpack.c.h.b16 %v1957
    %v1989 = vunpack.c.l.b16 %v1958
    %v1990 = vunpack.c.h.b16 %v1958
    %v1991 = vunpack.c.l.b16 %v1959
    %v1992 = vunpack.c.h.b16 %v1959
    %v1993 = vunpack.c.l.b16 %v1960
    %v1994 = vunpack.c.h.b16 %v1960
    %v1995 = vunpack.c.l.b16 %v1961
    %v1996 = vunpack.c.h.b16 %v1961
    %v1997 = vunpack.c.l.b16 %v1962
    %v1998 = vunpack.c.h.b16 %v1962
    %v1999 = vpack.c.b16 %v1985, %v1983
    %v2000 = vpack.c.b16 %v1986, %v1984
    %v2001 = vpack.c.b16 %v1989, %v1987
    %v2002 = vpack.c.b16 %v1990, %v1988
    %v2003 = vpack.c.b16 %v1993, %v1991
    %v2004 = vpack.c.b16 %v1994, %v1992
    %v2005 = vpack.c.b16 %v1997, %v1995
    %v2006 = vpack.c.b16 %v1998, %v1996
    %vm2015 = vcmask 523264
    %v2017 = vsel %vm2015, %v1947, 0
    %v2020 = vsel %vm2015, %v1948, 0
    %v2023 = vsel %vm2015, %v1949, 0
    %v2026 = vsel %vm2015, %v1950, 0
    %v2029 = vsel %vm2015, %v1951, 0
    %v2032 = vsel %vm2015, %v1952, 0
    %v2035 = vsel %vm2015, %v1953, 0
    %v2038 = vsel %vm2015, %v1954, 0
    %2040 = vmatprep.subr.bf16.mxu0 %v2000
    %2041 = vmatpush1.bf16.msra.mxu0 %v1999
    %2042 = vmatprep.subr.bf16.mxu0 %v2002
    %2043 = vmatpush1.bf16.msra.mxu0 %v2001
    %2044 = vmatprep.subr.bf16.mxu0 %v2004
    %2045 = vmatpush1.bf16.msra.mxu0 %v2003
    %2046 = vmatprep.subr.bf16.mxu0 %v2006
    %2047 = vmatpush1.bf16.msra.mxu0 %v2005
    %2048 = vmatprep.subr.bf16.mxu0 0
    %2049 = vmatpush1.bf16.msra.mxu0 0
    %2050 = vmatprep.subr.bf16.mxu0 0
    %2051 = vmatpush1.bf16.msra.mxu0 0
    %2052 = vmatprep.subr.bf16.mxu0 0
    %2053 = vmatpush1.bf16.msra.mxu0 0
    %2054 = vmatprep.subr.bf16.mxu0 0
    %2055 = vmatpush1.bf16.msra.mxu0 0
    %2056 = vmatprep.subr.bf16.mxu0 0
    %2057 = vmatpush1.bf16.msra.mxu0 0
    %2058 = vmatprep.subr.bf16.mxu0 0
    %2059 = vmatpush1.bf16.msra.mxu0 0
    %2060 = vmatprep.subr.bf16.mxu0 0
    %2061 = vmatpush1.bf16.msra.mxu0 0
    %2062 = vmatprep.subr.bf16.mxu0 0
    %2063 = vmatpush1.bf16.msra.mxu0 0
    %2064 = vmatprep.subr.bf16.mxu0 0
    %2065 = vmatpush1.bf16.msra.mxu0 0
    %2066 = vmatprep.subr.bf16.mxu0 0
    %2067 = vmatpush1.bf16.msra.mxu0 0
    %2068 = vmatprep.subr.bf16.mxu0 0
    %2069 = vmatpush1.bf16.msra.mxu0 0
    %2070 = vmatprep.subr.bf16.mxu0 0
    %2071 = vmatpush1.bf16.msra.mxu0 0
    %2072 = vmatprep.mubr.bf16.mxu0 0
    %2073 = vmatmul.mubr.bf16.gmra.mrb[0].mxu0 %v2017
    %v2074 = vpop.f32.mrb[0].mxu0
    %v2075 = vadd.f32 %v1968, %v2074
    %v2076 = vpop.f32.mrb[0].mxu0
    %v2077 = vadd.f32 %v1972, %v2076
    %v2078 = vpop.f32.mrb[0].mxu0
    %v2079 = vadd.f32 %v1968, %v2078
    %v2080 = vpop.f32.mrb[0].mxu0
    %v2081 = vadd.f32 %v1972, %v2080
    %2082 = vmatprep.mubr.bf16.mxu0 0
    %2083 = vmatmul.mubr.bf16.gmra.mrb[0].mxu0 %v2020
    %v2084 = vpop.f32.mrb[0].mxu0
    %v2085 = vadd.f32 %v1968, %v2084
    %v2086 = vpop.f32.mrb[0].mxu0
    %v2087 = vadd.f32 %v1972, %v2086
    %v2088 = vpop.f32.mrb[0].mxu0
    %v2089 = vadd.f32 %v1968, %v2088
    %v2090 = vpop.f32.mrb[0].mxu0
    %v2091 = vadd.f32 %v1972, %v2090
    %2092 = vmatprep.mubr.bf16.mxu0 0
    %2093 = vmatmul.mubr.bf16.gmra.mrb[0].mxu0 %v2023
    %v2094 = vpop.f32.mrb[0].mxu0
    %v2095 = vadd.f32 %v1968, %v2094
    %v2096 = vpop.f32.mrb[0].mxu0
    %v2097 = vadd.f32 %v1972, %v2096
    %v2098 = vpop.f32.mrb[0].mxu0
    %v2099 = vadd.f32 %v1968, %v2098
    %v2100 = vpop.f32.mrb[0].mxu0
    %v2101 = vadd.f32 %v1972, %v2100
    %2102 = vmatprep.mubr.bf16.mxu0 0
    %2103 = vmatmul.mubr.bf16.gmra.mrb[0].mxu0 %v2026
    %v2104 = vpop.f32.mrb[0].mxu0
    %v2105 = vadd.f32 %v1968, %v2104
    %v2106 = vpop.f32.mrb[0].mxu0
    %v2107 = vadd.f32 %v1972, %v2106
    %v2108 = vpop.f32.mrb[0].mxu0
    %v2109 = vadd.f32 %v1968, %v2108
    %v2110 = vpop.f32.mrb[0].mxu0
    %v2111 = vadd.f32 %v1972, %v2110
    %2112 = vmatprep.mubr.bf16.mxu0 0
    %2113 = vmatmul.mubr.bf16.gmra.mrb[0].mxu0 %v2029
    %v2114 = vpop.f32.mrb[0].mxu0
    %v2115 = vadd.f32 %v1968, %v2114
    %v2116 = vpop.f32.mrb[0].mxu0
    %v2117 = vadd.f32 %v1972, %v2116
    %v2118 = vpop.f32.mrb[0].mxu0
    %v2119 = vadd.f32 %v1968, %v2118
    %v2120 = vpop.f32.mrb[0].mxu0
    %v2121 = vadd.f32 %v1972, %v2120
    %2122 = vmatprep.mubr.bf16.mxu0 0
    %2123 = vmatmul.mubr.bf16.gmra.mrb[0].mxu0 %v2032
    %v2124 = vpop.f32.mrb[0].mxu0
    %v2125 = vadd.f32 %v1968, %v2124
    %v2126 = vpop.f32.mrb[0].mxu0
    %v2127 = vadd.f32 %v1972, %v2126
    %v2128 = vpop.f32.mrb[0].mxu0
    %v2129 = vadd.f32 %v1968, %v2128
    %v2130 = vpop.f32.mrb[0].mxu0
    %v2131 = vadd.f32 %v1972, %v2130
    %2132 = vmatprep.mubr.bf16.mxu0 0
    %2133 = vmatmul.mubr.bf16.gmra.mrb[0].mxu0 %v2035
    %v2134 = vpop.f32.mrb[0].mxu0
    %v2135 = vadd.f32 %v1968, %v2134
    %v2136 = vpop.f32.mrb[0].mxu0
    %v2137 = vadd.f32 %v1972, %v2136
    %v2138 = vpop.f32.mrb[0].mxu0
    %v2139 = vadd.f32 %v1968, %v2138
    %v2140 = vpop.f32.mrb[0].mxu0
    %v2141 = vadd.f32 %v1972, %v2140
    %2142 = vmatprep.mubr.bf16.mxu0 0
    %2143 = vmatmul.mubr.bf16.gmra.mrb[0].mxu0 %v2038
    %v2144 = vpop.f32.mrb[0].mxu0
    %v2145 = vadd.f32 %v1968, %v2144
    %v2146 = vpop.f32.mrb[0].mxu0
    %v2147 = vadd.f32 %v1972, %v2146
    %v2148 = vpop.f32.mrb[0].mxu0
    %v2149 = vadd.f32 %v1968, %v2148
    %v2150 = vpop.f32.mrb[0].mxu0
    %v2151 = vadd.f32 %v1972, %v2150
    %2152 = vdwg.mxu0
    %v2153 = vxor.u32 %v2075, 2147483648
    %v2154 = vxor.u32 %v2079, 2147483648
    %v2155 = vmul.f32 %v2153, 1.442695
    %v2156 = vpow.pop %v2155
    %v2157 = vmul.f32 %v2154, 1.442695
    %v2158 = vpow.pop %v2157
    %v2159 = vadd.f32 %v2156, 1.0
    %v2160 = vadd.f32 %v2158, 1.0
    %v2161 = vrcp.pop %v2159
    %v2162 = vmul.f32 1.0, %v2161
    %v2163 = vrcp.pop %v2160
    %v2164 = vmul.f32 1.0, %v2163
    %v2165 = vtanh.pop %v2075
    %v2166 = vtanh.pop %v2079
    %2169 = vrot.lane.b32.xlu0 %v2165, 64
    %v2170 = vpop.permute.xlu0 %2169
    %2171 = vrot.lane.b32.xlu0 %v2166, 64
    %v2172 = vpop.permute.xlu0 %2171
    %v2175 = vmul.f32 %v2162, %v2170
    %v2176 = vmul.f32 %v2164, %v2172
    %v2177 = vtanh.pop %v2175
    %v2178 = vtanh.pop %v2176
    %2181 = vrot.lane.b32.xlu0 %v2177, 96
    %v2182 = vpop.permute.xlu0 %2181
    %2183 = vrot.lane.b32.xlu0 %v2178, 96
    %v2184 = vpop.permute.xlu0 %2183
    %v2187 = vmul.f32 %v2162, %v2182
    %v2188 = vmul.f32 %v2164, %v2184
    %v2189 = vxor.u32 %v2147, 2147483648
    %v2190 = vxor.u32 %v2151, 2147483648
    %v2191 = vmul.f32 %v2189, 1.442695
    %v2192 = vpow.pop %v2191
    %v2193 = vmul.f32 %v2190, 1.442695
    %v2194 = vpow.pop %v2193
    %v2195 = vadd.f32 %v2192, 1.0
    %v2196 = vadd.f32 %v2194, 1.0
    %v2197 = vrcp.pop %v2195
    %v2198 = vmul.f32 1.0, %v2197
    %v2199 = vrcp.pop %v2196
    %v2200 = vmul.f32 1.0, %v2199
    %v2201 = vtanh.pop %v2147
    %v2202 = vtanh.pop %v2151
    %2205 = vrot.lane.b32.xlu0 %v2201, 64
    %v2206 = vpop.permute.xlu0 %2205
    %2207 = vrot.lane.b32.xlu0 %v2202, 64
    %v2208 = vpop.permute.xlu0 %2207
    %v2211 = vmul.f32 %v2198, %v2206
    %v2212 = vmul.f32 %v2200, %v2208
    %v2213 = vtanh.pop %v2211
    %v2214 = vtanh.pop %v2212
    %2217 = vrot.lane.b32.xlu0 %v2213, 96
    %v2218 = vpop.permute.xlu0 %2217
    %2219 = vrot.lane.b32.xlu0 %v2214, 96
    %v2220 = vpop.permute.xlu0 %2219
    %v2223 = vmul.f32 %v2198, %v2218
    %v2224 = vmul.f32 %v2200, %v2220
    %2227 = vrot.lane.b32.xlu0 %v2187, 32
    %v2228 = vpop.permute.xlu0 %2227
    %2229 = vrot.lane.b32.xlu0 %v2188, 32
    %v2230 = vpop.permute.xlu0 %2229
    %2235 = vrot.lane.b32.xlu0 %v2223, 64
    %v2236 = vpop.permute.xlu0 %2235
    %2237 = vrot.lane.b32.xlu0 %v2224, 64
    %v2238 = vpop.permute.xlu0 %2237
    %vm2241 = vcmask 261120
    %v2242 = vsel %vm2241, %v2228, %v2236
    %v2243 = vsel %vm2241, %v2230, %v2238
    %v2245 = vsel %vm2015, %v2242, 0
    %v2248 = vsel %vm2015, %v2243, 0
    %2250 = vmatprep.subr.mxu0 %v1932
    %2251 = vmatpush1.msra.mxu0 %v1931
    %2252 = vmatprep.subr.mxu0 %v1934
    %2253 = vmatpush1.msra.mxu0 %v1933
    %2254 = vmatprep.subr.mxu0 %v1936
    %2255 = vmatpush1.msra.mxu0 %v1935
    %2256 = vmatprep.subr.mxu0 %v1938
    %2257 = vmatpush1.msra.mxu0 %v1937
    %2258 = vmatprep.subr.mxu0 %v1940
    %2259 = vmatpush1.msra.mxu0 %v1939
    %2260 = vmatprep.subr.mxu0 %v1942
    %2261 = vmatpush1.msra.mxu0 %v1941
    %2262 = vmatprep.subr.mxu0 %v1944
    %2263 = vmatpush1.msra.mxu0 %v1943
    %2264 = vmatprep.subr.mxu0 %v1946
    %2265 = vmatpush1.msra.mxu0 %v1945
    %2266 = vmatprep.subr.mxu0 0.0
    %2267 = vmatpush1.msra.mxu0 0.0
    %2268 = vmatprep.subr.mxu0 0.0
    %2269 = vmatpush1.msra.mxu0 0.0
    %2270 = vmatprep.subr.mxu0 0.0
    %2271 = vmatpush1.msra.mxu0 0.0
    %2272 = vmatprep.subr.mxu0 0.0
    %2273 = vmatpush1.msra.mxu0 0.0
    %2274 = vmatprep.subr.mxu0 0.0
    %2275 = vmatpush1.msra.mxu0 0.0
    %2276 = vmatprep.subr.mxu0 0.0
    %2277 = vmatpush1.msra.mxu0 0.0
    %2278 = vmatprep.subr.mxu0 0.0
    %2279 = vmatpush1.msra.mxu0 0.0
    %2280 = vmatprep.subr.mxu0 0.0
    %2281 = vmatpush1.msra.mxu0 0.0
    %2282 = vmatprep.subr.mxu0 0.0
    %2283 = vmatpush1.msra.mxu0 0.0
    %2284 = vmatprep.subr.mxu0 0.0
    %2285 = vmatpush1.msra.mxu0 0.0
    %2286 = vmatprep.subr.mxu0 0.0
    %2287 = vmatpush1.msra.mxu0 0.0
    %2288 = vmatprep.subr.mxu0 0.0
    %2289 = vmatpush1.msra.mxu0 0.0
    %2290 = vmatprep.subr.mxu0 0.0
    %2291 = vmatpush1.msra.mxu0 0.0
    %2292 = vmatprep.subr.mxu0 0.0
    %2293 = vmatpush1.msra.mxu0 0.0
    %2294 = vmatprep.subr.mxu0 0.0
    %2295 = vmatpush1.msra.mxu0 0.0
    %2296 = vmatprep.subr.mxu0 0.0
    %2297 = vmatpush1.msra.mxu0 0.0
    %2298 = vmatprep.subr.mxu0 0.0
    %2299 = vmatpush1.msra.mxu0 0.0
    %2300 = vmatprep.subr.mxu0 0.0
    %2301 = vmatpush1.msra.mxu0 0.0
    %2302 = vmatprep.subr.mxu0 0.0
    %2303 = vmatpush1.msra.mxu0 0.0
    %2304 = vmatprep.subr.mxu0 0.0
    %2305 = vmatpush1.msra.mxu0 0.0
    %2306 = vmatprep.subr.mxu0 0.0
    %2307 = vmatpush1.msra.mxu0 0.0
    %2308 = vmatprep.subr.mxu0 0.0
    %2309 = vmatpush1.msra.mxu0 0.0
    %2310 = vmatprep.subr.mxu0 0.0
    %2311 = vmatpush1.msra.mxu0 0.0
    %2312 = vmatprep.subr.mxu0 0.0
    %2313 = vmatpush1.msra.mxu0 0.0
    %2314 = vmatprep.mubr.f32.mxu0 0.0
    %2315 = vmatmul.mubr.f32.gmra.mrb[0].mxu0 %v2245
    %v2316 = vpop.f32.mrb[0].mxu0
    %v2317 = vadd.f32 0.0, %v2316
    %v2318 = vpop.f32.mrb[0].mxu0
    %v2319 = vadd.f32 0.0, %v2318
    %2320 = vmatprep.mubr.f32.mxu0 0.0
    %2321 = vmatmul.mubr.f32.gmra.mrb[0].mxu0 %v2248
    %v2322 = vpop.f32.mrb[0].mxu0
    %v2323 = vadd.f32 0.0, %v2322
    %v2324 = vpop.f32.mrb[0].mxu0
    %v2325 = vadd.f32 0.0, %v2324
    %2326 = vdwg.mxu0
    %v2327 = vadd.f32 %v2085, %v2317
    %v2328 = vadd.f32 %v2089, %v2323
    %v2329 = vadd.f32 %v2137, %v2319
    %v2330 = vadd.f32 %v2141, %v2325
    %v2331 = vxor.u32 %v2327, 2147483648
    %v2332 = vxor.u32 %v2328, 2147483648
    %v2333 = vmul.f32 %v2331, 1.442695
    %v2334 = vpow.pop %v2333
    %v2335 = vmul.f32 %v2332, 1.442695
    %v2336 = vpow.pop %v2335
    %v2337 = vadd.f32 %v2334, 1.0
    %v2338 = vadd.f32 %v2336, 1.0
    %v2339 = vrcp.pop %v2337
    %v2340 = vmul.f32 1.0, %v2339
    %v2341 = vrcp.pop %v2338
    %v2342 = vmul.f32 1.0, %v2341
    %v2343 = vtanh.pop %v2327
    %v2344 = vtanh.pop %v2328
    %2347 = vrot.lane.b32.xlu0 %v2175, 32
    %v2348 = vpop.permute.xlu0 %2347
    %2349 = vrot.lane.b32.xlu0 %v2176, 32
    %v2350 = vpop.permute.xlu0 %2349
    %v2353 = vmul.f32 %v2340, %v2348
    %v2354 = vmul.f32 %v2342, %v2350
    %2357 = vrot.lane.b32.xlu0 %v2343, 64
    %v2358 = vpop.permute.xlu0 %2357
    %2359 = vrot.lane.b32.xlu0 %v2344, 64
    %v2360 = vpop.permute.xlu0 %2359
    %v2363 = vmul.f32 %v2340, %v2358
    %v2364 = vmul.f32 %v2342, %v2360
    %2367 = vrot.lane.b32.xlu0 %v2363, 32
    %v2368 = vpop.permute.xlu0 %2367
    %2369 = vrot.lane.b32.xlu0 %v2364, 32
    %v2370 = vpop.permute.xlu0 %2369
    %v2373 = vadd.f32 %v2353, %v2368
    %v2374 = vadd.f32 %v2354, %v2370
    %v2375 = vtanh.pop %v2373
    %v2376 = vtanh.pop %v2374
    %2379 = vrot.lane.b32.xlu0 %v2375, 64
    %v2380 = vpop.permute.xlu0 %2379
    %2381 = vrot.lane.b32.xlu0 %v2376, 64
    %v2382 = vpop.permute.xlu0 %2381
    %v2385 = vmul.f32 %v2340, %v2380
    %v2386 = vmul.f32 %v2342, %v2382
    %v2387 = vxor.u32 %v2329, 2147483648
    %v2388 = vxor.u32 %v2330, 2147483648
    %v2389 = vmul.f32 %v2387, 1.442695
    %v2390 = vpow.pop %v2389
    %v2391 = vmul.f32 %v2388, 1.442695
    %v2392 = vpow.pop %v2391
    %v2393 = vadd.f32 %v2390, 1.0
    %v2394 = vadd.f32 %v2392, 1.0
    %v2395 = vrcp.pop %v2393
    %v2396 = vmul.f32 1.0, %v2395
    %v2397 = vrcp.pop %v2394
    %v2398 = vmul.f32 1.0, %v2397
    %v2399 = vtanh.pop %v2329
    %v2400 = vtanh.pop %v2330
    %2403 = vrot.lane.b32.xlu0 %v2211, 32
    %v2404 = vpop.permute.xlu0 %2403
    %2405 = vrot.lane.b32.xlu0 %v2212, 32
    %v2406 = vpop.permute.xlu0 %2405
    %v2409 = vmul.f32 %v2396, %v2404
    %v2410 = vmul.f32 %v2398, %v2406
    %2413 = vrot.lane.b32.xlu0 %v2399, 64
    %v2414 = vpop.permute.xlu0 %2413
    %2415 = vrot.lane.b32.xlu0 %v2400, 64
    %v2416 = vpop.permute.xlu0 %2415
    %v2419 = vmul.f32 %v2396, %v2414
    %v2420 = vmul.f32 %v2398, %v2416
    %2423 = vrot.lane.b32.xlu0 %v2419, 32
    %v2424 = vpop.permute.xlu0 %2423
    %2425 = vrot.lane.b32.xlu0 %v2420, 32
    %v2426 = vpop.permute.xlu0 %2425
    %v2429 = vadd.f32 %v2409, %v2424
    %v2430 = vadd.f32 %v2410, %v2426
    %v2431 = vtanh.pop %v2429
    %v2432 = vtanh.pop %v2430
    %2435 = vrot.lane.b32.xlu0 %v2431, 64
    %v2436 = vpop.permute.xlu0 %2435
    %2437 = vrot.lane.b32.xlu0 %v2432, 64
    %v2438 = vpop.permute.xlu0 %2437
    %v2441 = vmul.f32 %v2396, %v2436
    %v2442 = vmul.f32 %v2398, %v2438
    %2445 = vrot.lane.b32.xlu0 %v2385, 32
    %v2446 = vpop.permute.xlu0 %2445
    %2447 = vrot.lane.b32.xlu0 %v2386, 32
    %v2448 = vpop.permute.xlu0 %2447
    %2453 = vrot.lane.b32.xlu0 %v2441, 64
    %v2454 = vpop.permute.xlu0 %2453
    %2455 = vrot.lane.b32.xlu0 %v2442, 64
    %v2456 = vpop.permute.xlu0 %2455
    %v2459 = vsel %vm2241, %v2446, %v2454
    %v2460 = vsel %vm2241, %v2448, %v2456
    %v2462 = vsel %vm2015, %v2459, 0
    %v2465 = vsel %vm2015, %v2460, 0
    %2467 = vmatprep.subr.mxu0 %v1932
    %2468 = vmatpush1.msra.mxu0 %v1931
    %2469 = vmatprep.subr.mxu0 %v1934
    %2470 = vmatpush1.msra.mxu0 %v1933
    %2471 = vmatprep.subr.mxu0 %v1936
    %2472 = vmatpush1.msra.mxu0 %v1935
    %2473 = vmatprep.subr.mxu0 %v1938
    %2474 = vmatpush1.msra.mxu0 %v1937
    %2475 = vmatprep.subr.mxu0 %v1940
    %2476 = vmatpush1.msra.mxu0 %v1939
    %2477 = vmatprep.subr.mxu0 %v1942
    %2478 = vmatpush1.msra.mxu0 %v1941
    %2479 = vmatprep.subr.mxu0 %v1944
    %2480 = vmatpush1.msra.mxu0 %v1943
    %2481 = vmatprep.subr.mxu0 %v1946
    %2482 = vmatpush1.msra.mxu0 %v1945
    %2483 = vmatprep.subr.mxu0 0.0
    %2484 = vmatpush1.msra.mxu0 0.0
    %2485 = vmatprep.subr.mxu0 0.0
    %2486 = vmatpush1.msra.mxu0 0.0
    %2487 = vmatprep.subr.mxu0 0.0
    %2488 = vmatpush1.msra.mxu0 0.0
    %2489 = vmatprep.subr.mxu0 0.0
    %2490 = vmatpush1.msra.mxu0 0.0
    %2491 = vmatprep.subr.mxu0 0.0
    %2492 = vmatpush1.msra.mxu0 0.0
    %2493 = vmatprep.subr.mxu0 0.0
    %2494 = vmatpush1.msra.mxu0 0.0
    %2495 = vmatprep.subr.mxu0 0.0
    %2496 = vmatpush1.msra.mxu0 0.0
    %2497 = vmatprep.subr.mxu0 0.0
    %2498 = vmatpush1.msra.mxu0 0.0
    %2499 = vmatprep.subr.mxu0 0.0
    %2500 = vmatpush1.msra.mxu0 0.0
    %2501 = vmatprep.subr.mxu0 0.0
    %2502 = vmatpush1.msra.mxu0 0.0
    %2503 = vmatprep.subr.mxu0 0.0
    %2504 = vmatpush1.msra.mxu0 0.0
    %2505 = vmatprep.subr.mxu0 0.0
    %2506 = vmatpush1.msra.mxu0 0.0
    %2507 = vmatprep.subr.mxu0 0.0
    %2508 = vmatpush1.msra.mxu0 0.0
    %2509 = vmatprep.subr.mxu0 0.0
    %2510 = vmatpush1.msra.mxu0 0.0
    %2511 = vmatprep.subr.mxu0 0.0
    %2512 = vmatpush1.msra.mxu0 0.0
    %2513 = vmatprep.subr.mxu0 0.0
    %2514 = vmatpush1.msra.mxu0 0.0
    %2515 = vmatprep.subr.mxu0 0.0
    %2516 = vmatpush1.msra.mxu0 0.0
    %2517 = vmatprep.subr.mxu0 0.0
    %2518 = vmatpush1.msra.mxu0 0.0
    %2519 = vmatprep.subr.mxu0 0.0
    %2520 = vmatpush1.msra.mxu0 0.0
    %2521 = vmatprep.subr.mxu0 0.0
    %2522 = vmatpush1.msra.mxu0 0.0
    %2523 = vmatprep.subr.mxu0 0.0
    %2524 = vmatpush1.msra.mxu0 0.0
    %2525 = vmatprep.subr.mxu0 0.0
    %2526 = vmatpush1.msra.mxu0 0.0
    %2527 = vmatprep.subr.mxu0 0.0
    %2528 = vmatpush1.msra.mxu0 0.0
    %2529 = vmatprep.subr.mxu0 0.0
    %2530 = vmatpush1.msra.mxu0 0.0
    %2531 = vmatprep.mubr.f32.mxu0 0.0
    %2532 = vmatmul.mubr.f32.gmra.mrb[0].mxu0 %v2462
    %v2533 = vpop.f32.mrb[0].mxu0
    %v2534 = vadd.f32 0.0, %v2533
    %v2535 = vpop.f32.mrb[0].mxu0
    %v2536 = vadd.f32 0.0, %v2535
    %2537 = vmatprep.mubr.f32.mxu0 0.0
    %2538 = vmatmul.mubr.f32.gmra.mrb[0].mxu0 %v2465
    %v2539 = vpop.f32.mrb[0].mxu0
    %v2540 = vadd.f32 0.0, %v2539
    %v2541 = vpop.f32.mrb[0].mxu0
    %v2542 = vadd.f32 0.0, %v2541
    %2543 = vdwg.mxu0
    %v2544 = vadd.f32 %v2095, %v2534
    %v2545 = vadd.f32 %v2099, %v2540
    %v2546 = vadd.f32 %v2127, %v2536
    %v2547 = vadd.f32 %v2131, %v2542
    %v2548 = vxor.u32 %v2544, 2147483648
    %v2549 = vxor.u32 %v2545, 2147483648
    %v2550 = vmul.f32 %v2548, 1.442695
    %v2551 = vpow.pop %v2550
    %v2552 = vmul.f32 %v2549, 1.442695
    %v2553 = vpow.pop %v2552
    %v2554 = vadd.f32 %v2551, 1.0
    %v2555 = vadd.f32 %v2553, 1.0
    %v2556 = vrcp.pop %v2554
    %v2557 = vmul.f32 1.0, %v2556
    %v2558 = vrcp.pop %v2555
    %v2559 = vmul.f32 1.0, %v2558
    %v2560 = vtanh.pop %v2544
    %v2561 = vtanh.pop %v2545
    %v2562 = vmul.f32 %v2557, %v2373
    %v2563 = vmul.f32 %v2559, %v2374
    %2566 = vrot.lane.b32.xlu0 %v2560, 64
    %v2567 = vpop.permute.xlu0 %2566
    %2568 = vrot.lane.b32.xlu0 %v2561, 64
    %v2569 = vpop.permute.xlu0 %2568
    %v2572 = vmul.f32 %v2557, %v2567
    %v2573 = vmul.f32 %v2559, %v2569
    %2576 = vrot.lane.b32.xlu0 %v2572, 32
    %v2577 = vpop.permute.xlu0 %2576
    %2578 = vrot.lane.b32.xlu0 %v2573, 32
    %v2579 = vpop.permute.xlu0 %2578
    %v2582 = vadd.f32 %v2562, %v2577
    %v2583 = vadd.f32 %v2563, %v2579
    %v2584 = vtanh.pop %v2582
    %v2585 = vtanh.pop %v2583
    %2588 = vrot.lane.b32.xlu0 %v2584, 64
    %v2589 = vpop.permute.xlu0 %2588
    %2590 = vrot.lane.b32.xlu0 %v2585, 64
    %v2591 = vpop.permute.xlu0 %2590
    %v2594 = vmul.f32 %v2557, %v2589
    %v2595 = vmul.f32 %v2559, %v2591
    %v2596 = vxor.u32 %v2546, 2147483648
    %v2597 = vxor.u32 %v2547, 2147483648
    %v2598 = vmul.f32 %v2596, 1.442695
    %v2599 = vpow.pop %v2598
    %v2600 = vmul.f32 %v2597, 1.442695
    %v2601 = vpow.pop %v2600
    %v2602 = vadd.f32 %v2599, 1.0
    %v2603 = vadd.f32 %v2601, 1.0
    %v2604 = vrcp.pop %v2602
    %v2605 = vmul.f32 1.0, %v2604
    %v2606 = vrcp.pop %v2603
    %v2607 = vmul.f32 1.0, %v2606
    %v2608 = vtanh.pop %v2546
    %v2609 = vtanh.pop %v2547
    %v2610 = vmul.f32 %v2605, %v2429
    %v2611 = vmul.f32 %v2607, %v2430
    %2614 = vrot.lane.b32.xlu0 %v2608, 64
    %v2615 = vpop.permute.xlu0 %2614
    %2616 = vrot.lane.b32.xlu0 %v2609, 64
    %v2617 = vpop.permute.xlu0 %2616
    %v2620 = vmul.f32 %v2605, %v2615
    %v2621 = vmul.f32 %v2607, %v2617
    %2624 = vrot.lane.b32.xlu0 %v2620, 32
    %v2625 = vpop.permute.xlu0 %2624
    %2626 = vrot.lane.b32.xlu0 %v2621, 32
    %v2627 = vpop.permute.xlu0 %2626
    %v2630 = vadd.f32 %v2610, %v2625
    %v2631 = vadd.f32 %v2611, %v2627
    %v2632 = vtanh.pop %v2630
    %v2633 = vtanh.pop %v2631
    %2636 = vrot.lane.b32.xlu0 %v2632, 64
    %v2637 = vpop.permute.xlu0 %2636
    %2638 = vrot.lane.b32.xlu0 %v2633, 64
    %v2639 = vpop.permute.xlu0 %2638
    %v2642 = vmul.f32 %v2605, %v2637
    %v2643 = vmul.f32 %v2607, %v2639
    %2646 = vrot.lane.b32.xlu0 %v2594, 32
    %v2647 = vpop.permute.xlu0 %2646
    %2648 = vrot.lane.b32.xlu0 %v2595, 32
    %v2649 = vpop.permute.xlu0 %2648
    %2654 = vrot.lane.b32.xlu0 %v2642, 64
    %v2655 = vpop.permute.xlu0 %2654
    %2656 = vrot.lane.b32.xlu0 %v2643, 64
    %v2657 = vpop.permute.xlu0 %2656
    %v2660 = vsel %vm2241, %v2647, %v2655
    %v2661 = vsel %vm2241, %v2649, %v2657
    %v2663 = vsel %vm2015, %v2660, 0
    %v2666 = vsel %vm2015, %v2661, 0
    %2668 = vmatprep.subr.mxu0 %v1932
    %2669 = vmatpush1.msra.mxu0 %v1931
    %2670 = vmatprep.subr.mxu0 %v1934
    %2671 = vmatpush1.msra.mxu0 %v1933
    %2672 = vmatprep.subr.mxu0 %v1936
    %2673 = vmatpush1.msra.mxu0 %v1935
    %2674 = vmatprep.subr.mxu0 %v1938
    %2675 = vmatpush1.msra.mxu0 %v1937
    %2676 = vmatprep.subr.mxu0 %v1940
    %2677 = vmatpush1.msra.mxu0 %v1939
    %2678 = vmatprep.subr.mxu0 %v1942
    %2679 = vmatpush1.msra.mxu0 %v1941
    %2680 = vmatprep.subr.mxu0 %v1944
    %2681 = vmatpush1.msra.mxu0 %v1943
    %2682 = vmatprep.subr.mxu0 %v1946
    %2683 = vmatpush1.msra.mxu0 %v1945
    %2684 = vmatprep.subr.mxu0 0.0
    %2685 = vmatpush1.msra.mxu0 0.0
    %2686 = vmatprep.subr.mxu0 0.0
    %2687 = vmatpush1.msra.mxu0 0.0
    %2688 = vmatprep.subr.mxu0 0.0
    %2689 = vmatpush1.msra.mxu0 0.0
    %2690 = vmatprep.subr.mxu0 0.0
    %2691 = vmatpush1.msra.mxu0 0.0
    %2692 = vmatprep.subr.mxu0 0.0
    %2693 = vmatpush1.msra.mxu0 0.0
    %2694 = vmatprep.subr.mxu0 0.0
    %2695 = vmatpush1.msra.mxu0 0.0
    %2696 = vmatprep.subr.mxu0 0.0
    %2697 = vmatpush1.msra.mxu0 0.0
    %2698 = vmatprep.subr.mxu0 0.0
    %2699 = vmatpush1.msra.mxu0 0.0
    %2700 = vmatprep.subr.mxu0 0.0
    %2701 = vmatpush1.msra.mxu0 0.0
    %2702 = vmatprep.subr.mxu0 0.0
    %2703 = vmatpush1.msra.mxu0 0.0
    %2704 = vmatprep.subr.mxu0 0.0
    %2705 = vmatpush1.msra.mxu0 0.0
    %2706 = vmatprep.subr.mxu0 0.0
    %2707 = vmatpush1.msra.mxu0 0.0
    %2708 = vmatprep.subr.mxu0 0.0
    %2709 = vmatpush1.msra.mxu0 0.0
    %2710 = vmatprep.subr.mxu0 0.0
    %2711 = vmatpush1.msra.mxu0 0.0
    %2712 = vmatprep.subr.mxu0 0.0
    %2713 = vmatpush1.msra.mxu0 0.0
    %2714 = vmatprep.subr.mxu0 0.0
    %2715 = vmatpush1.msra.mxu0 0.0
    %2716 = vmatprep.subr.mxu0 0.0
    %2717 = vmatpush1.msra.mxu0 0.0
    %2718 = vmatprep.subr.mxu0 0.0
    %2719 = vmatpush1.msra.mxu0 0.0
    %2720 = vmatprep.subr.mxu0 0.0
    %2721 = vmatpush1.msra.mxu0 0.0
    %2722 = vmatprep.subr.mxu0 0.0
    %2723 = vmatpush1.msra.mxu0 0.0
    %2724 = vmatprep.subr.mxu0 0.0
    %2725 = vmatpush1.msra.mxu0 0.0
    %2726 = vmatprep.subr.mxu0 0.0
    %2727 = vmatpush1.msra.mxu0 0.0
    %2728 = vmatprep.subr.mxu0 0.0
    %2729 = vmatpush1.msra.mxu0 0.0
    %2730 = vmatprep.subr.mxu0 0.0
    %2731 = vmatpush1.msra.mxu0 0.0
    %2732 = vmatprep.mubr.f32.mxu0 0.0
    %2733 = vmatmul.mubr.f32.gmra.mrb[0].mxu0 %v2663
    %v2734 = vpop.f32.mrb[0].mxu0
    %v2735 = vadd.f32 0.0, %v2734
    %v2736 = vpop.f32.mrb[0].mxu0
    %v2737 = vadd.f32 0.0, %v2736
    %2738 = vmatprep.mubr.f32.mxu0 0.0
    %2739 = vmatmul.mubr.f32.gmra.mrb[0].mxu0 %v2666
    %v2740 = vpop.f32.mrb[0].mxu0
    %v2741 = vadd.f32 0.0, %v2740
    %v2742 = vpop.f32.mrb[0].mxu0
    %v2743 = vadd.f32 0.0, %v2742
    %2744 = vdwg.mxu0
    %v2745 = vadd.f32 %v2105, %v2735
    %v2746 = vadd.f32 %v2109, %v2741
    %v2747 = vadd.f32 %v2117, %v2737
    %v2748 = vadd.f32 %v2121, %v2743
    %v2749 = vxor.u32 %v2745, 2147483648
    %v2750 = vxor.u32 %v2746, 2147483648
    %v2751 = vmul.f32 %v2749, 1.442695
    %v2752 = vpow.pop %v2751
    %v2753 = vmul.f32 %v2750, 1.442695
    %v2754 = vpow.pop %v2753
    %v2755 = vadd.f32 %v2752, 1.0
    %v2756 = vadd.f32 %v2754, 1.0
    %v2757 = vrcp.pop %v2755
    %v2758 = vmul.f32 1.0, %v2757
    %v2759 = vrcp.pop %v2756
    %v2760 = vmul.f32 1.0, %v2759
    %v2761 = vtanh.pop %v2745
    %v2762 = vtanh.pop %v2746
    %v2763 = vmul.f32 %v2758, %v2582
    %v2764 = vmul.f32 %v2760, %v2583
    %2767 = vrot.lane.b32.xlu0 %v2761, 64
    %v2768 = vpop.permute.xlu0 %2767
    %2769 = vrot.lane.b32.xlu0 %v2762, 64
    %v2770 = vpop.permute.xlu0 %2769
    %v2773 = vmul.f32 %v2758, %v2768
    %v2774 = vmul.f32 %v2760, %v2770
    %2777 = vrot.lane.b32.xlu0 %v2773, 32
    %v2778 = vpop.permute.xlu0 %2777
    %2779 = vrot.lane.b32.xlu0 %v2774, 32
    %v2780 = vpop.permute.xlu0 %2779
    %v2783 = vadd.f32 %v2763, %v2778
    %v2784 = vadd.f32 %v2764, %v2780
    %v2785 = vtanh.pop %v2783
    %v2786 = vtanh.pop %v2784
    %2789 = vrot.lane.b32.xlu0 %v2785, 64
    %v2790 = vpop.permute.xlu0 %2789
    %2791 = vrot.lane.b32.xlu0 %v2786, 64
    %v2792 = vpop.permute.xlu0 %2791
    %v2795 = vmul.f32 %v2758, %v2790
    %v2796 = vmul.f32 %v2760, %v2792
    %v2797 = vxor.u32 %v2747, 2147483648
    %v2798 = vxor.u32 %v2748, 2147483648
    %v2799 = vmul.f32 %v2797, 1.442695
    %v2800 = vpow.pop %v2799
    %v2801 = vmul.f32 %v2798, 1.442695
    %v2802 = vpow.pop %v2801
    %v2803 = vadd.f32 %v2800, 1.0
    %v2804 = vadd.f32 %v2802, 1.0
    %v2805 = vrcp.pop %v2803
    %v2806 = vmul.f32 1.0, %v2805
    %v2807 = vrcp.pop %v2804
    %v2808 = vmul.f32 1.0, %v2807
    %v2809 = vtanh.pop %v2747
    %v2810 = vtanh.pop %v2748
    %v2811 = vmul.f32 %v2806, %v2630
    %v2812 = vmul.f32 %v2808, %v2631
    %2815 = vrot.lane.b32.xlu0 %v2809, 64
    %v2816 = vpop.permute.xlu0 %2815
    %2817 = vrot.lane.b32.xlu0 %v2810, 64
    %v2818 = vpop.permute.xlu0 %2817
    %v2821 = vmul.f32 %v2806, %v2816
    %v2822 = vmul.f32 %v2808, %v2818
    %2825 = vrot.lane.b32.xlu0 %v2821, 32
    %v2826 = vpop.permute.xlu0 %2825
    %2827 = vrot.lane.b32.xlu0 %v2822, 32
    %v2828 = vpop.permute.xlu0 %2827
    %v2831 = vadd.f32 %v2811, %v2826
    %v2832 = vadd.f32 %v2812, %v2828
    %v2833 = vtanh.pop %v2831
    %v2834 = vtanh.pop %v2832
    %2837 = vrot.lane.b32.xlu0 %v2833, 64
    %v2838 = vpop.permute.xlu0 %2837
    %2839 = vrot.lane.b32.xlu0 %v2834, 64
    %v2840 = vpop.permute.xlu0 %2839
    %v2843 = vmul.f32 %v2806, %v2838
    %v2844 = vmul.f32 %v2808, %v2840
    %2847 = vrot.lane.b32.xlu0 %v2795, 32
    %v2848 = vpop.permute.xlu0 %2847
    %2849 = vrot.lane.b32.xlu0 %v2796, 32
    %v2850 = vpop.permute.xlu0 %2849
    %2855 = vrot.lane.b32.xlu0 %v2843, 64
    %v2856 = vpop.permute.xlu0 %2855
    %2857 = vrot.lane.b32.xlu0 %v2844, 64
    %v2858 = vpop.permute.xlu0 %2857
    %v2861 = vsel %vm2241, %v2848, %v2856
    %v2862 = vsel %vm2241, %v2850, %v2858
    %v2864 = vsel %vm2015, %v2861, 0
    %v2867 = vsel %vm2015, %v2862, 0
    %2869 = vmatprep.subr.mxu0 %v1932
    %2870 = vmatpush1.msra.mxu0 %v1931
    %2871 = vmatprep.subr.mxu0 %v1934
    %2872 = vmatpush1.msra.mxu0 %v1933
    %2873 = vmatprep.subr.mxu0 %v1936
    %2874 = vmatpush1.msra.mxu0 %v1935
    %2875 = vmatprep.subr.mxu0 %v1938
    %2876 = vmatpush1.msra.mxu0 %v1937
    %2877 = vmatprep.subr.mxu0 %v1940
    %2878 = vmatpush1.msra.mxu0 %v1939
    %2879 = vmatprep.subr.mxu0 %v1942
    %2880 = vmatpush1.msra.mxu0 %v1941
    %2881 = vmatprep.subr.mxu0 %v1944
    %2882 = vmatpush1.msra.mxu0 %v1943
    %2883 = vmatprep.subr.mxu0 %v1946
    %2884 = vmatpush1.msra.mxu0 %v1945
    %2885 = vmatprep.subr.mxu0 0.0
    %2886 = vmatpush1.msra.mxu0 0.0
    %2887 = vmatprep.subr.mxu0 0.0
    %2888 = vmatpush1.msra.mxu0 0.0
    %2889 = vmatprep.subr.mxu0 0.0
    %2890 = vmatpush1.msra.mxu0 0.0
    %2891 = vmatprep.subr.mxu0 0.0
    %2892 = vmatpush1.msra.mxu0 0.0
    %2893 = vmatprep.subr.mxu0 0.0
    %2894 = vmatpush1.msra.mxu0 0.0
    %2895 = vmatprep.subr.mxu0 0.0
    %2896 = vmatpush1.msra.mxu0 0.0
    %2897 = vmatprep.subr.mxu0 0.0
    %2898 = vmatpush1.msra.mxu0 0.0
    %2899 = vmatprep.subr.mxu0 0.0
    %2900 = vmatpush1.msra.mxu0 0.0
    %2901 = vmatprep.subr.mxu0 0.0
    %2902 = vmatpush1.msra.mxu0 0.0
    %2903 = vmatprep.subr.mxu0 0.0
    %2904 = vmatpush1.msra.mxu0 0.0
    %2905 = vmatprep.subr.mxu0 0.0
    %2906 = vmatpush1.msra.mxu0 0.0
    %2907 = vmatprep.subr.mxu0 0.0
    %2908 = vmatpush1.msra.mxu0 0.0
    %2909 = vmatprep.subr.mxu0 0.0
    %2910 = vmatpush1.msra.mxu0 0.0
    %2911 = vmatprep.subr.mxu0 0.0
    %2912 = vmatpush1.msra.mxu0 0.0
    %2913 = vmatprep.subr.mxu0 0.0
    %2914 = vmatpush1.msra.mxu0 0.0
    %2915 = vmatprep.subr.mxu0 0.0
    %2916 = vmatpush1.msra.mxu0 0.0
    %2917 = vmatprep.subr.mxu0 0.0
    %2918 = vmatpush1.msra.mxu0 0.0
    %2919 = vmatprep.subr.mxu0 0.0
    %2920 = vmatpush1.msra.mxu0 0.0
    %2921 = vmatprep.subr.mxu0 0.0
    %2922 = vmatpush1.msra.mxu0 0.0
    %2923 = vmatprep.subr.mxu0 0.0
    %2924 = vmatpush1.msra.mxu0 0.0
    %2925 = vmatprep.subr.mxu0 0.0
    %2926 = vmatpush1.msra.mxu0 0.0
    %2927 = vmatprep.subr.mxu0 0.0
    %2928 = vmatpush1.msra.mxu0 0.0
    %2929 = vmatprep.subr.mxu0 0.0
    %2930 = vmatpush1.msra.mxu0 0.0
    %2931 = vmatprep.subr.mxu0 0.0
    %2932 = vmatpush1.msra.mxu0 0.0
    %2933 = vmatprep.mubr.f32.mxu0 0.0
    %2934 = vmatmul.mubr.f32.gmra.mrb[0].mxu0 %v2864
    %v2935 = vpop.f32.mrb[0].mxu0
    %v2936 = vadd.f32 0.0, %v2935
    %v2937 = vpop.f32.mrb[0].mxu0
    %v2938 = vadd.f32 0.0, %v2937
    %2939 = vmatprep.mubr.f32.mxu0 0.0
    %2940 = vmatmul.mubr.f32.gmra.mrb[0].mxu0 %v2867
    %v2941 = vpop.f32.mrb[0].mxu0
    %v2942 = vadd.f32 0.0, %v2941
    %v2943 = vpop.f32.mrb[0].mxu0
    %v2944 = vadd.f32 0.0, %v2943
    %2945 = vdwg.mxu0
    %v2946 = vadd.f32 %v2115, %v2936
    %v2947 = vadd.f32 %v2119, %v2942
    %v2948 = vadd.f32 %v2107, %v2938
    %v2949 = vadd.f32 %v2111, %v2944
    %v2950 = vxor.u32 %v2946, 2147483648
    %v2951 = vxor.u32 %v2947, 2147483648
    %v2952 = vmul.f32 %v2950, 1.442695
    %v2953 = vpow.pop %v2952
    %v2954 = vmul.f32 %v2951, 1.442695
    %v2955 = vpow.pop %v2954
    %v2956 = vadd.f32 %v2953, 1.0
    %v2957 = vadd.f32 %v2955, 1.0
    %v2958 = vrcp.pop %v2956
    %v2959 = vmul.f32 1.0, %v2958
    %v2960 = vrcp.pop %v2957
    %v2961 = vmul.f32 1.0, %v2960
    %v2962 = vtanh.pop %v2946
    %v2963 = vtanh.pop %v2947
    %v2964 = vmul.f32 %v2959, %v2783
    %v2965 = vmul.f32 %v2961, %v2784
    %2968 = vrot.lane.b32.xlu0 %v2962, 64
    %v2969 = vpop.permute.xlu0 %2968
    %2970 = vrot.lane.b32.xlu0 %v2963, 64
    %v2971 = vpop.permute.xlu0 %2970
    %v2974 = vmul.f32 %v2959, %v2969
    %v2975 = vmul.f32 %v2961, %v2971
    %2978 = vrot.lane.b32.xlu0 %v2974, 32
    %v2979 = vpop.permute.xlu0 %2978
    %2980 = vrot.lane.b32.xlu0 %v2975, 32
    %v2981 = vpop.permute.xlu0 %2980
    %v2984 = vadd.f32 %v2964, %v2979
    %v2985 = vadd.f32 %v2965, %v2981
    %v2986 = vtanh.pop %v2984
    %v2987 = vtanh.pop %v2985
    %2990 = vrot.lane.b32.xlu0 %v2986, 64
    %v2991 = vpop.permute.xlu0 %2990
    %2992 = vrot.lane.b32.xlu0 %v2987, 64
    %v2993 = vpop.permute.xlu0 %2992
    %v2996 = vmul.f32 %v2959, %v2991
    %v2997 = vmul.f32 %v2961, %v2993
    %v2998 = vxor.u32 %v2948, 2147483648
    %v2999 = vxor.u32 %v2949, 2147483648
    %v3000 = vmul.f32 %v2998, 1.442695
    %v3001 = vpow.pop %v3000
    %v3002 = vmul.f32 %v2999, 1.442695
    %v3003 = vpow.pop %v3002
    %v3004 = vadd.f32 %v3001, 1.0
    %v3005 = vadd.f32 %v3003, 1.0
    %v3006 = vrcp.pop %v3004
    %v3007 = vmul.f32 1.0, %v3006
    %v3008 = vrcp.pop %v3005
    %v3009 = vmul.f32 1.0, %v3008
    %v3010 = vtanh.pop %v2948
    %v3011 = vtanh.pop %v2949
    %v3012 = vmul.f32 %v3007, %v2831
    %v3013 = vmul.f32 %v3009, %v2832
    %3016 = vrot.lane.b32.xlu0 %v3010, 64
    %v3017 = vpop.permute.xlu0 %3016
    %3018 = vrot.lane.b32.xlu0 %v3011, 64
    %v3019 = vpop.permute.xlu0 %3018
    %v3022 = vmul.f32 %v3007, %v3017
    %v3023 = vmul.f32 %v3009, %v3019
    %3026 = vrot.lane.b32.xlu0 %v3022, 32
    %v3027 = vpop.permute.xlu0 %3026
    %3028 = vrot.lane.b32.xlu0 %v3023, 32
    %v3029 = vpop.permute.xlu0 %3028
    %v3032 = vadd.f32 %v3012, %v3027
    %v3033 = vadd.f32 %v3013, %v3029
    %v3034 = vtanh.pop %v3032
    %v3035 = vtanh.pop %v3033
    %3038 = vrot.lane.b32.xlu0 %v3034, 64
    %v3039 = vpop.permute.xlu0 %3038
    %3040 = vrot.lane.b32.xlu0 %v3035, 64
    %v3041 = vpop.permute.xlu0 %3040
    %v3044 = vmul.f32 %v3007, %v3039
    %v3045 = vmul.f32 %v3009, %v3041
    %3048 = vrot.lane.b32.xlu0 %v2996, 32
    %v3049 = vpop.permute.xlu0 %3048
    %3050 = vrot.lane.b32.xlu0 %v2997, 32
    %v3051 = vpop.permute.xlu0 %3050
    %3056 = vrot.lane.b32.xlu0 %v3044, 64
    %v3057 = vpop.permute.xlu0 %3056
    %3058 = vrot.lane.b32.xlu0 %v3045, 64
    %v3059 = vpop.permute.xlu0 %3058
    %v3062 = vsel %vm2241, %v3049, %v3057
    %v3063 = vsel %vm2241, %v3051, %v3059
    %v3065 = vsel %vm2015, %v3062, 0
    %v3068 = vsel %vm2015, %v3063, 0
    %3070 = vmatprep.subr.mxu0 %v1932
    %3071 = vmatpush1.msra.mxu0 %v1931
    %3072 = vmatprep.subr.mxu0 %v1934
    %3073 = vmatpush1.msra.mxu0 %v1933
    %3074 = vmatprep.subr.mxu0 %v1936
    %3075 = vmatpush1.msra.mxu0 %v1935
    %3076 = vmatprep.subr.mxu0 %v1938
    %3077 = vmatpush1.msra.mxu0 %v1937
    %3078 = vmatprep.subr.mxu0 %v1940
    %3079 = vmatpush1.msra.mxu0 %v1939
    %3080 = vmatprep.subr.mxu0 %v1942
    %3081 = vmatpush1.msra.mxu0 %v1941
    %3082 = vmatprep.subr.mxu0 %v1944
    %3083 = vmatpush1.msra.mxu0 %v1943
    %3084 = vmatprep.subr.mxu0 %v1946
    %3085 = vmatpush1.msra.mxu0 %v1945
    %3086 = vmatprep.subr.mxu0 0.0
    %3087 = vmatpush1.msra.mxu0 0.0
    %3088 = vmatprep.subr.mxu0 0.0
    %3089 = vmatpush1.msra.mxu0 0.0
    %3090 = vmatprep.subr.mxu0 0.0
    %3091 = vmatpush1.msra.mxu0 0.0
    %3092 = vmatprep.subr.mxu0 0.0
    %3093 = vmatpush1.msra.mxu0 0.0
    %3094 = vmatprep.subr.mxu0 0.0
    %3095 = vmatpush1.msra.mxu0 0.0
    %3096 = vmatprep.subr.mxu0 0.0
    %3097 = vmatpush1.msra.mxu0 0.0
    %3098 = vmatprep.subr.mxu0 0.0
    %3099 = vmatpush1.msra.mxu0 0.0
    %3100 = vmatprep.subr.mxu0 0.0
    %3101 = vmatpush1.msra.mxu0 0.0
    %3102 = vmatprep.subr.mxu0 0.0
    %3103 = vmatpush1.msra.mxu0 0.0
    %3104 = vmatprep.subr.mxu0 0.0
    %3105 = vmatpush1.msra.mxu0 0.0
    %3106 = vmatprep.subr.mxu0 0.0
    %3107 = vmatpush1.msra.mxu0 0.0
    %3108 = vmatprep.subr.mxu0 0.0
    %3109 = vmatpush1.msra.mxu0 0.0
    %3110 = vmatprep.subr.mxu0 0.0
    %3111 = vmatpush1.msra.mxu0 0.0
    %3112 = vmatprep.subr.mxu0 0.0
    %3113 = vmatpush1.msra.mxu0 0.0
    %3114 = vmatprep.subr.mxu0 0.0
    %3115 = vmatpush1.msra.mxu0 0.0
    %3116 = vmatprep.subr.mxu0 0.0
    %3117 = vmatpush1.msra.mxu0 0.0
    %3118 = vmatprep.subr.mxu0 0.0
    %3119 = vmatpush1.msra.mxu0 0.0
    %3120 = vmatprep.subr.mxu0 0.0
    %3121 = vmatpush1.msra.mxu0 0.0
    %3122 = vmatprep.subr.mxu0 0.0
    %3123 = vmatpush1.msra.mxu0 0.0
    %3124 = vmatprep.subr.mxu0 0.0
    %3125 = vmatpush1.msra.mxu0 0.0
    %3126 = vmatprep.subr.mxu0 0.0
    %3127 = vmatpush1.msra.mxu0 0.0
    %3128 = vmatprep.subr.mxu0 0.0
    %3129 = vmatpush1.msra.mxu0 0.0
    %3130 = vmatprep.subr.mxu0 0.0
    %3131 = vmatpush1.msra.mxu0 0.0
    %3132 = vmatprep.subr.mxu0 0.0
    %3133 = vmatpush1.msra.mxu0 0.0
    %3134 = vmatprep.mubr.f32.mxu0 0.0
    %3135 = vmatmul.mubr.f32.gmra.mrb[0].mxu0 %v3065
    %v3136 = vpop.f32.mrb[0].mxu0
    %v3137 = vadd.f32 0.0, %v3136
    %v3138 = vpop.f32.mrb[0].mxu0
    %v3139 = vadd.f32 0.0, %v3138
    %3140 = vmatprep.mubr.f32.mxu0 0.0
    %3141 = vmatmul.mubr.f32.gmra.mrb[0].mxu0 %v3068
    %v3142 = vpop.f32.mrb[0].mxu0
    %v3143 = vadd.f32 0.0, %v3142
    %v3144 = vpop.f32.mrb[0].mxu0
    %v3145 = vadd.f32 0.0, %v3144
    %3146 = vdwg.mxu0
    %v3147 = vadd.f32 %v2125, %v3137
    %v3148 = vadd.f32 %v2129, %v3143
    %v3149 = vadd.f32 %v2097, %v3139
    %v3150 = vadd.f32 %v2101, %v3145
    %v3151 = vxor.u32 %v3147, 2147483648
    %v3152 = vxor.u32 %v3148, 2147483648
    %v3153 = vmul.f32 %v3151, 1.442695
    %v3154 = vpow.pop %v3153
    %v3155 = vmul.f32 %v3152, 1.442695
    %v3156 = vpow.pop %v3155
    %v3157 = vadd.f32 %v3154, 1.0
    %v3158 = vadd.f32 %v3156, 1.0
    %v3159 = vrcp.pop %v3157
    %v3160 = vmul.f32 1.0, %v3159
    %v3161 = vrcp.pop %v3158
    %v3162 = vmul.f32 1.0, %v3161
    %v3163 = vtanh.pop %v3147
    %v3164 = vtanh.pop %v3148
    %v3165 = vmul.f32 %v3160, %v2984
    %v3166 = vmul.f32 %v3162, %v2985
    %3169 = vrot.lane.b32.xlu0 %v3163, 64
    %v3170 = vpop.permute.xlu0 %3169
    %3171 = vrot.lane.b32.xlu0 %v3164, 64
    %v3172 = vpop.permute.xlu0 %3171
    %v3175 = vmul.f32 %v3160, %v3170
    %v3176 = vmul.f32 %v3162, %v3172
    %3179 = vrot.lane.b32.xlu0 %v3175, 32
    %v3180 = vpop.permute.xlu0 %3179
    %3181 = vrot.lane.b32.xlu0 %v3176, 32
    %v3182 = vpop.permute.xlu0 %3181
    %v3185 = vadd.f32 %v3165, %v3180
    %v3186 = vadd.f32 %v3166, %v3182
    %v3187 = vtanh.pop %v3185
    %v3188 = vtanh.pop %v3186
    %3191 = vrot.lane.b32.xlu0 %v3187, 64
    %v3192 = vpop.permute.xlu0 %3191
    %3193 = vrot.lane.b32.xlu0 %v3188, 64
    %v3194 = vpop.permute.xlu0 %3193
    %v3197 = vmul.f32 %v3160, %v3192
    %v3198 = vmul.f32 %v3162, %v3194
    %v3199 = vxor.u32 %v3149, 2147483648
    %v3200 = vxor.u32 %v3150, 2147483648
    %v3201 = vmul.f32 %v3199, 1.442695
    %v3202 = vpow.pop %v3201
    %v3203 = vmul.f32 %v3200, 1.442695
    %v3204 = vpow.pop %v3203
    %v3205 = vadd.f32 %v3202, 1.0
    %v3206 = vadd.f32 %v3204, 1.0
    %v3207 = vrcp.pop %v3205
    %v3208 = vmul.f32 1.0, %v3207
    %v3209 = vrcp.pop %v3206
    %v3210 = vmul.f32 1.0, %v3209
    %v3211 = vtanh.pop %v3149
    %v3212 = vtanh.pop %v3150
    %v3213 = vmul.f32 %v3208, %v3032
    %v3214 = vmul.f32 %v3210, %v3033
    %3217 = vrot.lane.b32.xlu0 %v3211, 64
    %v3218 = vpop.permute.xlu0 %3217
    %3219 = vrot.lane.b32.xlu0 %v3212, 64
    %v3220 = vpop.permute.xlu0 %3219
    %v3223 = vmul.f32 %v3208, %v3218
    %v3224 = vmul.f32 %v3210, %v3220
    %3227 = vrot.lane.b32.xlu0 %v3223, 32
    %v3228 = vpop.permute.xlu0 %3227
    %3229 = vrot.lane.b32.xlu0 %v3224, 32
    %v3230 = vpop.permute.xlu0 %3229
    %v3233 = vadd.f32 %v3213, %v3228
    %v3234 = vadd.f32 %v3214, %v3230
    %v3235 = vtanh.pop %v3233
    %v3236 = vtanh.pop %v3234
    %3239 = vrot.lane.b32.xlu0 %v3235, 64
    %v3240 = vpop.permute.xlu0 %3239
    %3241 = vrot.lane.b32.xlu0 %v3236, 64
    %v3242 = vpop.permute.xlu0 %3241
    %v3245 = vmul.f32 %v3208, %v3240
    %v3246 = vmul.f32 %v3210, %v3242
    %3249 = vrot.lane.b32.xlu0 %v3197, 32
    %v3250 = vpop.permute.xlu0 %3249
    %3251 = vrot.lane.b32.xlu0 %v3198, 32
    %v3252 = vpop.permute.xlu0 %3251
    %3257 = vrot.lane.b32.xlu0 %v3245, 64
    %v3258 = vpop.permute.xlu0 %3257
    %3259 = vrot.lane.b32.xlu0 %v3246, 64
    %v3260 = vpop.permute.xlu0 %3259
    %v3263 = vsel %vm2241, %v3250, %v3258
    %v3264 = vsel %vm2241, %v3252, %v3260
    %v3266 = vsel %vm2015, %v3263, 0
    %v3269 = vsel %vm2015, %v3264, 0
    %3271 = vmatprep.subr.mxu0 %v1932
    %3272 = vmatpush1.msra.mxu0 %v1931
    %3273 = vmatprep.subr.mxu0 %v1934
    %3274 = vmatpush1.msra.mxu0 %v1933
    %3275 = vmatprep.subr.mxu0 %v1936
    %3276 = vmatpush1.msra.mxu0 %v1935
    %3277 = vmatprep.subr.mxu0 %v1938
    %3278 = vmatpush1.msra.mxu0 %v1937
    %3279 = vmatprep.subr.mxu0 %v1940
    %3280 = vmatpush1.msra.mxu0 %v1939
    %3281 = vmatprep.subr.mxu0 %v1942
    %3282 = vmatpush1.msra.mxu0 %v1941
    %3283 = vmatprep.subr.mxu0 %v1944
    %3284 = vmatpush1.msra.mxu0 %v1943
    %3285 = vmatprep.subr.mxu0 %v1946
    %3286 = vmatpush1.msra.mxu0 %v1945
    %3287 = vmatprep.subr.mxu0 0.0
    %3288 = vmatpush1.msra.mxu0 0.0
    %3289 = vmatprep.subr.mxu0 0.0
    %3290 = vmatpush1.msra.mxu0 0.0
    %3291 = vmatprep.subr.mxu0 0.0
    %3292 = vmatpush1.msra.mxu0 0.0
    %3293 = vmatprep.subr.mxu0 0.0
    %3294 = vmatpush1.msra.mxu0 0.0
    %3295 = vmatprep.subr.mxu0 0.0
    %3296 = vmatpush1.msra.mxu0 0.0
    %3297 = vmatprep.subr.mxu0 0.0
    %3298 = vmatpush1.msra.mxu0 0.0
    %3299 = vmatprep.subr.mxu0 0.0
    %3300 = vmatpush1.msra.mxu0 0.0
    %3301 = vmatprep.subr.mxu0 0.0
    %3302 = vmatpush1.msra.mxu0 0.0
    %3303 = vmatprep.subr.mxu0 0.0
    %3304 = vmatpush1.msra.mxu0 0.0
    %3305 = vmatprep.subr.mxu0 0.0
    %3306 = vmatpush1.msra.mxu0 0.0
    %3307 = vmatprep.subr.mxu0 0.0
    %3308 = vmatpush1.msra.mxu0 0.0
    %3309 = vmatprep.subr.mxu0 0.0
    %3310 = vmatpush1.msra.mxu0 0.0
    %3311 = vmatprep.subr.mxu0 0.0
    %3312 = vmatpush1.msra.mxu0 0.0
    %3313 = vmatprep.subr.mxu0 0.0
    %3314 = vmatpush1.msra.mxu0 0.0
    %3315 = vmatprep.subr.mxu0 0.0
    %3316 = vmatpush1.msra.mxu0 0.0
    %3317 = vmatprep.subr.mxu0 0.0
    %3318 = vmatpush1.msra.mxu0 0.0
    %3319 = vmatprep.subr.mxu0 0.0
    %3320 = vmatpush1.msra.mxu0 0.0
    %3321 = vmatprep.subr.mxu0 0.0
    %3322 = vmatpush1.msra.mxu0 0.0
    %3323 = vmatprep.subr.mxu0 0.0
    %3324 = vmatpush1.msra.mxu0 0.0
    %3325 = vmatprep.subr.mxu0 0.0
    %3326 = vmatpush1.msra.mxu0 0.0
    %3327 = vmatprep.subr.mxu0 0.0
    %3328 = vmatpush1.msra.mxu0 0.0
    %3329 = vmatprep.subr.mxu0 0.0
    %3330 = vmatpush1.msra.mxu0 0.0
    %3331 = vmatprep.subr.mxu0 0.0
    %3332 = vmatpush1.msra.mxu0 0.0
    %3333 = vmatprep.subr.mxu0 0.0
    %3334 = vmatpush1.msra.mxu0 0.0
    %3335 = vmatprep.mubr.f32.mxu0 0.0
    %3336 = vmatmul.mubr.f32.gmra.mrb[0].mxu0 %v3266
    %v3337 = vpop.f32.mrb[0].mxu0
    %v3338 = vadd.f32 0.0, %v3337
    %v3339 = vpop.f32.mrb[0].mxu0
    %v3340 = vadd.f32 0.0, %v3339
    %3341 = vmatprep.mubr.f32.mxu0 0.0
    %3342 = vmatmul.mubr.f32.gmra.mrb[0].mxu0 %v3269
    %v3343 = vpop.f32.mrb[0].mxu0
    %v3344 = vadd.f32 0.0, %v3343
    %v3345 = vpop.f32.mrb[0].mxu0
    %v3346 = vadd.f32 0.0, %v3345
    %3347 = vdwg.mxu0
    %v3348 = vadd.f32 %v2135, %v3338
    %v3349 = vadd.f32 %v2139, %v3344
    %v3350 = vadd.f32 %v2087, %v3340
    %v3351 = vadd.f32 %v2091, %v3346
    %v3352 = vxor.u32 %v3348, 2147483648
    %v3353 = vxor.u32 %v3349, 2147483648
    %v3354 = vmul.f32 %v3352, 1.442695
    %v3355 = vpow.pop %v3354
    %v3356 = vmul.f32 %v3353, 1.442695
    %v3357 = vpow.pop %v3356
    %v3358 = vadd.f32 %v3355, 1.0
    %v3359 = vadd.f32 %v3357, 1.0
    %v3360 = vrcp.pop %v3358
    %v3361 = vmul.f32 1.0, %v3360
    %v3362 = vrcp.pop %v3359
    %v3363 = vmul.f32 1.0, %v3362
    %v3364 = vtanh.pop %v3348
    %v3365 = vtanh.pop %v3349
    %v3366 = vmul.f32 %v3361, %v3185
    %v3367 = vmul.f32 %v3363, %v3186
    %3370 = vrot.lane.b32.xlu0 %v3364, 64
    %v3371 = vpop.permute.xlu0 %3370
    %3372 = vrot.lane.b32.xlu0 %v3365, 64
    %v3373 = vpop.permute.xlu0 %3372
    %v3376 = vmul.f32 %v3361, %v3371
    %v3377 = vmul.f32 %v3363, %v3373
    %3380 = vrot.lane.b32.xlu0 %v3376, 32
    %v3381 = vpop.permute.xlu0 %3380
    %3382 = vrot.lane.b32.xlu0 %v3377, 32
    %v3383 = vpop.permute.xlu0 %3382
    %v3386 = vadd.f32 %v3366, %v3381
    %v3387 = vadd.f32 %v3367, %v3383
    %v3388 = vtanh.pop %v3386
    %v3389 = vtanh.pop %v3387
    %3392 = vrot.lane.b32.xlu0 %v3388, 64
    %v3393 = vpop.permute.xlu0 %3392
    %3394 = vrot.lane.b32.xlu0 %v3389, 64
    %v3395 = vpop.permute.xlu0 %3394
    %v3398 = vmul.f32 %v3361, %v3393
    %v3399 = vmul.f32 %v3363, %v3395
    %v3400 = vxor.u32 %v3350, 2147483648
    %v3401 = vxor.u32 %v3351, 2147483648
    %v3402 = vmul.f32 %v3400, 1.442695
    %v3403 = vpow.pop %v3402
    %v3404 = vmul.f32 %v3401, 1.442695
    %v3405 = vpow.pop %v3404
    %v3406 = vadd.f32 %v3403, 1.0
    %v3407 = vadd.f32 %v3405, 1.0
    %v3408 = vrcp.pop %v3406
    %v3409 = vmul.f32 1.0, %v3408
    %v3410 = vrcp.pop %v3407
    %v3411 = vmul.f32 1.0, %v3410
    %v3412 = vtanh.pop %v3350
    %v3413 = vtanh.pop %v3351
    %v3414 = vmul.f32 %v3409, %v3233
    %v3415 = vmul.f32 %v3411, %v3234
    %3418 = vrot.lane.b32.xlu0 %v3412, 64
    %v3419 = vpop.permute.xlu0 %3418
    %3420 = vrot.lane.b32.xlu0 %v3413, 64
    %v3421 = vpop.permute.xlu0 %3420
    %v3424 = vmul.f32 %v3409, %v3419
    %v3425 = vmul.f32 %v3411, %v3421
    %3428 = vrot.lane.b32.xlu0 %v3424, 32
    %v3429 = vpop.permute.xlu0 %3428
    %3430 = vrot.lane.b32.xlu0 %v3425, 32
    %v3431 = vpop.permute.xlu0 %3430
    %v3434 = vadd.f32 %v3414, %v3429
    %v3435 = vadd.f32 %v3415, %v3431
    %v3436 = vtanh.pop %v3434
    %v3437 = vtanh.pop %v3435
    %3440 = vrot.lane.b32.xlu0 %v3436, 64
    %v3441 = vpop.permute.xlu0 %3440
    %3442 = vrot.lane.b32.xlu0 %v3437, 64
    %v3443 = vpop.permute.xlu0 %3442
    %v3446 = vmul.f32 %v3409, %v3441
    %v3447 = vmul.f32 %v3411, %v3443
    %3450 = vrot.lane.b32.xlu0 %v3398, 32
    %v3451 = vpop.permute.xlu0 %3450
    %3452 = vrot.lane.b32.xlu0 %v3399, 32
    %v3453 = vpop.permute.xlu0 %3452
    %3458 = vrot.lane.b32.xlu0 %v3446, 64
    %v3459 = vpop.permute.xlu0 %3458
    %3460 = vrot.lane.b32.xlu0 %v3447, 64
    %v3461 = vpop.permute.xlu0 %3460
    %v3464 = vsel %vm2241, %v3451, %v3459
    %v3465 = vsel %vm2241, %v3453, %v3461
    %v3467 = vsel %vm2015, %v3464, 0
    %v3470 = vsel %vm2015, %v3465, 0
    %3472 = vmatprep.subr.mxu0 %v1932
    %3473 = vmatpush1.msra.mxu0 %v1931
    %3474 = vmatprep.subr.mxu0 %v1934
    %3475 = vmatpush1.msra.mxu0 %v1933
    %3476 = vmatprep.subr.mxu0 %v1936
    %3477 = vmatpush1.msra.mxu0 %v1935
    %3478 = vmatprep.subr.mxu0 %v1938
    %3479 = vmatpush1.msra.mxu0 %v1937
    %3480 = vmatprep.subr.mxu0 %v1940
    %3481 = vmatpush1.msra.mxu0 %v1939
    %3482 = vmatprep.subr.mxu0 %v1942
    %3483 = vmatpush1.msra.mxu0 %v1941
    %3484 = vmatprep.subr.mxu0 %v1944
    %3485 = vmatpush1.msra.mxu0 %v1943
    %3486 = vmatprep.subr.mxu0 %v1946
    %3487 = vmatpush1.msra.mxu0 %v1945
    %3488 = vmatprep.subr.mxu0 0.0
    %3489 = vmatpush1.msra.mxu0 0.0
    %3490 = vmatprep.subr.mxu0 0.0
    %3491 = vmatpush1.msra.mxu0 0.0
    %3492 = vmatprep.subr.mxu0 0.0
    %3493 = vmatpush1.msra.mxu0 0.0
    %3494 = vmatprep.subr.mxu0 0.0
    %3495 = vmatpush1.msra.mxu0 0.0
    %3496 = vmatprep.subr.mxu0 0.0
    %3497 = vmatpush1.msra.mxu0 0.0
    %3498 = vmatprep.subr.mxu0 0.0
    %3499 = vmatpush1.msra.mxu0 0.0
    %3500 = vmatprep.subr.mxu0 0.0
    %3501 = vmatpush1.msra.mxu0 0.0
    %3502 = vmatprep.subr.mxu0 0.0
    %3503 = vmatpush1.msra.mxu0 0.0
    %3504 = vmatprep.subr.mxu0 0.0
    %3505 = vmatpush1.msra.mxu0 0.0
    %3506 = vmatprep.subr.mxu0 0.0
    %3507 = vmatpush1.msra.mxu0 0.0
    %3508 = vmatprep.subr.mxu0 0.0
    %3509 = vmatpush1.msra.mxu0 0.0
    %3510 = vmatprep.subr.mxu0 0.0
    %3511 = vmatpush1.msra.mxu0 0.0
    %3512 = vmatprep.subr.mxu0 0.0
    %3513 = vmatpush1.msra.mxu0 0.0
    %3514 = vmatprep.subr.mxu0 0.0
    %3515 = vmatpush1.msra.mxu0 0.0
    %3516 = vmatprep.subr.mxu0 0.0
    %3517 = vmatpush1.msra.mxu0 0.0
    %3518 = vmatprep.subr.mxu0 0.0
    %3519 = vmatpush1.msra.mxu0 0.0
    %3520 = vmatprep.subr.mxu0 0.0
    %3521 = vmatpush1.msra.mxu0 0.0
    %3522 = vmatprep.subr.mxu0 0.0
    %3523 = vmatpush1.msra.mxu0 0.0
    %3524 = vmatprep.subr.mxu0 0.0
    %3525 = vmatpush1.msra.mxu0 0.0
    %3526 = vmatprep.subr.mxu0 0.0
    %3527 = vmatpush1.msra.mxu0 0.0
    %3528 = vmatprep.subr.mxu0 0.0
    %3529 = vmatpush1.msra.mxu0 0.0
    %3530 = vmatprep.subr.mxu0 0.0
    %3531 = vmatpush1.msra.mxu0 0.0
    %3532 = vmatprep.subr.mxu0 0.0
    %3533 = vmatpush1.msra.mxu0 0.0
    %3534 = vmatprep.subr.mxu0 0.0
    %3535 = vmatpush1.msra.mxu0 0.0
    %3536 = vmatprep.mubr.f32.mxu0 0.0
    %3537 = vmatmul.mubr.f32.gmra.mrb[0].mxu0 %v3467
    %v3538 = vpop.f32.mrb[0].mxu0
    %v3539 = vadd.f32 0.0, %v3538
    %v3540 = vpop.f32.mrb[0].mxu0
    %v3541 = vadd.f32 0.0, %v3540
    %3542 = vmatprep.mubr.f32.mxu0 0.0
    %3543 = vmatmul.mubr.f32.gmra.mrb[0].mxu0 %v3470
    %v3544 = vpop.f32.mrb[0].mxu0
    %v3545 = vadd.f32 0.0, %v3544
    %v3546 = vpop.f32.mrb[0].mxu0
    %v3547 = vadd.f32 0.0, %v3546
    %3548 = vdwg.mxu0
    %v3549 = vadd.f32 %v2145, %v3539
    %v3550 = vadd.f32 %v2149, %v3545
    %v3551 = vadd.f32 %v2077, %v3541
    %v3552 = vadd.f32 %v2081, %v3547
    %v3553 = vxor.u32 %v3549, 2147483648
    %v3554 = vxor.u32 %v3550, 2147483648
    %v3555 = vmul.f32 %v3553, 1.442695
    %v3556 = vpow.pop %v3555
    %v3557 = vmul.f32 %v3554, 1.442695
    %v3558 = vpow.pop %v3557
    %v3559 = vadd.f32 %v3556, 1.0
    %v3560 = vadd.f32 %v3558, 1.0
    %v3561 = vrcp.pop %v3559
    %v3562 = vmul.f32 1.0, %v3561
    %v3563 = vrcp.pop %v3560
    %v3564 = vmul.f32 1.0, %v3563
    %v3565 = vtanh.pop %v3549
    %v3566 = vtanh.pop %v3550
    %v3567 = vmul.f32 %v3562, %v3386
    %v3568 = vmul.f32 %v3564, %v3387
    %3571 = vrot.lane.b32.xlu0 %v3565, 64
    %v3572 = vpop.permute.xlu0 %3571
    %3573 = vrot.lane.b32.xlu0 %v3566, 64
    %v3574 = vpop.permute.xlu0 %3573
    %v3577 = vmul.f32 %v3562, %v3572
    %v3578 = vmul.f32 %v3564, %v3574
    %3581 = vrot.lane.b32.xlu0 %v3577, 32
    %v3582 = vpop.permute.xlu0 %3581
    %3583 = vrot.lane.b32.xlu0 %v3578, 32
    %v3584 = vpop.permute.xlu0 %3583
    %v3587 = vadd.f32 %v3567, %v3582
    %v3588 = vadd.f32 %v3568, %v3584
    %v3589 = vtanh.pop %v3587
    %v3590 = vtanh.pop %v3588
    %3593 = vrot.lane.b32.xlu0 %v3589, 64
    %v3594 = vpop.permute.xlu0 %3593
    %3595 = vrot.lane.b32.xlu0 %v3590, 64
    %v3596 = vpop.permute.xlu0 %3595
    %v3599 = vmul.f32 %v3562, %v3594
    %v3600 = vmul.f32 %v3564, %v3596
    %v3601 = vxor.u32 %v3551, 2147483648
    %v3602 = vxor.u32 %v3552, 2147483648
    %v3603 = vmul.f32 %v3601, 1.442695
    %v3604 = vpow.pop %v3603
    %v3605 = vmul.f32 %v3602, 1.442695
    %v3606 = vpow.pop %v3605
    %v3607 = vadd.f32 %v3604, 1.0
    %v3608 = vadd.f32 %v3606, 1.0
    %v3609 = vrcp.pop %v3607
    %v3610 = vmul.f32 1.0, %v3609
    %v3611 = vrcp.pop %v3608
    %v3612 = vmul.f32 1.0, %v3611
    %v3613 = vtanh.pop %v3551
    %v3614 = vtanh.pop %v3552
    %v3615 = vmul.f32 %v3610, %v3434
    %v3616 = vmul.f32 %v3612, %v3435
    %3619 = vrot.lane.b32.xlu0 %v3613, 64
    %v3620 = vpop.permute.xlu0 %3619
    %3621 = vrot.lane.b32.xlu0 %v3614, 64
    %v3622 = vpop.permute.xlu0 %3621
    %v3625 = vmul.f32 %v3610, %v3620
    %v3626 = vmul.f32 %v3612, %v3622
    %3629 = vrot.lane.b32.xlu0 %v3625, 32
    %v3630 = vpop.permute.xlu0 %3629
    %3631 = vrot.lane.b32.xlu0 %v3626, 32
    %v3632 = vpop.permute.xlu0 %3631
    %v3635 = vadd.f32 %v3615, %v3630
    %v3636 = vadd.f32 %v3616, %v3632
    %v3637 = vtanh.pop %v3635
    %v3638 = vtanh.pop %v3636
    %3641 = vrot.lane.b32.xlu0 %v3637, 64
    %v3642 = vpop.permute.xlu0 %3641
    %3643 = vrot.lane.b32.xlu0 %v3638, 64
    %v3644 = vpop.permute.xlu0 %3643
    %v3647 = vmul.f32 %v3610, %v3642
    %v3648 = vmul.f32 %v3612, %v3644
    %3651 = vrot.lane.b32.xlu0 %v3599, 32
    %v3652 = vpop.permute.xlu0 %3651
    %3653 = vrot.lane.b32.xlu0 %v3600, 32
    %v3654 = vpop.permute.xlu0 %3653
    %3659 = vrot.lane.b32.xlu0 %v3647, 64
    %v3660 = vpop.permute.xlu0 %3659
    %3661 = vrot.lane.b32.xlu0 %v3648, 64
    %v3662 = vpop.permute.xlu0 %3661
    %v3665 = vsel %vm2241, %v3652, %v3660
    %v3666 = vsel %vm2241, %v3654, %v3662
    %v3667 = vld [vmem:[#allocation12] sm:$0xff]
    %v3668 = vld [vmem:[#allocation12 + $0x8] sm:$0xff]
    %v3669 = vld [vmem:[#allocation12 + $0x10] sm:$0xff]
    %v3670 = vld [vmem:[#allocation12 + $0x18] sm:$0xff]
    %v3671 = vld [vmem:[#allocation12 + $0x20] sm:$0xff]
    %v3672 = vld [vmem:[#allocation12 + $0x28] sm:$0xff]
    %v3673 = vld [vmem:[#allocation12 + $0x30] sm:$0xff]
    %v3674 = vld [vmem:[#allocation12 + $0x38] sm:$0xff]
    %v3675 = vld [vmem:[%s7] sm:$0x1]
    %v3677 = vlaneseq
    %v3678 = vshrl.u32 %v3677, 7
    %v3679 = vsub.s32 0, %v3678
    %v3680 = vrot.slane %v3675, %v3679
    %v3683 = vsel %vm2015, %v3665, 0
    %v3686 = vsel %vm2015, %v3666, 0
    %3688 = vmatprep.subr.mxu0 0.0
    %3689 = vmatpush1.msra.mxu0 %v3667
    %3690 = vmatprep.subr.mxu0 0.0
    %3691 = vmatpush1.msra.mxu0 %v3668
    %3692 = vmatprep.subr.mxu0 0.0
    %3693 = vmatpush1.msra.mxu0 %v3669
    %3694 = vmatprep.subr.mxu0 0.0
    %3695 = vmatpush1.msra.mxu0 %v3670
    %3696 = vmatprep.subr.mxu0 0.0
    %3697 = vmatpush1.msra.mxu0 %v3671
    %3698 = vmatprep.subr.mxu0 0.0
    %3699 = vmatpush1.msra.mxu0 %v3672
    %3700 = vmatprep.subr.mxu0 0.0
    %3701 = vmatpush1.msra.mxu0 %v3673
    %3702 = vmatprep.subr.mxu0 0.0
    %3703 = vmatpush1.msra.mxu0 %v3674
    %3704 = vmatprep.subr.mxu0 0.0
    %3705 = vmatpush1.msra.mxu0 0.0
    %3706 = vmatprep.subr.mxu0 0.0
    %3707 = vmatpush1.msra.mxu0 0.0
    %3708 = vmatprep.subr.mxu0 0.0
    %3709 = vmatpush1.msra.mxu0 0.0
    %3710 = vmatprep.subr.mxu0 0.0
    %3711 = vmatpush1.msra.mxu0 0.0
    %3712 = vmatprep.subr.mxu0 0.0
    %3713 = vmatpush1.msra.mxu0 0.0
    %3714 = vmatprep.subr.mxu0 0.0
    %3715 = vmatpush1.msra.mxu0 0.0
    %3716 = vmatprep.subr.mxu0 0.0
    %3717 = vmatpush1.msra.mxu0 0.0
    %3718 = vmatprep.subr.mxu0 0.0
    %3719 = vmatpush1.msra.mxu0 0.0
    %3720 = vmatprep.subr.mxu0 0.0
    %3721 = vmatpush1.msra.mxu0 0.0
    %3722 = vmatprep.subr.mxu0 0.0
    %3723 = vmatpush1.msra.mxu0 0.0
    %3724 = vmatprep.subr.mxu0 0.0
    %3725 = vmatpush1.msra.mxu0 0.0
    %3726 = vmatprep.subr.mxu0 0.0
    %3727 = vmatpush1.msra.mxu0 0.0
    %3728 = vmatprep.subr.mxu0 0.0
    %3729 = vmatpush1.msra.mxu0 0.0
    %3730 = vmatprep.subr.mxu0 0.0
    %3731 = vmatpush1.msra.mxu0 0.0
    %3732 = vmatprep.subr.mxu0 0.0
    %3733 = vmatpush1.msra.mxu0 0.0
    %3734 = vmatprep.subr.mxu0 0.0
    %3735 = vmatpush1.msra.mxu0 0.0
    %3736 = vmatprep.subr.mxu0 0.0
    %3737 = vmatpush1.msra.mxu0 0.0
    %3738 = vmatprep.subr.mxu0 0.0
    %3739 = vmatpush1.msra.mxu0 0.0
    %3740 = vmatprep.subr.mxu0 0.0
    %3741 = vmatpush1.msra.mxu0 0.0
    %3742 = vmatprep.subr.mxu0 0.0
    %3743 = vmatpush1.msra.mxu0 0.0
    %3744 = vmatprep.subr.mxu0 0.0
    %3745 = vmatpush1.msra.mxu0 0.0
    %3746 = vmatprep.subr.mxu0 0.0
    %3747 = vmatpush1.msra.mxu0 0.0
    %3748 = vmatprep.subr.mxu0 0.0
    %3749 = vmatpush1.msra.mxu0 0.0
    %3750 = vmatprep.subr.mxu0 0.0
    %3751 = vmatpush1.msra.mxu0 0.0
    %3752 = vmatprep.mubr.f32.mxu0 0.0
    %3753 = vmatmul.mubr.f32.gmra.mrb[0].mxu0 %v3683
    %v3754 = vpop.f32.mrb[0].mxu0
    %v3755 = vadd.f32 %v3680, %v3754
    %v3756 = vpop.f32.mrb[0].mxu0
    %3757 = vmatprep.mubr.f32.mxu0 0.0
    %3758 = vmatmul.mubr.f32.gmra.mrb[0].mxu0 %v3686
    %v3759 = vpop.f32.mrb[0].mxu0
    %v3760 = vadd.f32 %v3680, %v3759
    %v3761 = vpop.f32.mrb[0].mxu0
    %3762 = vdwg.mxu0
    %v3763 = vxor.u32 %v3755, 2147483648
    %v3764 = vxor.u32 %v3760, 2147483648
    %v3765 = vmul.f32 %v3763, 1.442695
    %v3766 = vpow.pop %v3765
    %v3767 = vmul.f32 %v3764, 1.442695
    %v3768 = vpow.pop %v3767
    %v3769 = vadd.f32 %v3766, 1.0
    %v3770 = vadd.f32 %v3768, 1.0
    %v3771 = vrcp.pop %v3769
    %v3772 = vmul.f32 1.0, %v3771
    %v3773 = vrcp.pop %v3770
    %v3774 = vmul.f32 1.0, %v3773
    %v3775 = vtanh.pop %v3755
    %v3776 = vtanh.pop %v3760
    %3779 = vrot.lane.b32.xlu0 %v3775, 112
    %v3780 = vpop.permute.xlu0 %3779
    %3781 = vrot.lane.b32.xlu0 %v3776, 112
    %v3782 = vpop.permute.xlu0 %3781
    %v3785 = vmul.f32 %v3772, %v3780
    %v3786 = vmul.f32 %v3774, %v3782
    %v3787 = vtanh.pop %v3785
    %v3788 = vtanh.pop %v3786
    %3791 = vrot.lane.b32.xlu0 %v3787, 24
    %v3792 = vpop.permute.xlu0 %3791
    %3793 = vrot.lane.b32.xlu0 %v3788, 24
    %v3794 = vpop.permute.xlu0 %3793
    %v3797 = vmul.f32 %v3772, %v3792
    %v3798 = vmul.f32 %v3774, %v3794
    %3801 = vrot.lane.b32.xlu0 %v3797, 104
    %v3802 = vpop.permute.xlu0 %3801
    %3803 = vrot.lane.b32.xlu0 %v3798, 104
    %v3804 = vpop.permute.xlu0 %3803
    %3807 = vrot.lane.b32.xlu0 %v3797, 80
    %v3808 = vpop.permute.xlu0 %3807
    %3809 = vrot.lane.b32.xlu0 %v3798, 80
    %v3810 = vpop.permute.xlu0 %3809
    %vm3813 = vcmask 64512
    %v3814 = vsel %vm3813, %v3802, %v3808
    %v3815 = vsel %vm3813, %v3804, %v3810
    %v3816 = vpack.c.bf16 %v3815, %v3814
    %v3817 = vld [vmem:[%s8] sm:$0xf]
    %v3818 = vld [vmem:[%s8 + $0x4] sm:$0xf]
    %v3819 = vld [vmem:[%s9] sm:$0x1]
    %v3821 = vlaneseq
    %v3822 = vshrl.u32 %v3821, 7
    %v3823 = vsub.s32 0, %v3822
    %v3824 = vrot.slane %v3819, %v3823
    %v3828 = vunpack.c.l.b16 %v3817
    %v3829 = vunpack.c.l.b16 %v3818
    %v3830 = vpack.c.b16 %v3829, %v3828
    %vm3832 = vcmask 130048
    %v3834 = vsel %vm3832, %v3816, 0
    %3836 = vmatprep.subr.bf16.mxu0 0
    %3837 = vmatpush1.bf16.msra.mxu0 %v3830
    %3838 = vmatprep.subr.bf16.mxu0 0
    %3839 = vmatpush1.bf16.msra.mxu0 0
    %3840 = vmatprep.subr.bf16.mxu0 0
    %3841 = vmatpush1.bf16.msra.mxu0 0
    %3842 = vmatprep.subr.bf16.mxu0 0
    %3843 = vmatpush1.bf16.msra.mxu0 0
    %3844 = vmatprep.subr.bf16.mxu0 0
    %3845 = vmatpush1.bf16.msra.mxu0 0
    %3846 = vmatprep.subr.bf16.mxu0 0
    %3847 = vmatpush1.bf16.msra.mxu0 0
    %3848 = vmatprep.subr.bf16.mxu0 0
    %3849 = vmatpush1.bf16.msra.mxu0 0
    %3850 = vmatprep.subr.bf16.mxu0 0
    %3851 = vmatpush1.bf16.msra.mxu0 0
    %3852 = vmatprep.subr.bf16.mxu0 0
    %3853 = vmatpush1.bf16.msra.mxu0 0
    %3854 = vmatprep.subr.bf16.mxu0 0
    %3855 = vmatpush1.bf16.msra.mxu0 0
    %3856 = vmatprep.subr.bf16.mxu0 0
    %3857 = vmatpush1.bf16.msra.mxu0 0
    %3858 = vmatprep.subr.bf16.mxu0 0
    %3859 = vmatpush1.bf16.msra.mxu0 0
    %3860 = vmatprep.subr.bf16.mxu0 0
    %3861 = vmatpush1.bf16.msra.mxu0 0
    %3862 = vmatprep.subr.bf16.mxu0 0
    %3863 = vmatpush1.bf16.msra.mxu0 0
    %3864 = vmatprep.subr.bf16.mxu0 0
    %3865 = vmatpush1.bf16.msra.mxu0 0
    %3866 = vmatprep.subr.bf16.mxu0 0
    %3867 = vmatpush1.bf16.msra.mxu0 0
    %3868 = vmatprep.mubr.bf16.mxu0 0
    %3869 = vmatmul.mubr.bf16.gmra.mrb[0].mxu0 %v3834
    %v3870 = vpop.f32.mrb[0].mxu0
    %v3871 = vadd.f32 %v3824, %v3870
    %v3872 = vpop.f32.mrb[0].mxu0
    %v3873 = vpop.f32.mrb[0].mxu0
    %v3874 = vadd.f32 %v3824, %v3873
    %v3875 = vpop.f32.mrb[0].mxu0
    %3876 = vdwg.mxu0
    %3877 = vst [vmem:[#allocation13] sm:$0xff] %v3871
    %3878 = vst [vmem:[#allocation13 + $0x8] sm:$0xff] %v3874
    // Predicated region
    $region66: #{tpu_custom_call.1} parent=1 // pred_check
      _
    $region67: #{tpu_custom_call.1} parent=1 // pred_check_branch
      %3880 = sbr.rel (0) target = $region69
    $region68: #{tpu_custom_call.1} parent=1 // pred_region
      %s3882 = ssub.s32 256, 256
      %3883 = vsyncadd [#allocation4], %s3882
      %s3884 = sshll.u32 [#allocation13], 4
      %s3885 = int_to_ptr.vmem [resolvable:$true] %s3884
      %3890 = dma.vmem_to_hbm [thread:$0]  %s3885, 256, %s10, [#allocation4], 128, 128, 8
    $region69: #{tpu_custom_call.1} parent=1 // pred_fallthru
      _
    // Predicated region
    $region70: #{tpu_custom_call.1} parent=1 // pred_check
      _
    $region71: #{tpu_custom_call.1} parent=1 // pred_check_branch
      %3892 = sbr.rel (0) target = $region73
    $region72: #{tpu_custom_call.1} parent=1 // pred_region
      %3893 = dma.done [#allocation4], 256
    $region73: #{tpu_custom_call.1} parent=1 // pred_fallthru
      _
    %3894 = vsyncpa [#allocation3], 1
    %3895 = vsyncpa [#allocation8], 1
    %3896 = vsyncpa [#allocation11], 1
    %3897 = vsyncpa [#allocation4], 1
    %3898 = vsyncpa [#allocation5], 1

</llo_original>
